<compile_context>
chip_gen: v6e
topology: v6e:2x2x1
jax: 0.10.0
libtpu: 0.0.40
codegen_flags: <defaults>
</compile_context>

<pallas_src>
import jax
import jax.numpy as jnp
import numpy as np
from jax import lax
from jax.experimental import pallas as pl
from jax.experimental.pallas import tpu as pltpu

# ---- static problem configuration (small, consistent with the module) ----
N, H, W = 2, 16, 16          # batch, spatial
CIN = 4                      # inplanes
PLANES = 4                   # planes (== inplanes so identity shortcut is valid)
STRIDE = 1
EPS = 1e-5
P = H * W                    # flattened spatial extent on the lane axis (256)
TAPS = [(kh - 1, kw - 1) for kh in range(3) for kw in range(3)]

assert STRIDE == 1 and CIN == PLANES, "identity shortcut needs stride=1, inplanes==planes"
assert W & (W - 1) == 0, "mask computation uses shift/and (W must be a power of two)"


def _tap_mask(lane_i, lane_j, dh, dw):
    """Validity mask (1, P) for conv tap offset (dh, dw); None for the centre tap."""
    conds = []
    if dh < 0:
        conds.append(lane_i >= -dh)
    if dh > 0:
        conds.append(lane_i < H - dh)
    if dw < 0:
        conds.append(lane_j >= -dw)
    if dw > 0:
        conds.append(lane_j < W - dw)
    if not conds:
        return None
    m = conds[0]
    for c in conds[1:]:
        m = jnp.logical_and(m, c)
    return m


def _conv3x3_vpu(x_slabs, w_ref, conv_idx, b_col, lane_i, lane_j):
    """3x3 conv (padding=1, stride=1) on the VPU over lane-dense (C, P) slabs.

    x_slabs: list of per-batch values, each (CIN, P).
    w_ref:   Ref of shape (2, 9*CIN, COUT, 1); row k = (kh*3 + kw)*CIN + ci.
    Returns the pre-BN conv outputs: list of per-batch values, each (COUT, P).
    """
    accs = [jnp.zeros((PLANES, P), jnp.float32) for _ in range(len(x_slabs))]
    k = 0
    for dh, dw in TAPS:
        delta = dh * W + dw
        shift = (-delta) % P            # out[p] = x[(p + delta) mod P] (jnp.roll semantics)
        mask = _tap_mask(lane_i, lane_j, dh, dw)
        taps = []
        for xn in x_slabs:
            t = pltpu.roll(xn, shift, axis=1) if shift else xn   # XLU lane rotation
            if mask is not None:
                t = jnp.where(mask, t, 0.0)                      # zero pad / wrapped lanes
            taps.append(t)
        for ci in range(CIN):
            wk = w_ref[conv_idx, k]                              # (COUT, 1) weight column
            for n in range(len(x_slabs)):
                accs[n] = accs[n] + taps[n][ci:ci + 1, :] * wk   # (1,P)*(COUT,1) -> (COUT,P)
            k += 1
    return [acc + b_col for acc in accs]


def _batchnorm(ys, gamma_col, beta_col):
    """Training-mode BatchNorm2d (batch stats, biased var) fused into one normalize pass."""
    inv_cnt = 1.0 / float(len(ys) * P)
    s = ys[0].sum(axis=1, keepdims=True)
    s2 = (ys[0] * ys[0]).sum(axis=1, keepdims=True)
    for y in ys[1:]:
        s = s + y.sum(axis=1, keepdims=True)
        s2 = s2 + (y * y).sum(axis=1, keepdims=True)
    mean = s * inv_cnt
    var = s2 * inv_cnt - mean * mean
    scale = gamma_col * lax.rsqrt(var + EPS)        # rsqrt on the EUP
    shift = beta_col - mean * scale
    return [y * scale + shift for y in ys]


def basic_block_kernel(x_ref, wcols_ref, pvec_ref, o_ref):
    # per-channel parameter columns, each (C, 1): b1, g1, be1, b2, g2, be2
    b1, g1, be1 = pvec_ref[0], pvec_ref[1], pvec_ref[2]
    b2, g2, be2 = pvec_ref[3], pvec_ref[4], pvec_ref[5]

    # lane index -> (row, col) of the flattened H*W axis (W is a power of two)
    lane = lax.broadcasted_iota(jnp.int32, (1, P), 1)
    lane_i = jnp.right_shift(lane, W.bit_length() - 1)   # lane // W
    lane_j = jnp.bitwise_and(lane, W - 1)                # lane %  W

    x_slabs = [x_ref[n] for n in range(N)]               # each (CIN, P), f32

    # ---- conv1 + bn1 + relu ----
    y = _conv3x3_vpu(x_slabs, wcols_ref, 0, b1, lane_i, lane_j)
    y = _batchnorm(y, g1, be1)
    y = [jnp.maximum(v, 0.0) for v in y]

    # ---- conv2 + bn2 ----
    y = _conv3x3_vpu(y, wcols_ref, 1, b2, lane_i, lane_j)
    y = _batchnorm(y, g2, be2)

    # ---- residual add + relu, lane-dense stores ----
    for n in range(N):
        o_ref[n, :, :] = jnp.maximum(y[n] + x_slabs[n], 0.0)


def prepare_params(params):
    """One-time layout prep (outside the jitted hot path).

    Packs conv weights into broadcast-ready (COUT, 1) columns and the 6 per-channel
    vectors (conv biases + BN affine params) into one small operand.
    """
    def to_cols(w):  # OIHW (O, I, 3, 3) -> (9*I, O, 1), row k = (kh*3 + kw)*I + ci
        o, i = w.shape[0], w.shape[1]
        return jnp.transpose(w, (2, 3, 1, 0)).reshape(9 * i, o)[:, :, None]

    wcols = jnp.stack([to_cols(params["w1"]), to_cols(params["w2"])], axis=0)
    pvec = jnp.stack([params["b1"], params["g1"], params["be1"],
                      params["b2"], params["g2"], params["be2"]], axis=0)[:, :, None]
    return wcols.astype(jnp.float32), pvec.astype(jnp.float32)


@jax.jit
def basic_block_pallas(x_nchw, wcols, pvec):
    """x_nchw: (N, CIN, H, W) float32; wcols/pvec come from prepare_params()."""
    # NCHW -> (N, C, H*W): free row-major collapse, no transpose / pad pass in the wrapper.
    x = x_nchw.reshape(N, CIN, P).astype(jnp.float32)

    vmem = pl.BlockSpec(memory_space=pltpu.MemorySpace.VMEM)
    out = pl.pallas_call(
        basic_block_kernel,
        out_shape=jax.ShapeDtypeStruct((N, PLANES, P), jnp.float32),
        in_specs=[vmem, vmem, vmem],
        out_specs=vmem,
        # No grid: BatchNorm batch statistics are global over (N, H, W), so the whole
        # block runs in one invocation (tiling over N would change BN semantics).
    )(x, wcols, pvec)

    return out.reshape(N, PLANES, H, W)                  # back to NCHW (free reshape)


def basic_block_reference(x, p):
    """Pure-JAX (lax.conv) reference of the PyTorch forward, NCHW."""
    def conv(x, w, b, stride):
        y = lax.conv_general_dilated(
            x, w, (stride, stride), ((1, 1), (1, 1)),
            dimension_numbers=("NCHW", "OIHW", "NCHW"))
        return y + b[None, :, None, None]

    def bn(y, g, be):
        mean = jnp.mean(y, axis=(0, 2, 3), keepdims=True)
        var = jnp.mean((y - mean) ** 2, axis=(0, 2, 3), keepdims=True)
        return (y - mean) * lax.rsqrt(var + EPS) * g[None, :, None, None] \
            + be[None, :, None, None]

    out = jax.nn.relu(bn(conv(x, p["w1"], p["b1"], STRIDE), p["g1"], p["be1"]))
    out = bn(conv(out, p["w2"], p["b2"], 1), p["g2"], p["be2"])
    out = out + x                    # downsample=None, residual=True
    return jax.nn.relu(out)


if __name__ == "__main__":
    key = jax.random.PRNGKey(0)
    kx, k1, k2, k3, k4, k5, k6 = jax.random.split(key, 7)

    x = jax.random.normal(kx, (N, CIN, H, W), jnp.float32)

    params = {
        # conv weights in PyTorch OIHW layout, biases (C,)
        "w1": 0.2 * jax.random.normal(k1, (PLANES, CIN, 3, 3), jnp.float32),
        "b1": 0.1 * jax.random.normal(k2, (PLANES,), jnp.float32),
        "w2": 0.2 * jax.random.normal(k3, (PLANES, PLANES, 3, 3), jnp.float32),
        "b2": 0.1 * jax.random.normal(k4, (PLANES,), jnp.float32),
        # BatchNorm affine params (nonzero to exercise the affine path)
        "g1": 1.0 + 0.1 * jax.random.normal(k5, (PLANES,), jnp.float32),
        "be1": 0.05 * jnp.arange(PLANES, dtype=jnp.float32),
        "g2": 1.0 + 0.1 * jax.random.normal(k6, (PLANES,), jnp.float32),
        "be2": -0.05 * jnp.arange(PLANES, dtype=jnp.float32),
    }

    wcols, pvec = prepare_params(params)          # one-time weight/param re-layout

    out = basic_block_pallas(x, wcols, pvec)
    out = jax.block_until_ready(out)

    ref = jax.block_until_ready(basic_block_reference(x, params))
    if not np.allclose(np.asarray(out), np.asarray(ref), atol=2e-3, rtol=2e-3):
        raise AssertionError("Pallas BasicBlock does not match reference")

    print("KERNEL_OK")
</pallas_src>

<mosaic_0001>
module attributes {stable_mosaic.version = 11 : i64} {
  func.func @basic_block_kernel(%arg0: memref<2x4x256xf32, #tpu.memory_space<vmem>>, %arg1: memref<2x36x4x1xf32, #tpu.memory_space<vmem>>, %arg2: memref<6x4x1xf32, #tpu.memory_space<vmem>>, %arg3: memref<2x4x256xf32, #tpu.memory_space<vmem>>) attributes {dimension_semantics = [], scalar_prefetch = 0 : i64, scratch_operands = 0 : i64, tpu.core_type = #tpu.core_type<tc>} {
    %c0 = arith.constant 0 : index
    %c0_0 = arith.constant 0 : index
    %c0_1 = arith.constant 0 : index
    %0 = vector.load %arg2[%c0, %c0_0, %c0_1] : memref<6x4x1xf32, #tpu.memory_space<vmem>>, vector<1x4x1xf32>
    %1 = vector.shape_cast %0 : vector<1x4x1xf32> to vector<4x1xf32>
    %c1 = arith.constant 1 : index
    %c0_2 = arith.constant 0 : index
    %c0_3 = arith.constant 0 : index
    %2 = vector.load %arg2[%c1, %c0_2, %c0_3] : memref<6x4x1xf32, #tpu.memory_space<vmem>>, vector<1x4x1xf32>
    %3 = vector.shape_cast %2 : vector<1x4x1xf32> to vector<4x1xf32>
    %c2 = arith.constant 2 : index
    %c0_4 = arith.constant 0 : index
    %c0_5 = arith.constant 0 : index
    %4 = vector.load %arg2[%c2, %c0_4, %c0_5] : memref<6x4x1xf32, #tpu.memory_space<vmem>>, vector<1x4x1xf32>
    %5 = vector.shape_cast %4 : vector<1x4x1xf32> to vector<4x1xf32>
    %c3 = arith.constant 3 : index
    %c0_6 = arith.constant 0 : index
    %c0_7 = arith.constant 0 : index
    %6 = vector.load %arg2[%c3, %c0_6, %c0_7] : memref<6x4x1xf32, #tpu.memory_space<vmem>>, vector<1x4x1xf32>
    %7 = vector.shape_cast %6 : vector<1x4x1xf32> to vector<4x1xf32>
    %c4 = arith.constant 4 : index
    %c0_8 = arith.constant 0 : index
    %c0_9 = arith.constant 0 : index
    %8 = vector.load %arg2[%c4, %c0_8, %c0_9] : memref<6x4x1xf32, #tpu.memory_space<vmem>>, vector<1x4x1xf32>
    %9 = vector.shape_cast %8 : vector<1x4x1xf32> to vector<4x1xf32>
    %c5 = arith.constant 5 : index
    %c0_10 = arith.constant 0 : index
    %c0_11 = arith.constant 0 : index
    %10 = vector.load %arg2[%c5, %c0_10, %c0_11] : memref<6x4x1xf32, #tpu.memory_space<vmem>>, vector<1x4x1xf32>
    %11 = vector.shape_cast %10 : vector<1x4x1xf32> to vector<4x1xf32>
    %12 = tpu.iota {dimensions = array<i32: 1>} : vector<1x256xi32>
    %c4_i32 = arith.constant 4 : i32
    %13 = vector.broadcast %c4_i32 : i32 to vector<1x256xi32>
    %14 = arith.shrsi %12, %13 : vector<1x256xi32>
    %c15_i32 = arith.constant 15 : i32
    %15 = vector.broadcast %c15_i32 : i32 to vector<1x256xi32>
    %16 = arith.andi %12, %15 : vector<1x256xi32>
    %c0_12 = arith.constant 0 : index
    %c0_13 = arith.constant 0 : index
    %c0_14 = arith.constant 0 : index
    %17 = vector.load %arg0[%c0_12, %c0_13, %c0_14] : memref<2x4x256xf32, #tpu.memory_space<vmem>>, vector<1x4x256xf32>
    %18 = vector.shape_cast %17 : vector<1x4x256xf32> to vector<4x256xf32>
    %c1_15 = arith.constant 1 : index
    %c0_16 = arith.constant 0 : index
    %c0_17 = arith.constant 0 : index
    %19 = vector.load %arg0[%c1_15, %c0_16, %c0_17] : memref<2x4x256xf32, #tpu.memory_space<vmem>>, vector<1x4x256xf32>
    %20 = vector.shape_cast %19 : vector<1x4x256xf32> to vector<4x256xf32>
    %cst = arith.constant 0.000000e+00 : f32
    %21 = vector.broadcast %cst : f32 to vector<4x256xf32>
    %cst_18 = arith.constant 0.000000e+00 : f32
    %22 = vector.broadcast %cst_18 : f32 to vector<4x256xf32>
    %c1_i32 = arith.constant 1 : i32
    %23 = vector.broadcast %c1_i32 : i32 to vector<1x256xi32>
    %24 = arith.cmpi sge, %14, %23 : vector<1x256xi32>
    %c1_i32_19 = arith.constant 1 : i32
    %25 = vector.broadcast %c1_i32_19 : i32 to vector<1x256xi32>
    %26 = arith.cmpi sge, %16, %25 : vector<1x256xi32>
    %27 = arith.andi %24, %26 : vector<1x256xi1>
    %c17_i32 = arith.constant 17 : i32
    %28 = tpu.dynamic_rotate %18 by %c17_i32 dim 1 : vector<4x256xf32>, i32 -> vector<4x256xf32>
    %cst_20 = arith.constant 0.000000e+00 : f32
    %29 = vector.shape_cast %27 : vector<1x256xi1> to vector<1x256xi1>
    %30 = vector.broadcast %29 : vector<1x256xi1> to vector<4x256xi1>
    %31 = vector.broadcast %cst_20 : f32 to vector<4x256xf32>
    %32 = arith.select %30, %28, %31 : vector<4x256xi1>, vector<4x256xf32>
    %c17_i32_21 = arith.constant 17 : i32
    %33 = tpu.dynamic_rotate %20 by %c17_i32_21 dim 1 : vector<4x256xf32>, i32 -> vector<4x256xf32>
    %cst_22 = arith.constant 0.000000e+00 : f32
    %34 = vector.shape_cast %27 : vector<1x256xi1> to vector<1x256xi1>
    %35 = vector.broadcast %34 : vector<1x256xi1> to vector<4x256xi1>
    %36 = vector.broadcast %cst_22 : f32 to vector<4x256xf32>
    %37 = arith.select %35, %33, %36 : vector<4x256xi1>, vector<4x256xf32>
    %c0_23 = arith.constant 0 : index
    %c0_24 = arith.constant 0 : index
    %c0_25 = arith.constant 0 : index
    %c0_26 = arith.constant 0 : index
    %38 = vector.load %arg1[%c0_23, %c0_24, %c0_25, %c0_26] : memref<2x36x4x1xf32, #tpu.memory_space<vmem>>, vector<1x1x4x1xf32>
    %39 = vector.shape_cast %38 : vector<1x1x4x1xf32> to vector<4x1xf32>
    %40 = vector.extract_strided_slice %32 {offsets = [0, 0], sizes = [1, 256], strides = [1, 1]} : vector<4x256xf32> to vector<1x256xf32>
    %41 = vector.broadcast %40 : vector<1x256xf32> to vector<4x256xf32>
    %42 = vector.broadcast %39 : vector<4x1xf32> to vector<4x256xf32>
    %43 = arith.mulf %41, %42 : vector<4x256xf32>
    %44 = arith.addf %21, %43 : vector<4x256xf32>
    %45 = vector.extract_strided_slice %37 {offsets = [0, 0], sizes = [1, 256], strides = [1, 1]} : vector<4x256xf32> to vector<1x256xf32>
    %46 = vector.broadcast %45 : vector<1x256xf32> to vector<4x256xf32>
    %47 = vector.broadcast %39 : vector<4x1xf32> to vector<4x256xf32>
    %48 = arith.mulf %46, %47 : vector<4x256xf32>
    %49 = arith.addf %22, %48 : vector<4x256xf32>
    %c0_27 = arith.constant 0 : index
    %c1_28 = arith.constant 1 : index
    %c0_29 = arith.constant 0 : index
    %c0_30 = arith.constant 0 : index
    %50 = vector.load %arg1[%c0_27, %c1_28, %c0_29, %c0_30] : memref<2x36x4x1xf32, #tpu.memory_space<vmem>>, vector<1x1x4x1xf32>
    %51 = vector.shape_cast %50 : vector<1x1x4x1xf32> to vector<4x1xf32>
    %52 = vector.extract_strided_slice %32 {offsets = [1, 0], sizes = [1, 256], strides = [1, 1]} : vector<4x256xf32> to vector<1x256xf32>
    %53 = vector.broadcast %52 : vector<1x256xf32> to vector<4x256xf32>
    %54 = vector.broadcast %51 : vector<4x1xf32> to vector<4x256xf32>
    %55 = arith.mulf %53, %54 : vector<4x256xf32>
    %56 = arith.addf %44, %55 : vector<4x256xf32>
    %57 = vector.extract_strided_slice %37 {offsets = [1, 0], sizes = [1, 256], strides = [1, 1]} : vector<4x256xf32> to vector<1x256xf32>
    %58 = vector.broadcast %57 : vector<1x256xf32> to vector<4x256xf32>
    %59 = vector.broadcast %51 : vector<4x1xf32> to vector<4x256xf32>
    %60 = arith.mulf %58, %59 : vector<4x256xf32>
    %61 = arith.addf %49, %60 : vector<4x256xf32>
    %c0_31 = arith.constant 0 : index
    %c2_32 = arith.constant 2 : index
    %c0_33 = arith.constant 0 : index
    %c0_34 = arith.constant 0 : index
    %62 = vector.load %arg1[%c0_31, %c2_32, %c0_33, %c0_34] : memref<2x36x4x1xf32, #tpu.memory_space<vmem>>, vector<1x1x4x1xf32>
    %63 = vector.shape_cast %62 : vector<1x1x4x1xf32> to vector<4x1xf32>
    %64 = vector.extract_strided_slice %32 {offsets = [2, 0], sizes = [1, 256], strides = [1, 1]} : vector<4x256xf32> to vector<1x256xf32>
    %65 = vector.broadcast %64 : vector<1x256xf32> to vector<4x256xf32>
    %66 = vector.broadcast %63 : vector<4x1xf32> to vector<4x256xf32>
    %67 = arith.mulf %65, %66 : vector<4x256xf32>
    %68 = arith.addf %56, %67 : vector<4x256xf32>
    %69 = vector.extract_strided_slice %37 {offsets = [2, 0], sizes = [1, 256], strides = [1, 1]} : vector<4x256xf32> to vector<1x256xf32>
    %70 = vector.broadcast %69 : vector<1x256xf32> to vector<4x256xf32>
    %71 = vector.broadcast %63 : vector<4x1xf32> to vector<4x256xf32>
    %72 = arith.mulf %70, %71 : vector<4x256xf32>
    %73 = arith.addf %61, %72 : vector<4x256xf32>
    %c0_35 = arith.constant 0 : index
    %c3_36 = arith.constant 3 : index
    %c0_37 = arith.constant 0 : index
    %c0_38 = arith.constant 0 : index
    %74 = vector.load %arg1[%c0_35, %c3_36, %c0_37, %c0_38] : memref<2x36x4x1xf32, #tpu.memory_space<vmem>>, vector<1x1x4x1xf32>
    %75 = vector.shape_cast %74 : vector<1x1x4x1xf32> to vector<4x1xf32>
    %76 = vector.extract_strided_slice %32 {offsets = [3, 0], sizes = [1, 256], strides = [1, 1]} : vector<4x256xf32> to vector<1x256xf32>
    %77 = vector.broadcast %76 : vector<1x256xf32> to vector<4x256xf32>
    %78 = vector.broadcast %75 : vector<4x1xf32> to vector<4x256xf32>
    %79 = arith.mulf %77, %78 : vector<4x256xf32>
    %80 = arith.addf %68, %79 : vector<4x256xf32>
    %81 = vector.extract_strided_slice %37 {offsets = [3, 0], sizes = [1, 256], strides = [1, 1]} : vector<4x256xf32> to vector<1x256xf32>
    %82 = vector.broadcast %81 : vector<1x256xf32> to vector<4x256xf32>
    %83 = vector.broadcast %75 : vector<4x1xf32> to vector<4x256xf32>
    %84 = arith.mulf %82, %83 : vector<4x256xf32>
    %85 = arith.addf %73, %84 : vector<4x256xf32>
    %c1_i32_39 = arith.constant 1 : i32
    %86 = vector.broadcast %c1_i32_39 : i32 to vector<1x256xi32>
    %87 = arith.cmpi sge, %14, %86 : vector<1x256xi32>
    %c16_i32 = arith.constant 16 : i32
    %88 = tpu.dynamic_rotate %18 by %c16_i32 dim 1 : vector<4x256xf32>, i32 -> vector<4x256xf32>
    %cst_40 = arith.constant 0.000000e+00 : f32
    %89 = vector.shape_cast %87 : vector<1x256xi1> to vector<1x256xi1>
    %90 = vector.broadcast %89 : vector<1x256xi1> to vector<4x256xi1>
    %91 = vector.broadcast %cst_40 : f32 to vector<4x256xf32>
    %92 = arith.select %90, %88, %91 : vector<4x256xi1>, vector<4x256xf32>
    %c16_i32_41 = arith.constant 16 : i32
    %93 = tpu.dynamic_rotate %20 by %c16_i32_41 dim 1 : vector<4x256xf32>, i32 -> vector<4x256xf32>
    %cst_42 = arith.constant 0.000000e+00 : f32
    %94 = vector.shape_cast %87 : vector<1x256xi1> to vector<1x256xi1>
    %95 = vector.broadcast %94 : vector<1x256xi1> to vector<4x256xi1>
    %96 = vector.broadcast %cst_42 : f32 to vector<4x256xf32>
    %97 = arith.select %95, %93, %96 : vector<4x256xi1>, vector<4x256xf32>
    %c0_43 = arith.constant 0 : index
    %c4_44 = arith.constant 4 : index
    %c0_45 = arith.constant 0 : index
    %c0_46 = arith.constant 0 : index
    %98 = vector.load %arg1[%c0_43, %c4_44, %c0_45, %c0_46] : memref<2x36x4x1xf32, #tpu.memory_space<vmem>>, vector<1x1x4x1xf32>
    %99 = vector.shape_cast %98 : vector<1x1x4x1xf32> to vector<4x1xf32>
    %100 = vector.extract_strided_slice %92 {offsets = [0, 0], sizes = [1, 256], strides = [1, 1]} : vector<4x256xf32> to vector<1x256xf32>
    %101 = vector.broadcast %100 : vector<1x256xf32> to vector<4x256xf32>
    %102 = vector.broadcast %99 : vector<4x1xf32> to vector<4x256xf32>
    %103 = arith.mulf %101, %102 : vector<4x256xf32>
    %104 = arith.addf %80, %103 : vector<4x256xf32>
    %105 = vector.extract_strided_slice %97 {offsets = [0, 0], sizes = [1, 256], strides = [1, 1]} : vector<4x256xf32> to vector<1x256xf32>
    %106 = vector.broadcast %105 : vector<1x256xf32> to vector<4x256xf32>
    %107 = vector.broadcast %99 : vector<4x1xf32> to vector<4x256xf32>
    %108 = arith.mulf %106, %107 : vector<4x256xf32>
    %109 = arith.addf %85, %108 : vector<4x256xf32>
    %c0_47 = arith.constant 0 : index
    %c5_48 = arith.constant 5 : index
    %c0_49 = arith.constant 0 : index
    %c0_50 = arith.constant 0 : index
    %110 = vector.load %arg1[%c0_47, %c5_48, %c0_49, %c0_50] : memref<2x36x4x1xf32, #tpu.memory_space<vmem>>, vector<1x1x4x1xf32>
    %111 = vector.shape_cast %110 : vector<1x1x4x1xf32> to vector<4x1xf32>
    %112 = vector.extract_strided_slice %92 {offsets = [1, 0], sizes = [1, 256], strides = [1, 1]} : vector<4x256xf32> to vector<1x256xf32>
    %113 = vector.broadcast %112 : vector<1x256xf32> to vector<4x256xf32>
    %114 = vector.broadcast %111 : vector<4x1xf32> to vector<4x256xf32>
    %115 = arith.mulf %113, %114 : vector<4x256xf32>
    %116 = arith.addf %104, %115 : vector<4x256xf32>
    %117 = vector.extract_strided_slice %97 {offsets = [1, 0], sizes = [1, 256], strides = [1, 1]} : vector<4x256xf32> to vector<1x256xf32>
    %118 = vector.broadcast %117 : vector<1x256xf32> to vector<4x256xf32>
    %119 = vector.broadcast %111 : vector<4x1xf32> to vector<4x256xf32>
    %120 = arith.mulf %118, %119 : vector<4x256xf32>
    %121 = arith.addf %109, %120 : vector<4x256xf32>
    %c0_51 = arith.constant 0 : index
    %c6 = arith.constant 6 : index
    %c0_52 = arith.constant 0 : index
    %c0_53 = arith.constant 0 : index
    %122 = vector.load %arg1[%c0_51, %c6, %c0_52, %c0_53] : memref<2x36x4x1xf32, #tpu.memory_space<vmem>>, vector<1x1x4x1xf32>
    %123 = vector.shape_cast %122 : vector<1x1x4x1xf32> to vector<4x1xf32>
    %124 = vector.extract_strided_slice %92 {offsets = [2, 0], sizes = [1, 256], strides = [1, 1]} : vector<4x256xf32> to vector<1x256xf32>
    %125 = vector.broadcast %124 : vector<1x256xf32> to vector<4x256xf32>
    %126 = vector.broadcast %123 : vector<4x1xf32> to vector<4x256xf32>
    %127 = arith.mulf %125, %126 : vector<4x256xf32>
    %128 = arith.addf %116, %127 : vector<4x256xf32>
    %129 = vector.extract_strided_slice %97 {offsets = [2, 0], sizes = [1, 256], strides = [1, 1]} : vector<4x256xf32> to vector<1x256xf32>
    %130 = vector.broadcast %129 : vector<1x256xf32> to vector<4x256xf32>
    %131 = vector.broadcast %123 : vector<4x1xf32> to vector<4x256xf32>
    %132 = arith.mulf %130, %131 : vector<4x256xf32>
    %133 = arith.addf %121, %132 : vector<4x256xf32>
    %c0_54 = arith.constant 0 : index
    %c7 = arith.constant 7 : index
    %c0_55 = arith.constant 0 : index
    %c0_56 = arith.constant 0 : index
    %134 = vector.load %arg1[%c0_54, %c7, %c0_55, %c0_56] : memref<2x36x4x1xf32, #tpu.memory_space<vmem>>, vector<1x1x4x1xf32>
    %135 = vector.shape_cast %134 : vector<1x1x4x1xf32> to vector<4x1xf32>
    %136 = vector.extract_strided_slice %92 {offsets = [3, 0], sizes = [1, 256], strides = [1, 1]} : vector<4x256xf32> to vector<1x256xf32>
    %137 = vector.broadcast %136 : vector<1x256xf32> to vector<4x256xf32>
    %138 = vector.broadcast %135 : vector<4x1xf32> to vector<4x256xf32>
    %139 = arith.mulf %137, %138 : vector<4x256xf32>
    %140 = arith.addf %128, %139 : vector<4x256xf32>
    %141 = vector.extract_strided_slice %97 {offsets = [3, 0], sizes = [1, 256], strides = [1, 1]} : vector<4x256xf32> to vector<1x256xf32>
    %142 = vector.broadcast %141 : vector<1x256xf32> to vector<4x256xf32>
    %143 = vector.broadcast %135 : vector<4x1xf32> to vector<4x256xf32>
    %144 = arith.mulf %142, %143 : vector<4x256xf32>
    %145 = arith.addf %133, %144 : vector<4x256xf32>
    %c1_i32_57 = arith.constant 1 : i32
    %146 = vector.broadcast %c1_i32_57 : i32 to vector<1x256xi32>
    %147 = arith.cmpi sge, %14, %146 : vector<1x256xi32>
    %c15_i32_58 = arith.constant 15 : i32
    %148 = vector.broadcast %c15_i32_58 : i32 to vector<1x256xi32>
    %149 = arith.cmpi slt, %16, %148 : vector<1x256xi32>
    %150 = arith.andi %147, %149 : vector<1x256xi1>
    %c15_i32_59 = arith.constant 15 : i32
    %151 = tpu.dynamic_rotate %18 by %c15_i32_59 dim 1 : vector<4x256xf32>, i32 -> vector<4x256xf32>
    %cst_60 = arith.constant 0.000000e+00 : f32
    %152 = vector.shape_cast %150 : vector<1x256xi1> to vector<1x256xi1>
    %153 = vector.broadcast %152 : vector<1x256xi1> to vector<4x256xi1>
    %154 = vector.broadcast %cst_60 : f32 to vector<4x256xf32>
    %155 = arith.select %153, %151, %154 : vector<4x256xi1>, vector<4x256xf32>
    %c15_i32_61 = arith.constant 15 : i32
    %156 = tpu.dynamic_rotate %20 by %c15_i32_61 dim 1 : vector<4x256xf32>, i32 -> vector<4x256xf32>
    %cst_62 = arith.constant 0.000000e+00 : f32
    %157 = vector.shape_cast %150 : vector<1x256xi1> to vector<1x256xi1>
    %158 = vector.broadcast %157 : vector<1x256xi1> to vector<4x256xi1>
    %159 = vector.broadcast %cst_62 : f32 to vector<4x256xf32>
    %160 = arith.select %158, %156, %159 : vector<4x256xi1>, vector<4x256xf32>
    %c0_63 = arith.constant 0 : index
    %c8 = arith.constant 8 : index
    %c0_64 = arith.constant 0 : index
    %c0_65 = arith.constant 0 : index
    %161 = vector.load %arg1[%c0_63, %c8, %c0_64, %c0_65] : memref<2x36x4x1xf32, #tpu.memory_space<vmem>>, vector<1x1x4x1xf32>
    %162 = vector.shape_cast %161 : vector<1x1x4x1xf32> to vector<4x1xf32>
    %163 = vector.extract_strided_slice %155 {offsets = [0, 0], sizes = [1, 256], strides = [1, 1]} : vector<4x256xf32> to vector<1x256xf32>
    %164 = vector.broadcast %163 : vector<1x256xf32> to vector<4x256xf32>
    %165 = vector.broadcast %162 : vector<4x1xf32> to vector<4x256xf32>
    %166 = arith.mulf %164, %165 : vector<4x256xf32>
    %167 = arith.addf %140, %166 : vector<4x256xf32>
    %168 = vector.extract_strided_slice %160 {offsets = [0, 0], sizes = [1, 256], strides = [1, 1]} : vector<4x256xf32> to vector<1x256xf32>
    %169 = vector.broadcast %168 : vector<1x256xf32> to vector<4x256xf32>
    %170 = vector.broadcast %162 : vector<4x1xf32> to vector<4x256xf32>
    %171 = arith.mulf %169, %170 : vector<4x256xf32>
    %172 = arith.addf %145, %171 : vector<4x256xf32>
    %c0_66 = arith.constant 0 : index
    %c9 = arith.constant 9 : index
    %c0_67 = arith.constant 0 : index
    %c0_68 = arith.constant 0 : index
    %173 = vector.load %arg1[%c0_66, %c9, %c0_67, %c0_68] : memref<2x36x4x1xf32, #tpu.memory_space<vmem>>, vector<1x1x4x1xf32>
    %174 = vector.shape_cast %173 : vector<1x1x4x1xf32> to vector<4x1xf32>
    %175 = vector.extract_strided_slice %155 {offsets = [1, 0], sizes = [1, 256], strides = [1, 1]} : vector<4x256xf32> to vector<1x256xf32>
    %176 = vector.broadcast %175 : vector<1x256xf32> to vector<4x256xf32>
    %177 = vector.broadcast %174 : vector<4x1xf32> to vector<4x256xf32>
    %178 = arith.mulf %176, %177 : vector<4x256xf32>
    %179 = arith.addf %167, %178 : vector<4x256xf32>
    %180 = vector.extract_strided_slice %160 {offsets = [1, 0], sizes = [1, 256], strides = [1, 1]} : vector<4x256xf32> to vector<1x256xf32>
    %181 = vector.broadcast %180 : vector<1x256xf32> to vector<4x256xf32>
    %182 = vector.broadcast %174 : vector<4x1xf32> to vector<4x256xf32>
    %183 = arith.mulf %181, %182 : vector<4x256xf32>
    %184 = arith.addf %172, %183 : vector<4x256xf32>
    %c0_69 = arith.constant 0 : index
    %c10 = arith.constant 10 : index
    %c0_70 = arith.constant 0 : index
    %c0_71 = arith.constant 0 : index
    %185 = vector.load %arg1[%c0_69, %c10, %c0_70, %c0_71] : memref<2x36x4x1xf32, #tpu.memory_space<vmem>>, vector<1x1x4x1xf32>
    %186 = vector.shape_cast %185 : vector<1x1x4x1xf32> to vector<4x1xf32>
    %187 = vector.extract_strided_slice %155 {offsets = [2, 0], sizes = [1, 256], strides = [1, 1]} : vector<4x256xf32> to vector<1x256xf32>
    %188 = vector.broadcast %187 : vector<1x256xf32> to vector<4x256xf32>
    %189 = vector.broadcast %186 : vector<4x1xf32> to vector<4x256xf32>
    %190 = arith.mulf %188, %189 : vector<4x256xf32>
    %191 = arith.addf %179, %190 : vector<4x256xf32>
    %192 = vector.extract_strided_slice %160 {offsets = [2, 0], sizes = [1, 256], strides = [1, 1]} : vector<4x256xf32> to vector<1x256xf32>
    %193 = vector.broadcast %192 : vector<1x256xf32> to vector<4x256xf32>
    %194 = vector.broadcast %186 : vector<4x1xf32> to vector<4x256xf32>
    %195 = arith.mulf %193, %194 : vector<4x256xf32>
    %196 = arith.addf %184, %195 : vector<4x256xf32>
    %c0_72 = arith.constant 0 : index
    %c11 = arith.constant 11 : index
    %c0_73 = arith.constant 0 : index
    %c0_74 = arith.constant 0 : index
    %197 = vector.load %arg1[%c0_72, %c11, %c0_73, %c0_74] : memref<2x36x4x1xf32, #tpu.memory_space<vmem>>, vector<1x1x4x1xf32>
    %198 = vector.shape_cast %197 : vector<1x1x4x1xf32> to vector<4x1xf32>
    %199 = vector.extract_strided_slice %155 {offsets = [3, 0], sizes = [1, 256], strides = [1, 1]} : vector<4x256xf32> to vector<1x256xf32>
    %200 = vector.broadcast %199 : vector<1x256xf32> to vector<4x256xf32>
    %201 = vector.broadcast %198 : vector<4x1xf32> to vector<4x256xf32>
    %202 = arith.mulf %200, %201 : vector<4x256xf32>
    %203 = arith.addf %191, %202 : vector<4x256xf32>
    %204 = vector.extract_strided_slice %160 {offsets = [3, 0], sizes = [1, 256], strides = [1, 1]} : vector<4x256xf32> to vector<1x256xf32>
    %205 = vector.broadcast %204 : vector<1x256xf32> to vector<4x256xf32>
    %206 = vector.broadcast %198 : vector<4x1xf32> to vector<4x256xf32>
    %207 = arith.mulf %205, %206 : vector<4x256xf32>
    %208 = arith.addf %196, %207 : vector<4x256xf32>
    %c1_i32_75 = arith.constant 1 : i32
    %209 = vector.broadcast %c1_i32_75 : i32 to vector<1x256xi32>
    %210 = arith.cmpi sge, %16, %209 : vector<1x256xi32>
    %c1_i32_76 = arith.constant 1 : i32
    %211 = tpu.dynamic_rotate %18 by %c1_i32_76 dim 1 : vector<4x256xf32>, i32 -> vector<4x256xf32>
    %cst_77 = arith.constant 0.000000e+00 : f32
    %212 = vector.shape_cast %210 : vector<1x256xi1> to vector<1x256xi1>
    %213 = vector.broadcast %212 : vector<1x256xi1> to vector<4x256xi1>
    %214 = vector.broadcast %cst_77 : f32 to vector<4x256xf32>
    %215 = arith.select %213, %211, %214 : vector<4x256xi1>, vector<4x256xf32>
    %c1_i32_78 = arith.constant 1 : i32
    %216 = tpu.dynamic_rotate %20 by %c1_i32_78 dim 1 : vector<4x256xf32>, i32 -> vector<4x256xf32>
    %cst_79 = arith.constant 0.000000e+00 : f32
    %217 = vector.shape_cast %210 : vector<1x256xi1> to vector<1x256xi1>
    %218 = vector.broadcast %217 : vector<1x256xi1> to vector<4x256xi1>
    %219 = vector.broadcast %cst_79 : f32 to vector<4x256xf32>
    %220 = arith.select %218, %216, %219 : vector<4x256xi1>, vector<4x256xf32>
    %c0_80 = arith.constant 0 : index
    %c12 = arith.constant 12 : index
    %c0_81 = arith.constant 0 : index
    %c0_82 = arith.constant 0 : index
    %221 = vector.load %arg1[%c0_80, %c12, %c0_81, %c0_82] : memref<2x36x4x1xf32, #tpu.memory_space<vmem>>, vector<1x1x4x1xf32>
    %222 = vector.shape_cast %221 : vector<1x1x4x1xf32> to vector<4x1xf32>
    %223 = vector.extract_strided_slice %215 {offsets = [0, 0], sizes = [1, 256], strides = [1, 1]} : vector<4x256xf32> to vector<1x256xf32>
    %224 = vector.broadcast %223 : vector<1x256xf32> to vector<4x256xf32>
    %225 = vector.broadcast %222 : vector<4x1xf32> to vector<4x256xf32>
    %226 = arith.mulf %224, %225 : vector<4x256xf32>
    %227 = arith.addf %203, %226 : vector<4x256xf32>
    %228 = vector.extract_strided_slice %220 {offsets = [0, 0], sizes = [1, 256], strides = [1, 1]} : vector<4x256xf32> to vector<1x256xf32>
    %229 = vector.broadcast %228 : vector<1x256xf32> to vector<4x256xf32>
    %230 = vector.broadcast %222 : vector<4x1xf32> to vector<4x256xf32>
    %231 = arith.mulf %229, %230 : vector<4x256xf32>
    %232 = arith.addf %208, %231 : vector<4x256xf32>
    %c0_83 = arith.constant 0 : index
    %c13 = arith.constant 13 : index
    %c0_84 = arith.constant 0 : index
    %c0_85 = arith.constant 0 : index
    %233 = vector.load %arg1[%c0_83, %c13, %c0_84, %c0_85] : memref<2x36x4x1xf32, #tpu.memory_space<vmem>>, vector<1x1x4x1xf32>
    %234 = vector.shape_cast %233 : vector<1x1x4x1xf32> to vector<4x1xf32>
    %235 = vector.extract_strided_slice %215 {offsets = [1, 0], sizes = [1, 256], strides = [1, 1]} : vector<4x256xf32> to vector<1x256xf32>
    %236 = vector.broadcast %235 : vector<1x256xf32> to vector<4x256xf32>
    %237 = vector.broadcast %234 : vector<4x1xf32> to vector<4x256xf32>
    %238 = arith.mulf %236, %237 : vector<4x256xf32>
    %239 = arith.addf %227, %238 : vector<4x256xf32>
    %240 = vector.extract_strided_slice %220 {offsets = [1, 0], sizes = [1, 256], strides = [1, 1]} : vector<4x256xf32> to vector<1x256xf32>
    %241 = vector.broadcast %240 : vector<1x256xf32> to vector<4x256xf32>
    %242 = vector.broadcast %234 : vector<4x1xf32> to vector<4x256xf32>
    %243 = arith.mulf %241, %242 : vector<4x256xf32>
    %244 = arith.addf %232, %243 : vector<4x256xf32>
    %c0_86 = arith.constant 0 : index
    %c14 = arith.constant 14 : index
    %c0_87 = arith.constant 0 : index
    %c0_88 = arith.constant 0 : index
    %245 = vector.load %arg1[%c0_86, %c14, %c0_87, %c0_88] : memref<2x36x4x1xf32, #tpu.memory_space<vmem>>, vector<1x1x4x1xf32>
    %246 = vector.shape_cast %245 : vector<1x1x4x1xf32> to vector<4x1xf32>
    %247 = vector.extract_strided_slice %215 {offsets = [2, 0], sizes = [1, 256], strides = [1, 1]} : vector<4x256xf32> to vector<1x256xf32>
    %248 = vector.broadcast %247 : vector<1x256xf32> to vector<4x256xf32>
    %249 = vector.broadcast %246 : vector<4x1xf32> to vector<4x256xf32>
    %250 = arith.mulf %248, %249 : vector<4x256xf32>
    %251 = arith.addf %239, %250 : vector<4x256xf32>
    %252 = vector.extract_strided_slice %220 {offsets = [2, 0], sizes = [1, 256], strides = [1, 1]} : vector<4x256xf32> to vector<1x256xf32>
    %253 = vector.broadcast %252 : vector<1x256xf32> to vector<4x256xf32>
    %254 = vector.broadcast %246 : vector<4x1xf32> to vector<4x256xf32>
    %255 = arith.mulf %253, %254 : vector<4x256xf32>
    %256 = arith.addf %244, %255 : vector<4x256xf32>
    %c0_89 = arith.constant 0 : index
    %c15 = arith.constant 15 : index
    %c0_90 = arith.constant 0 : index
    %c0_91 = arith.constant 0 : index
    %257 = vector.load %arg1[%c0_89, %c15, %c0_90, %c0_91] : memref<2x36x4x1xf32, #tpu.memory_space<vmem>>, vector<1x1x4x1xf32>
    %258 = vector.shape_cast %257 : vector<1x1x4x1xf32> to vector<4x1xf32>
    %259 = vector.extract_strided_slice %215 {offsets = [3, 0], sizes = [1, 256], strides = [1, 1]} : vector<4x256xf32> to vector<1x256xf32>
    %260 = vector.broadcast %259 : vector<1x256xf32> to vector<4x256xf32>
    %261 = vector.broadcast %258 : vector<4x1xf32> to vector<4x256xf32>
    %262 = arith.mulf %260, %261 : vector<4x256xf32>
    %263 = arith.addf %251, %262 : vector<4x256xf32>
    %264 = vector.extract_strided_slice %220 {offsets = [3, 0], sizes = [1, 256], strides = [1, 1]} : vector<4x256xf32> to vector<1x256xf32>
    %265 = vector.broadcast %264 : vector<1x256xf32> to vector<4x256xf32>
    %266 = vector.broadcast %258 : vector<4x1xf32> to vector<4x256xf32>
    %267 = arith.mulf %265, %266 : vector<4x256xf32>
    %268 = arith.addf %256, %267 : vector<4x256xf32>
    %c0_92 = arith.constant 0 : index
    %c16 = arith.constant 16 : index
    %c0_93 = arith.constant 0 : index
    %c0_94 = arith.constant 0 : index
    %269 = vector.load %arg1[%c0_92, %c16, %c0_93, %c0_94] : memref<2x36x4x1xf32, #tpu.memory_space<vmem>>, vector<1x1x4x1xf32>
    %270 = vector.shape_cast %269 : vector<1x1x4x1xf32> to vector<4x1xf32>
    %271 = vector.extract_strided_slice %18 {offsets = [0, 0], sizes = [1, 256], strides = [1, 1]} : vector<4x256xf32> to vector<1x256xf32>
    %272 = vector.broadcast %271 : vector<1x256xf32> to vector<4x256xf32>
    %273 = vector.broadcast %270 : vector<4x1xf32> to vector<4x256xf32>
    %274 = arith.mulf %272, %273 : vector<4x256xf32>
    %275 = arith.addf %263, %274 : vector<4x256xf32>
    %276 = vector.extract_strided_slice %20 {offsets = [0, 0], sizes = [1, 256], strides = [1, 1]} : vector<4x256xf32> to vector<1x256xf32>
    %277 = vector.broadcast %276 : vector<1x256xf32> to vector<4x256xf32>
    %278 = vector.broadcast %270 : vector<4x1xf32> to vector<4x256xf32>
    %279 = arith.mulf %277, %278 : vector<4x256xf32>
    %280 = arith.addf %268, %279 : vector<4x256xf32>
    %c0_95 = arith.constant 0 : index
    %c17 = arith.constant 17 : index
    %c0_96 = arith.constant 0 : index
    %c0_97 = arith.constant 0 : index
    %281 = vector.load %arg1[%c0_95, %c17, %c0_96, %c0_97] : memref<2x36x4x1xf32, #tpu.memory_space<vmem>>, vector<1x1x4x1xf32>
    %282 = vector.shape_cast %281 : vector<1x1x4x1xf32> to vector<4x1xf32>
    %283 = vector.extract_strided_slice %18 {offsets = [1, 0], sizes = [1, 256], strides = [1, 1]} : vector<4x256xf32> to vector<1x256xf32>
    %284 = vector.broadcast %283 : vector<1x256xf32> to vector<4x256xf32>
    %285 = vector.broadcast %282 : vector<4x1xf32> to vector<4x256xf32>
    %286 = arith.mulf %284, %285 : vector<4x256xf32>
    %287 = arith.addf %275, %286 : vector<4x256xf32>
    %288 = vector.extract_strided_slice %20 {offsets = [1, 0], sizes = [1, 256], strides = [1, 1]} : vector<4x256xf32> to vector<1x256xf32>
    %289 = vector.broadcast %288 : vector<1x256xf32> to vector<4x256xf32>
    %290 = vector.broadcast %282 : vector<4x1xf32> to vector<4x256xf32>
    %291 = arith.mulf %289, %290 : vector<4x256xf32>
    %292 = arith.addf %280, %291 : vector<4x256xf32>
    %c0_98 = arith.constant 0 : index
    %c18 = arith.constant 18 : index
    %c0_99 = arith.constant 0 : index
    %c0_100 = arith.constant 0 : index
    %293 = vector.load %arg1[%c0_98, %c18, %c0_99, %c0_100] : memref<2x36x4x1xf32, #tpu.memory_space<vmem>>, vector<1x1x4x1xf32>
    %294 = vector.shape_cast %293 : vector<1x1x4x1xf32> to vector<4x1xf32>
    %295 = vector.extract_strided_slice %18 {offsets = [2, 0], sizes = [1, 256], strides = [1, 1]} : vector<4x256xf32> to vector<1x256xf32>
    %296 = vector.broadcast %295 : vector<1x256xf32> to vector<4x256xf32>
    %297 = vector.broadcast %294 : vector<4x1xf32> to vector<4x256xf32>
    %298 = arith.mulf %296, %297 : vector<4x256xf32>
    %299 = arith.addf %287, %298 : vector<4x256xf32>
    %300 = vector.extract_strided_slice %20 {offsets = [2, 0], sizes = [1, 256], strides = [1, 1]} : vector<4x256xf32> to vector<1x256xf32>
    %301 = vector.broadcast %300 : vector<1x256xf32> to vector<4x256xf32>
    %302 = vector.broadcast %294 : vector<4x1xf32> to vector<4x256xf32>
    %303 = arith.mulf %301, %302 : vector<4x256xf32>
    %304 = arith.addf %292, %303 : vector<4x256xf32>
    %c0_101 = arith.constant 0 : index
    %c19 = arith.constant 19 : index
    %c0_102 = arith.constant 0 : index
    %c0_103 = arith.constant 0 : index
    %305 = vector.load %arg1[%c0_101, %c19, %c0_102, %c0_103] : memref<2x36x4x1xf32, #tpu.memory_space<vmem>>, vector<1x1x4x1xf32>
    %306 = vector.shape_cast %305 : vector<1x1x4x1xf32> to vector<4x1xf32>
    %307 = vector.extract_strided_slice %18 {offsets = [3, 0], sizes = [1, 256], strides = [1, 1]} : vector<4x256xf32> to vector<1x256xf32>
    %308 = vector.broadcast %307 : vector<1x256xf32> to vector<4x256xf32>
    %309 = vector.broadcast %306 : vector<4x1xf32> to vector<4x256xf32>
    %310 = arith.mulf %308, %309 : vector<4x256xf32>
    %311 = arith.addf %299, %310 : vector<4x256xf32>
    %312 = vector.extract_strided_slice %20 {offsets = [3, 0], sizes = [1, 256], strides = [1, 1]} : vector<4x256xf32> to vector<1x256xf32>
    %313 = vector.broadcast %312 : vector<1x256xf32> to vector<4x256xf32>
    %314 = vector.broadcast %306 : vector<4x1xf32> to vector<4x256xf32>
    %315 = arith.mulf %313, %314 : vector<4x256xf32>
    %316 = arith.addf %304, %315 : vector<4x256xf32>
    %c15_i32_104 = arith.constant 15 : i32
    %317 = vector.broadcast %c15_i32_104 : i32 to vector<1x256xi32>
    %318 = arith.cmpi slt, %16, %317 : vector<1x256xi32>
    %c255_i32 = arith.constant 255 : i32
    %319 = tpu.dynamic_rotate %18 by %c255_i32 dim 1 : vector<4x256xf32>, i32 -> vector<4x256xf32>
    %cst_105 = arith.constant 0.000000e+00 : f32
    %320 = vector.shape_cast %318 : vector<1x256xi1> to vector<1x256xi1>
    %321 = vector.broadcast %320 : vector<1x256xi1> to vector<4x256xi1>
    %322 = vector.broadcast %cst_105 : f32 to vector<4x256xf32>
    %323 = arith.select %321, %319, %322 : vector<4x256xi1>, vector<4x256xf32>
    %c255_i32_106 = arith.constant 255 : i32
    %324 = tpu.dynamic_rotate %20 by %c255_i32_106 dim 1 : vector<4x256xf32>, i32 -> vector<4x256xf32>
    %cst_107 = arith.constant 0.000000e+00 : f32
    %325 = vector.shape_cast %318 : vector<1x256xi1> to vector<1x256xi1>
    %326 = vector.broadcast %325 : vector<1x256xi1> to vector<4x256xi1>
    %327 = vector.broadcast %cst_107 : f32 to vector<4x256xf32>
    %328 = arith.select %326, %324, %327 : vector<4x256xi1>, vector<4x256xf32>
    %c0_108 = arith.constant 0 : index
    %c20 = arith.constant 20 : index
    %c0_109 = arith.constant 0 : index
    %c0_110 = arith.constant 0 : index
    %329 = vector.load %arg1[%c0_108, %c20, %c0_109, %c0_110] : memref<2x36x4x1xf32, #tpu.memory_space<vmem>>, vector<1x1x4x1xf32>
    %330 = vector.shape_cast %329 : vector<1x1x4x1xf32> to vector<4x1xf32>
    %331 = vector.extract_strided_slice %323 {offsets = [0, 0], sizes = [1, 256], strides = [1, 1]} : vector<4x256xf32> to vector<1x256xf32>
    %332 = vector.broadcast %331 : vector<1x256xf32> to vector<4x256xf32>
    %333 = vector.broadcast %330 : vector<4x1xf32> to vector<4x256xf32>
    %334 = arith.mulf %332, %333 : vector<4x256xf32>
    %335 = arith.addf %311, %334 : vector<4x256xf32>
    %336 = vector.extract_strided_slice %328 {offsets = [0, 0], sizes = [1, 256], strides = [1, 1]} : vector<4x256xf32> to vector<1x256xf32>
    %337 = vector.broadcast %336 : vector<1x256xf32> to vector<4x256xf32>
    %338 = vector.broadcast %330 : vector<4x1xf32> to vector<4x256xf32>
    %339 = arith.mulf %337, %338 : vector<4x256xf32>
    %340 = arith.addf %316, %339 : vector<4x256xf32>
    %c0_111 = arith.constant 0 : index
    %c21 = arith.constant 21 : index
    %c0_112 = arith.constant 0 : index
    %c0_113 = arith.constant 0 : index
    %341 = vector.load %arg1[%c0_111, %c21, %c0_112, %c0_113] : memref<2x36x4x1xf32, #tpu.memory_space<vmem>>, vector<1x1x4x1xf32>
    %342 = vector.shape_cast %341 : vector<1x1x4x1xf32> to vector<4x1xf32>
    %343 = vector.extract_strided_slice %323 {offsets = [1, 0], sizes = [1, 256], strides = [1, 1]} : vector<4x256xf32> to vector<1x256xf32>
    %344 = vector.broadcast %343 : vector<1x256xf32> to vector<4x256xf32>
    %345 = vector.broadcast %342 : vector<4x1xf32> to vector<4x256xf32>
    %346 = arith.mulf %344, %345 : vector<4x256xf32>
    %347 = arith.addf %335, %346 : vector<4x256xf32>
    %348 = vector.extract_strided_slice %328 {offsets = [1, 0], sizes = [1, 256], strides = [1, 1]} : vector<4x256xf32> to vector<1x256xf32>
    %349 = vector.broadcast %348 : vector<1x256xf32> to vector<4x256xf32>
    %350 = vector.broadcast %342 : vector<4x1xf32> to vector<4x256xf32>
    %351 = arith.mulf %349, %350 : vector<4x256xf32>
    %352 = arith.addf %340, %351 : vector<4x256xf32>
    %c0_114 = arith.constant 0 : index
    %c22 = arith.constant 22 : index
    %c0_115 = arith.constant 0 : index
    %c0_116 = arith.constant 0 : index
    %353 = vector.load %arg1[%c0_114, %c22, %c0_115, %c0_116] : memref<2x36x4x1xf32, #tpu.memory_space<vmem>>, vector<1x1x4x1xf32>
    %354 = vector.shape_cast %353 : vector<1x1x4x1xf32> to vector<4x1xf32>
    %355 = vector.extract_strided_slice %323 {offsets = [2, 0], sizes = [1, 256], strides = [1, 1]} : vector<4x256xf32> to vector<1x256xf32>
    %356 = vector.broadcast %355 : vector<1x256xf32> to vector<4x256xf32>
    %357 = vector.broadcast %354 : vector<4x1xf32> to vector<4x256xf32>
    %358 = arith.mulf %356, %357 : vector<4x256xf32>
    %359 = arith.addf %347, %358 : vector<4x256xf32>
    %360 = vector.extract_strided_slice %328 {offsets = [2, 0], sizes = [1, 256], strides = [1, 1]} : vector<4x256xf32> to vector<1x256xf32>
    %361 = vector.broadcast %360 : vector<1x256xf32> to vector<4x256xf32>
    %362 = vector.broadcast %354 : vector<4x1xf32> to vector<4x256xf32>
    %363 = arith.mulf %361, %362 : vector<4x256xf32>
    %364 = arith.addf %352, %363 : vector<4x256xf32>
    %c0_117 = arith.constant 0 : index
    %c23 = arith.constant 23 : index
    %c0_118 = arith.constant 0 : index
    %c0_119 = arith.constant 0 : index
    %365 = vector.load %arg1[%c0_117, %c23, %c0_118, %c0_119] : memref<2x36x4x1xf32, #tpu.memory_space<vmem>>, vector<1x1x4x1xf32>
    %366 = vector.shape_cast %365 : vector<1x1x4x1xf32> to vector<4x1xf32>
    %367 = vector.extract_strided_slice %323 {offsets = [3, 0], sizes = [1, 256], strides = [1, 1]} : vector<4x256xf32> to vector<1x256xf32>
    %368 = vector.broadcast %367 : vector<1x256xf32> to vector<4x256xf32>
    %369 = vector.broadcast %366 : vector<4x1xf32> to vector<4x256xf32>
    %370 = arith.mulf %368, %369 : vector<4x256xf32>
    %371 = arith.addf %359, %370 : vector<4x256xf32>
    %372 = vector.extract_strided_slice %328 {offsets = [3, 0], sizes = [1, 256], strides = [1, 1]} : vector<4x256xf32> to vector<1x256xf32>
    %373 = vector.broadcast %372 : vector<1x256xf32> to vector<4x256xf32>
    %374 = vector.broadcast %366 : vector<4x1xf32> to vector<4x256xf32>
    %375 = arith.mulf %373, %374 : vector<4x256xf32>
    %376 = arith.addf %364, %375 : vector<4x256xf32>
    %c15_i32_120 = arith.constant 15 : i32
    %377 = vector.broadcast %c15_i32_120 : i32 to vector<1x256xi32>
    %378 = arith.cmpi slt, %14, %377 : vector<1x256xi32>
    %c1_i32_121 = arith.constant 1 : i32
    %379 = vector.broadcast %c1_i32_121 : i32 to vector<1x256xi32>
    %380 = arith.cmpi sge, %16, %379 : vector<1x256xi32>
    %381 = arith.andi %378, %380 : vector<1x256xi1>
    %c241_i32 = arith.constant 241 : i32
    %382 = tpu.dynamic_rotate %18 by %c241_i32 dim 1 : vector<4x256xf32>, i32 -> vector<4x256xf32>
    %cst_122 = arith.constant 0.000000e+00 : f32
    %383 = vector.shape_cast %381 : vector<1x256xi1> to vector<1x256xi1>
    %384 = vector.broadcast %383 : vector<1x256xi1> to vector<4x256xi1>
    %385 = vector.broadcast %cst_122 : f32 to vector<4x256xf32>
    %386 = arith.select %384, %382, %385 : vector<4x256xi1>, vector<4x256xf32>
    %c241_i32_123 = arith.constant 241 : i32
    %387 = tpu.dynamic_rotate %20 by %c241_i32_123 dim 1 : vector<4x256xf32>, i32 -> vector<4x256xf32>
    %cst_124 = arith.constant 0.000000e+00 : f32
    %388 = vector.shape_cast %381 : vector<1x256xi1> to vector<1x256xi1>
    %389 = vector.broadcast %388 : vector<1x256xi1> to vector<4x256xi1>
    %390 = vector.broadcast %cst_124 : f32 to vector<4x256xf32>
    %391 = arith.select %389, %387, %390 : vector<4x256xi1>, vector<4x256xf32>
    %c0_125 = arith.constant 0 : index
    %c24 = arith.constant 24 : index
    %c0_126 = arith.constant 0 : index
    %c0_127 = arith.constant 0 : index
    %392 = vector.load %arg1[%c0_125, %c24, %c0_126, %c0_127] : memref<2x36x4x1xf32, #tpu.memory_space<vmem>>, vector<1x1x4x1xf32>
    %393 = vector.shape_cast %392 : vector<1x1x4x1xf32> to vector<4x1xf32>
    %394 = vector.extract_strided_slice %386 {offsets = [0, 0], sizes = [1, 256], strides = [1, 1]} : vector<4x256xf32> to vector<1x256xf32>
    %395 = vector.broadcast %394 : vector<1x256xf32> to vector<4x256xf32>
    %396 = vector.broadcast %393 : vector<4x1xf32> to vector<4x256xf32>
    %397 = arith.mulf %395, %396 : vector<4x256xf32>
    %398 = arith.addf %371, %397 : vector<4x256xf32>
    %399 = vector.extract_strided_slice %391 {offsets = [0, 0], sizes = [1, 256], strides = [1, 1]} : vector<4x256xf32> to vector<1x256xf32>
    %400 = vector.broadcast %399 : vector<1x256xf32> to vector<4x256xf32>
    %401 = vector.broadcast %393 : vector<4x1xf32> to vector<4x256xf32>
    %402 = arith.mulf %400, %401 : vector<4x256xf32>
    %403 = arith.addf %376, %402 : vector<4x256xf32>
    %c0_128 = arith.constant 0 : index
    %c25 = arith.constant 25 : index
    %c0_129 = arith.constant 0 : index
    %c0_130 = arith.constant 0 : index
    %404 = vector.load %arg1[%c0_128, %c25, %c0_129, %c0_130] : memref<2x36x4x1xf32, #tpu.memory_space<vmem>>, vector<1x1x4x1xf32>
    %405 = vector.shape_cast %404 : vector<1x1x4x1xf32> to vector<4x1xf32>
    %406 = vector.extract_strided_slice %386 {offsets = [1, 0], sizes = [1, 256], strides = [1, 1]} : vector<4x256xf32> to vector<1x256xf32>
    %407 = vector.broadcast %406 : vector<1x256xf32> to vector<4x256xf32>
    %408 = vector.broadcast %405 : vector<4x1xf32> to vector<4x256xf32>
    %409 = arith.mulf %407, %408 : vector<4x256xf32>
    %410 = arith.addf %398, %409 : vector<4x256xf32>
    %411 = vector.extract_strided_slice %391 {offsets = [1, 0], sizes = [1, 256], strides = [1, 1]} : vector<4x256xf32> to vector<1x256xf32>
    %412 = vector.broadcast %411 : vector<1x256xf32> to vector<4x256xf32>
    %413 = vector.broadcast %405 : vector<4x1xf32> to vector<4x256xf32>
    %414 = arith.mulf %412, %413 : vector<4x256xf32>
    %415 = arith.addf %403, %414 : vector<4x256xf32>
    %c0_131 = arith.constant 0 : index
    %c26 = arith.constant 26 : index
    %c0_132 = arith.constant 0 : index
    %c0_133 = arith.constant 0 : index
    %416 = vector.load %arg1[%c0_131, %c26, %c0_132, %c0_133] : memref<2x36x4x1xf32, #tpu.memory_space<vmem>>, vector<1x1x4x1xf32>
    %417 = vector.shape_cast %416 : vector<1x1x4x1xf32> to vector<4x1xf32>
    %418 = vector.extract_strided_slice %386 {offsets = [2, 0], sizes = [1, 256], strides = [1, 1]} : vector<4x256xf32> to vector<1x256xf32>
    %419 = vector.broadcast %418 : vector<1x256xf32> to vector<4x256xf32>
    %420 = vector.broadcast %417 : vector<4x1xf32> to vector<4x256xf32>
    %421 = arith.mulf %419, %420 : vector<4x256xf32>
    %422 = arith.addf %410, %421 : vector<4x256xf32>
    %423 = vector.extract_strided_slice %391 {offsets = [2, 0], sizes = [1, 256], strides = [1, 1]} : vector<4x256xf32> to vector<1x256xf32>
    %424 = vector.broadcast %423 : vector<1x256xf32> to vector<4x256xf32>
    %425 = vector.broadcast %417 : vector<4x1xf32> to vector<4x256xf32>
    %426 = arith.mulf %424, %425 : vector<4x256xf32>
    %427 = arith.addf %415, %426 : vector<4x256xf32>
    %c0_134 = arith.constant 0 : index
    %c27 = arith.constant 27 : index
    %c0_135 = arith.constant 0 : index
    %c0_136 = arith.constant 0 : index
    %428 = vector.load %arg1[%c0_134, %c27, %c0_135, %c0_136] : memref<2x36x4x1xf32, #tpu.memory_space<vmem>>, vector<1x1x4x1xf32>
    %429 = vector.shape_cast %428 : vector<1x1x4x1xf32> to vector<4x1xf32>
    %430 = vector.extract_strided_slice %386 {offsets = [3, 0], sizes = [1, 256], strides = [1, 1]} : vector<4x256xf32> to vector<1x256xf32>
    %431 = vector.broadcast %430 : vector<1x256xf32> to vector<4x256xf32>
    %432 = vector.broadcast %429 : vector<4x1xf32> to vector<4x256xf32>
    %433 = arith.mulf %431, %432 : vector<4x256xf32>
    %434 = arith.addf %422, %433 : vector<4x256xf32>
    %435 = vector.extract_strided_slice %391 {offsets = [3, 0], sizes = [1, 256], strides = [1, 1]} : vector<4x256xf32> to vector<1x256xf32>
    %436 = vector.broadcast %435 : vector<1x256xf32> to vector<4x256xf32>
    %437 = vector.broadcast %429 : vector<4x1xf32> to vector<4x256xf32>
    %438 = arith.mulf %436, %437 : vector<4x256xf32>
    %439 = arith.addf %427, %438 : vector<4x256xf32>
    %c15_i32_137 = arith.constant 15 : i32
    %440 = vector.broadcast %c15_i32_137 : i32 to vector<1x256xi32>
    %441 = arith.cmpi slt, %14, %440 : vector<1x256xi32>
    %c240_i32 = arith.constant 240 : i32
    %442 = tpu.dynamic_rotate %18 by %c240_i32 dim 1 : vector<4x256xf32>, i32 -> vector<4x256xf32>
    %cst_138 = arith.constant 0.000000e+00 : f32
    %443 = vector.shape_cast %441 : vector<1x256xi1> to vector<1x256xi1>
    %444 = vector.broadcast %443 : vector<1x256xi1> to vector<4x256xi1>
    %445 = vector.broadcast %cst_138 : f32 to vector<4x256xf32>
    %446 = arith.select %444, %442, %445 : vector<4x256xi1>, vector<4x256xf32>
    %c240_i32_139 = arith.constant 240 : i32
    %447 = tpu.dynamic_rotate %20 by %c240_i32_139 dim 1 : vector<4x256xf32>, i32 -> vector<4x256xf32>
    %cst_140 = arith.constant 0.000000e+00 : f32
    %448 = vector.shape_cast %441 : vector<1x256xi1> to vector<1x256xi1>
    %449 = vector.broadcast %448 : vector<1x256xi1> to vector<4x256xi1>
    %450 = vector.broadcast %cst_140 : f32 to vector<4x256xf32>
    %451 = arith.select %449, %447, %450 : vector<4x256xi1>, vector<4x256xf32>
    %c0_141 = arith.constant 0 : index
    %c28 = arith.constant 28 : index
    %c0_142 = arith.constant 0 : index
    %c0_143 = arith.constant 0 : index
    %452 = vector.load %arg1[%c0_141, %c28, %c0_142, %c0_143] : memref<2x36x4x1xf32, #tpu.memory_space<vmem>>, vector<1x1x4x1xf32>
    %453 = vector.shape_cast %452 : vector<1x1x4x1xf32> to vector<4x1xf32>
    %454 = vector.extract_strided_slice %446 {offsets = [0, 0], sizes = [1, 256], strides = [1, 1]} : vector<4x256xf32> to vector<1x256xf32>
    %455 = vector.broadcast %454 : vector<1x256xf32> to vector<4x256xf32>
    %456 = vector.broadcast %453 : vector<4x1xf32> to vector<4x256xf32>
    %457 = arith.mulf %455, %456 : vector<4x256xf32>
    %458 = arith.addf %434, %457 : vector<4x256xf32>
    %459 = vector.extract_strided_slice %451 {offsets = [0, 0], sizes = [1, 256], strides = [1, 1]} : vector<4x256xf32> to vector<1x256xf32>
    %460 = vector.broadcast %459 : vector<1x256xf32> to vector<4x256xf32>
    %461 = vector.broadcast %453 : vector<4x1xf32> to vector<4x256xf32>
    %462 = arith.mulf %460, %461 : vector<4x256xf32>
    %463 = arith.addf %439, %462 : vector<4x256xf32>
    %c0_144 = arith.constant 0 : index
    %c29 = arith.constant 29 : index
    %c0_145 = arith.constant 0 : index
    %c0_146 = arith.constant 0 : index
    %464 = vector.load %arg1[%c0_144, %c29, %c0_145, %c0_146] : memref<2x36x4x1xf32, #tpu.memory_space<vmem>>, vector<1x1x4x1xf32>
    %465 = vector.shape_cast %464 : vector<1x1x4x1xf32> to vector<4x1xf32>
    %466 = vector.extract_strided_slice %446 {offsets = [1, 0], sizes = [1, 256], strides = [1, 1]} : vector<4x256xf32> to vector<1x256xf32>
    %467 = vector.broadcast %466 : vector<1x256xf32> to vector<4x256xf32>
    %468 = vector.broadcast %465 : vector<4x1xf32> to vector<4x256xf32>
    %469 = arith.mulf %467, %468 : vector<4x256xf32>
    %470 = arith.addf %458, %469 : vector<4x256xf32>
    %471 = vector.extract_strided_slice %451 {offsets = [1, 0], sizes = [1, 256], strides = [1, 1]} : vector<4x256xf32> to vector<1x256xf32>
    %472 = vector.broadcast %471 : vector<1x256xf32> to vector<4x256xf32>
    %473 = vector.broadcast %465 : vector<4x1xf32> to vector<4x256xf32>
    %474 = arith.mulf %472, %473 : vector<4x256xf32>
    %475 = arith.addf %463, %474 : vector<4x256xf32>
    %c0_147 = arith.constant 0 : index
    %c30 = arith.constant 30 : index
    %c0_148 = arith.constant 0 : index
    %c0_149 = arith.constant 0 : index
    %476 = vector.load %arg1[%c0_147, %c30, %c0_148, %c0_149] : memref<2x36x4x1xf32, #tpu.memory_space<vmem>>, vector<1x1x4x1xf32>
    %477 = vector.shape_cast %476 : vector<1x1x4x1xf32> to vector<4x1xf32>
    %478 = vector.extract_strided_slice %446 {offsets = [2, 0], sizes = [1, 256], strides = [1, 1]} : vector<4x256xf32> to vector<1x256xf32>
    %479 = vector.broadcast %478 : vector<1x256xf32> to vector<4x256xf32>
    %480 = vector.broadcast %477 : vector<4x1xf32> to vector<4x256xf32>
    %481 = arith.mulf %479, %480 : vector<4x256xf32>
    %482 = arith.addf %470, %481 : vector<4x256xf32>
    %483 = vector.extract_strided_slice %451 {offsets = [2, 0], sizes = [1, 256], strides = [1, 1]} : vector<4x256xf32> to vector<1x256xf32>
    %484 = vector.broadcast %483 : vector<1x256xf32> to vector<4x256xf32>
    %485 = vector.broadcast %477 : vector<4x1xf32> to vector<4x256xf32>
    %486 = arith.mulf %484, %485 : vector<4x256xf32>
    %487 = arith.addf %475, %486 : vector<4x256xf32>
    %c0_150 = arith.constant 0 : index
    %c31 = arith.constant 31 : index
    %c0_151 = arith.constant 0 : index
    %c0_152 = arith.constant 0 : index
    %488 = vector.load %arg1[%c0_150, %c31, %c0_151, %c0_152] : memref<2x36x4x1xf32, #tpu.memory_space<vmem>>, vector<1x1x4x1xf32>
    %489 = vector.shape_cast %488 : vector<1x1x4x1xf32> to vector<4x1xf32>
    %490 = vector.extract_strided_slice %446 {offsets = [3, 0], sizes = [1, 256], strides = [1, 1]} : vector<4x256xf32> to vector<1x256xf32>
    %491 = vector.broadcast %490 : vector<1x256xf32> to vector<4x256xf32>
    %492 = vector.broadcast %489 : vector<4x1xf32> to vector<4x256xf32>
    %493 = arith.mulf %491, %492 : vector<4x256xf32>
    %494 = arith.addf %482, %493 : vector<4x256xf32>
    %495 = vector.extract_strided_slice %451 {offsets = [3, 0], sizes = [1, 256], strides = [1, 1]} : vector<4x256xf32> to vector<1x256xf32>
    %496 = vector.broadcast %495 : vector<1x256xf32> to vector<4x256xf32>
    %497 = vector.broadcast %489 : vector<4x1xf32> to vector<4x256xf32>
    %498 = arith.mulf %496, %497 : vector<4x256xf32>
    %499 = arith.addf %487, %498 : vector<4x256xf32>
    %c15_i32_153 = arith.constant 15 : i32
    %500 = vector.broadcast %c15_i32_153 : i32 to vector<1x256xi32>
    %501 = arith.cmpi slt, %14, %500 : vector<1x256xi32>
    %c15_i32_154 = arith.constant 15 : i32
    %502 = vector.broadcast %c15_i32_154 : i32 to vector<1x256xi32>
    %503 = arith.cmpi slt, %16, %502 : vector<1x256xi32>
    %504 = arith.andi %501, %503 : vector<1x256xi1>
    %c239_i32 = arith.constant 239 : i32
    %505 = tpu.dynamic_rotate %18 by %c239_i32 dim 1 : vector<4x256xf32>, i32 -> vector<4x256xf32>
    %cst_155 = arith.constant 0.000000e+00 : f32
    %506 = vector.shape_cast %504 : vector<1x256xi1> to vector<1x256xi1>
    %507 = vector.broadcast %506 : vector<1x256xi1> to vector<4x256xi1>
    %508 = vector.broadcast %cst_155 : f32 to vector<4x256xf32>
    %509 = arith.select %507, %505, %508 : vector<4x256xi1>, vector<4x256xf32>
    %c239_i32_156 = arith.constant 239 : i32
    %510 = tpu.dynamic_rotate %20 by %c239_i32_156 dim 1 : vector<4x256xf32>, i32 -> vector<4x256xf32>
    %cst_157 = arith.constant 0.000000e+00 : f32
    %511 = vector.shape_cast %504 : vector<1x256xi1> to vector<1x256xi1>
    %512 = vector.broadcast %511 : vector<1x256xi1> to vector<4x256xi1>
    %513 = vector.broadcast %cst_157 : f32 to vector<4x256xf32>
    %514 = arith.select %512, %510, %513 : vector<4x256xi1>, vector<4x256xf32>
    %c0_158 = arith.constant 0 : index
    %c32 = arith.constant 32 : index
    %c0_159 = arith.constant 0 : index
    %c0_160 = arith.constant 0 : index
    %515 = vector.load %arg1[%c0_158, %c32, %c0_159, %c0_160] : memref<2x36x4x1xf32, #tpu.memory_space<vmem>>, vector<1x1x4x1xf32>
    %516 = vector.shape_cast %515 : vector<1x1x4x1xf32> to vector<4x1xf32>
    %517 = vector.extract_strided_slice %509 {offsets = [0, 0], sizes = [1, 256], strides = [1, 1]} : vector<4x256xf32> to vector<1x256xf32>
    %518 = vector.broadcast %517 : vector<1x256xf32> to vector<4x256xf32>
    %519 = vector.broadcast %516 : vector<4x1xf32> to vector<4x256xf32>
    %520 = arith.mulf %518, %519 : vector<4x256xf32>
    %521 = arith.addf %494, %520 : vector<4x256xf32>
    %522 = vector.extract_strided_slice %514 {offsets = [0, 0], sizes = [1, 256], strides = [1, 1]} : vector<4x256xf32> to vector<1x256xf32>
    %523 = vector.broadcast %522 : vector<1x256xf32> to vector<4x256xf32>
    %524 = vector.broadcast %516 : vector<4x1xf32> to vector<4x256xf32>
    %525 = arith.mulf %523, %524 : vector<4x256xf32>
    %526 = arith.addf %499, %525 : vector<4x256xf32>
    %c0_161 = arith.constant 0 : index
    %c33 = arith.constant 33 : index
    %c0_162 = arith.constant 0 : index
    %c0_163 = arith.constant 0 : index
    %527 = vector.load %arg1[%c0_161, %c33, %c0_162, %c0_163] : memref<2x36x4x1xf32, #tpu.memory_space<vmem>>, vector<1x1x4x1xf32>
    %528 = vector.shape_cast %527 : vector<1x1x4x1xf32> to vector<4x1xf32>
    %529 = vector.extract_strided_slice %509 {offsets = [1, 0], sizes = [1, 256], strides = [1, 1]} : vector<4x256xf32> to vector<1x256xf32>
    %530 = vector.broadcast %529 : vector<1x256xf32> to vector<4x256xf32>
    %531 = vector.broadcast %528 : vector<4x1xf32> to vector<4x256xf32>
    %532 = arith.mulf %530, %531 : vector<4x256xf32>
    %533 = arith.addf %521, %532 : vector<4x256xf32>
    %534 = vector.extract_strided_slice %514 {offsets = [1, 0], sizes = [1, 256], strides = [1, 1]} : vector<4x256xf32> to vector<1x256xf32>
    %535 = vector.broadcast %534 : vector<1x256xf32> to vector<4x256xf32>
    %536 = vector.broadcast %528 : vector<4x1xf32> to vector<4x256xf32>
    %537 = arith.mulf %535, %536 : vector<4x256xf32>
    %538 = arith.addf %526, %537 : vector<4x256xf32>
    %c0_164 = arith.constant 0 : index
    %c34 = arith.constant 34 : index
    %c0_165 = arith.constant 0 : index
    %c0_166 = arith.constant 0 : index
    %539 = vector.load %arg1[%c0_164, %c34, %c0_165, %c0_166] : memref<2x36x4x1xf32, #tpu.memory_space<vmem>>, vector<1x1x4x1xf32>
    %540 = vector.shape_cast %539 : vector<1x1x4x1xf32> to vector<4x1xf32>
    %541 = vector.extract_strided_slice %509 {offsets = [2, 0], sizes = [1, 256], strides = [1, 1]} : vector<4x256xf32> to vector<1x256xf32>
    %542 = vector.broadcast %541 : vector<1x256xf32> to vector<4x256xf32>
    %543 = vector.broadcast %540 : vector<4x1xf32> to vector<4x256xf32>
    %544 = arith.mulf %542, %543 : vector<4x256xf32>
    %545 = arith.addf %533, %544 : vector<4x256xf32>
    %546 = vector.extract_strided_slice %514 {offsets = [2, 0], sizes = [1, 256], strides = [1, 1]} : vector<4x256xf32> to vector<1x256xf32>
    %547 = vector.broadcast %546 : vector<1x256xf32> to vector<4x256xf32>
    %548 = vector.broadcast %540 : vector<4x1xf32> to vector<4x256xf32>
    %549 = arith.mulf %547, %548 : vector<4x256xf32>
    %550 = arith.addf %538, %549 : vector<4x256xf32>
    %c0_167 = arith.constant 0 : index
    %c35 = arith.constant 35 : index
    %c0_168 = arith.constant 0 : index
    %c0_169 = arith.constant 0 : index
    %551 = vector.load %arg1[%c0_167, %c35, %c0_168, %c0_169] : memref<2x36x4x1xf32, #tpu.memory_space<vmem>>, vector<1x1x4x1xf32>
    %552 = vector.shape_cast %551 : vector<1x1x4x1xf32> to vector<4x1xf32>
    %553 = vector.extract_strided_slice %509 {offsets = [3, 0], sizes = [1, 256], strides = [1, 1]} : vector<4x256xf32> to vector<1x256xf32>
    %554 = vector.broadcast %553 : vector<1x256xf32> to vector<4x256xf32>
    %555 = vector.broadcast %552 : vector<4x1xf32> to vector<4x256xf32>
    %556 = arith.mulf %554, %555 : vector<4x256xf32>
    %557 = arith.addf %545, %556 : vector<4x256xf32>
    %558 = vector.extract_strided_slice %514 {offsets = [3, 0], sizes = [1, 256], strides = [1, 1]} : vector<4x256xf32> to vector<1x256xf32>
    %559 = vector.broadcast %558 : vector<1x256xf32> to vector<4x256xf32>
    %560 = vector.broadcast %552 : vector<4x1xf32> to vector<4x256xf32>
    %561 = arith.mulf %559, %560 : vector<4x256xf32>
    %562 = arith.addf %550, %561 : vector<4x256xf32>
    %563 = vector.broadcast %1 : vector<4x1xf32> to vector<4x256xf32>
    %564 = arith.addf %557, %563 : vector<4x256xf32>
    %565 = vector.broadcast %1 : vector<4x1xf32> to vector<4x256xf32>
    %566 = arith.addf %562, %565 : vector<4x256xf32>
    %cst_170 = arith.constant dense<0.000000e+00> : vector<4xf32>
    %567 = vector.multi_reduction <add>, %564, %cst_170 [1] : vector<4x256xf32> to vector<4xf32>
    %568 = vector.shape_cast %567 : vector<4xf32> to vector<4x1xf32>
    %569 = arith.mulf %564, %564 : vector<4x256xf32>
    %cst_171 = arith.constant dense<0.000000e+00> : vector<4xf32>
    %570 = vector.multi_reduction <add>, %569, %cst_171 [1] : vector<4x256xf32> to vector<4xf32>
    %571 = vector.shape_cast %570 : vector<4xf32> to vector<4x1xf32>
    %cst_172 = arith.constant dense<0.000000e+00> : vector<4xf32>
    %572 = vector.multi_reduction <add>, %566, %cst_172 [1] : vector<4x256xf32> to vector<4xf32>
    %573 = vector.shape_cast %572 : vector<4xf32> to vector<4x1xf32>
    %574 = arith.addf %568, %573 : vector<4x1xf32>
    %575 = arith.mulf %566, %566 : vector<4x256xf32>
    %cst_173 = arith.constant dense<0.000000e+00> : vector<4xf32>
    %576 = vector.multi_reduction <add>, %575, %cst_173 [1] : vector<4x256xf32> to vector<4xf32>
    %577 = vector.shape_cast %576 : vector<4xf32> to vector<4x1xf32>
    %578 = arith.addf %571, %577 : vector<4x1xf32>
    %cst_174 = arith.constant 0.001953125 : f32
    %579 = vector.broadcast %cst_174 : f32 to vector<4x1xf32>
    %580 = arith.mulf %574, %579 : vector<4x1xf32>
    %cst_175 = arith.constant 0.001953125 : f32
    %581 = vector.broadcast %cst_175 : f32 to vector<4x1xf32>
    %582 = arith.mulf %578, %581 : vector<4x1xf32>
    %583 = arith.mulf %580, %580 : vector<4x1xf32>
    %584 = arith.subf %582, %583 : vector<4x1xf32>
    %cst_176 = arith.constant 9.99999974E-6 : f32
    %585 = vector.broadcast %cst_176 : f32 to vector<4x1xf32>
    %586 = arith.addf %584, %585 : vector<4x1xf32>
    %587 = math.rsqrt %586 : vector<4x1xf32>
    %588 = arith.mulf %3, %587 : vector<4x1xf32>
    %589 = arith.mulf %580, %588 : vector<4x1xf32>
    %590 = arith.subf %5, %589 : vector<4x1xf32>
    %591 = vector.broadcast %588 : vector<4x1xf32> to vector<4x256xf32>
    %592 = arith.mulf %564, %591 : vector<4x256xf32>
    %593 = vector.broadcast %590 : vector<4x1xf32> to vector<4x256xf32>
    %594 = arith.addf %592, %593 : vector<4x256xf32>
    %595 = vector.broadcast %588 : vector<4x1xf32> to vector<4x256xf32>
    %596 = arith.mulf %566, %595 : vector<4x256xf32>
    %597 = vector.broadcast %590 : vector<4x1xf32> to vector<4x256xf32>
    %598 = arith.addf %596, %597 : vector<4x256xf32>
    %cst_177 = arith.constant 0.000000e+00 : f32
    %599 = vector.broadcast %cst_177 : f32 to vector<4x256xf32>
    %600 = arith.maximumf %594, %599 : vector<4x256xf32>
    %cst_178 = arith.constant 0.000000e+00 : f32
    %601 = vector.broadcast %cst_178 : f32 to vector<4x256xf32>
    %602 = arith.maximumf %598, %601 : vector<4x256xf32>
    %cst_179 = arith.constant 0.000000e+00 : f32
    %603 = vector.broadcast %cst_179 : f32 to vector<4x256xf32>
    %cst_180 = arith.constant 0.000000e+00 : f32
    %604 = vector.broadcast %cst_180 : f32 to vector<4x256xf32>
    %c1_i32_181 = arith.constant 1 : i32
    %605 = vector.broadcast %c1_i32_181 : i32 to vector<1x256xi32>
    %606 = arith.cmpi sge, %14, %605 : vector<1x256xi32>
    %c1_i32_182 = arith.constant 1 : i32
    %607 = vector.broadcast %c1_i32_182 : i32 to vector<1x256xi32>
    %608 = arith.cmpi sge, %16, %607 : vector<1x256xi32>
    %609 = arith.andi %606, %608 : vector<1x256xi1>
    %c17_i32_183 = arith.constant 17 : i32
    %610 = tpu.dynamic_rotate %600 by %c17_i32_183 dim 1 : vector<4x256xf32>, i32 -> vector<4x256xf32>
    %cst_184 = arith.constant 0.000000e+00 : f32
    %611 = vector.shape_cast %609 : vector<1x256xi1> to vector<1x256xi1>
    %612 = vector.broadcast %611 : vector<1x256xi1> to vector<4x256xi1>
    %613 = vector.broadcast %cst_184 : f32 to vector<4x256xf32>
    %614 = arith.select %612, %610, %613 : vector<4x256xi1>, vector<4x256xf32>
    %c17_i32_185 = arith.constant 17 : i32
    %615 = tpu.dynamic_rotate %602 by %c17_i32_185 dim 1 : vector<4x256xf32>, i32 -> vector<4x256xf32>
    %cst_186 = arith.constant 0.000000e+00 : f32
    %616 = vector.shape_cast %609 : vector<1x256xi1> to vector<1x256xi1>
    %617 = vector.broadcast %616 : vector<1x256xi1> to vector<4x256xi1>
    %618 = vector.broadcast %cst_186 : f32 to vector<4x256xf32>
    %619 = arith.select %617, %615, %618 : vector<4x256xi1>, vector<4x256xf32>
    %c1_187 = arith.constant 1 : index
    %c0_188 = arith.constant 0 : index
    %c0_189 = arith.constant 0 : index
    %c0_190 = arith.constant 0 : index
    %620 = vector.load %arg1[%c1_187, %c0_188, %c0_189, %c0_190] : memref<2x36x4x1xf32, #tpu.memory_space<vmem>>, vector<1x1x4x1xf32>
    %621 = vector.shape_cast %620 : vector<1x1x4x1xf32> to vector<4x1xf32>
    %622 = vector.extract_strided_slice %614 {offsets = [0, 0], sizes = [1, 256], strides = [1, 1]} : vector<4x256xf32> to vector<1x256xf32>
    %623 = vector.broadcast %622 : vector<1x256xf32> to vector<4x256xf32>
    %624 = vector.broadcast %621 : vector<4x1xf32> to vector<4x256xf32>
    %625 = arith.mulf %623, %624 : vector<4x256xf32>
    %626 = arith.addf %603, %625 : vector<4x256xf32>
    %627 = vector.extract_strided_slice %619 {offsets = [0, 0], sizes = [1, 256], strides = [1, 1]} : vector<4x256xf32> to vector<1x256xf32>
    %628 = vector.broadcast %627 : vector<1x256xf32> to vector<4x256xf32>
    %629 = vector.broadcast %621 : vector<4x1xf32> to vector<4x256xf32>
    %630 = arith.mulf %628, %629 : vector<4x256xf32>
    %631 = arith.addf %604, %630 : vector<4x256xf32>
    %c1_191 = arith.constant 1 : index
    %c1_192 = arith.constant 1 : index
    %c0_193 = arith.constant 0 : index
    %c0_194 = arith.constant 0 : index
    %632 = vector.load %arg1[%c1_191, %c1_192, %c0_193, %c0_194] : memref<2x36x4x1xf32, #tpu.memory_space<vmem>>, vector<1x1x4x1xf32>
    %633 = vector.shape_cast %632 : vector<1x1x4x1xf32> to vector<4x1xf32>
    %634 = vector.extract_strided_slice %614 {offsets = [1, 0], sizes = [1, 256], strides = [1, 1]} : vector<4x256xf32> to vector<1x256xf32>
    %635 = vector.broadcast %634 : vector<1x256xf32> to vector<4x256xf32>
    %636 = vector.broadcast %633 : vector<4x1xf32> to vector<4x256xf32>
    %637 = arith.mulf %635, %636 : vector<4x256xf32>
    %638 = arith.addf %626, %637 : vector<4x256xf32>
    %639 = vector.extract_strided_slice %619 {offsets = [1, 0], sizes = [1, 256], strides = [1, 1]} : vector<4x256xf32> to vector<1x256xf32>
    %640 = vector.broadcast %639 : vector<1x256xf32> to vector<4x256xf32>
    %641 = vector.broadcast %633 : vector<4x1xf32> to vector<4x256xf32>
    %642 = arith.mulf %640, %641 : vector<4x256xf32>
    %643 = arith.addf %631, %642 : vector<4x256xf32>
    %c1_195 = arith.constant 1 : index
    %c2_196 = arith.constant 2 : index
    %c0_197 = arith.constant 0 : index
    %c0_198 = arith.constant 0 : index
    %644 = vector.load %arg1[%c1_195, %c2_196, %c0_197, %c0_198] : memref<2x36x4x1xf32, #tpu.memory_space<vmem>>, vector<1x1x4x1xf32>
    %645 = vector.shape_cast %644 : vector<1x1x4x1xf32> to vector<4x1xf32>
    %646 = vector.extract_strided_slice %614 {offsets = [2, 0], sizes = [1, 256], strides = [1, 1]} : vector<4x256xf32> to vector<1x256xf32>
    %647 = vector.broadcast %646 : vector<1x256xf32> to vector<4x256xf32>
    %648 = vector.broadcast %645 : vector<4x1xf32> to vector<4x256xf32>
    %649 = arith.mulf %647, %648 : vector<4x256xf32>
    %650 = arith.addf %638, %649 : vector<4x256xf32>
    %651 = vector.extract_strided_slice %619 {offsets = [2, 0], sizes = [1, 256], strides = [1, 1]} : vector<4x256xf32> to vector<1x256xf32>
    %652 = vector.broadcast %651 : vector<1x256xf32> to vector<4x256xf32>
    %653 = vector.broadcast %645 : vector<4x1xf32> to vector<4x256xf32>
    %654 = arith.mulf %652, %653 : vector<4x256xf32>
    %655 = arith.addf %643, %654 : vector<4x256xf32>
    %c1_199 = arith.constant 1 : index
    %c3_200 = arith.constant 3 : index
    %c0_201 = arith.constant 0 : index
    %c0_202 = arith.constant 0 : index
    %656 = vector.load %arg1[%c1_199, %c3_200, %c0_201, %c0_202] : memref<2x36x4x1xf32, #tpu.memory_space<vmem>>, vector<1x1x4x1xf32>
    %657 = vector.shape_cast %656 : vector<1x1x4x1xf32> to vector<4x1xf32>
    %658 = vector.extract_strided_slice %614 {offsets = [3, 0], sizes = [1, 256], strides = [1, 1]} : vector<4x256xf32> to vector<1x256xf32>
    %659 = vector.broadcast %658 : vector<1x256xf32> to vector<4x256xf32>
    %660 = vector.broadcast %657 : vector<4x1xf32> to vector<4x256xf32>
    %661 = arith.mulf %659, %660 : vector<4x256xf32>
    %662 = arith.addf %650, %661 : vector<4x256xf32>
    %663 = vector.extract_strided_slice %619 {offsets = [3, 0], sizes = [1, 256], strides = [1, 1]} : vector<4x256xf32> to vector<1x256xf32>
    %664 = vector.broadcast %663 : vector<1x256xf32> to vector<4x256xf32>
    %665 = vector.broadcast %657 : vector<4x1xf32> to vector<4x256xf32>
    %666 = arith.mulf %664, %665 : vector<4x256xf32>
    %667 = arith.addf %655, %666 : vector<4x256xf32>
    %c1_i32_203 = arith.constant 1 : i32
    %668 = vector.broadcast %c1_i32_203 : i32 to vector<1x256xi32>
    %669 = arith.cmpi sge, %14, %668 : vector<1x256xi32>
    %c16_i32_204 = arith.constant 16 : i32
    %670 = tpu.dynamic_rotate %600 by %c16_i32_204 dim 1 : vector<4x256xf32>, i32 -> vector<4x256xf32>
    %cst_205 = arith.constant 0.000000e+00 : f32
    %671 = vector.shape_cast %669 : vector<1x256xi1> to vector<1x256xi1>
    %672 = vector.broadcast %671 : vector<1x256xi1> to vector<4x256xi1>
    %673 = vector.broadcast %cst_205 : f32 to vector<4x256xf32>
    %674 = arith.select %672, %670, %673 : vector<4x256xi1>, vector<4x256xf32>
    %c16_i32_206 = arith.constant 16 : i32
    %675 = tpu.dynamic_rotate %602 by %c16_i32_206 dim 1 : vector<4x256xf32>, i32 -> vector<4x256xf32>
    %cst_207 = arith.constant 0.000000e+00 : f32
    %676 = vector.shape_cast %669 : vector<1x256xi1> to vector<1x256xi1>
    %677 = vector.broadcast %676 : vector<1x256xi1> to vector<4x256xi1>
    %678 = vector.broadcast %cst_207 : f32 to vector<4x256xf32>
    %679 = arith.select %677, %675, %678 : vector<4x256xi1>, vector<4x256xf32>
    %c1_208 = arith.constant 1 : index
    %c4_209 = arith.constant 4 : index
    %c0_210 = arith.constant 0 : index
    %c0_211 = arith.constant 0 : index
    %680 = vector.load %arg1[%c1_208, %c4_209, %c0_210, %c0_211] : memref<2x36x4x1xf32, #tpu.memory_space<vmem>>, vector<1x1x4x1xf32>
    %681 = vector.shape_cast %680 : vector<1x1x4x1xf32> to vector<4x1xf32>
    %682 = vector.extract_strided_slice %674 {offsets = [0, 0], sizes = [1, 256], strides = [1, 1]} : vector<4x256xf32> to vector<1x256xf32>
    %683 = vector.broadcast %682 : vector<1x256xf32> to vector<4x256xf32>
    %684 = vector.broadcast %681 : vector<4x1xf32> to vector<4x256xf32>
    %685 = arith.mulf %683, %684 : vector<4x256xf32>
    %686 = arith.addf %662, %685 : vector<4x256xf32>
    %687 = vector.extract_strided_slice %679 {offsets = [0, 0], sizes = [1, 256], strides = [1, 1]} : vector<4x256xf32> to vector<1x256xf32>
    %688 = vector.broadcast %687 : vector<1x256xf32> to vector<4x256xf32>
    %689 = vector.broadcast %681 : vector<4x1xf32> to vector<4x256xf32>
    %690 = arith.mulf %688, %689 : vector<4x256xf32>
    %691 = arith.addf %667, %690 : vector<4x256xf32>
    %c1_212 = arith.constant 1 : index
    %c5_213 = arith.constant 5 : index
    %c0_214 = arith.constant 0 : index
    %c0_215 = arith.constant 0 : index
    %692 = vector.load %arg1[%c1_212, %c5_213, %c0_214, %c0_215] : memref<2x36x4x1xf32, #tpu.memory_space<vmem>>, vector<1x1x4x1xf32>
    %693 = vector.shape_cast %692 : vector<1x1x4x1xf32> to vector<4x1xf32>
    %694 = vector.extract_strided_slice %674 {offsets = [1, 0], sizes = [1, 256], strides = [1, 1]} : vector<4x256xf32> to vector<1x256xf32>
    %695 = vector.broadcast %694 : vector<1x256xf32> to vector<4x256xf32>
    %696 = vector.broadcast %693 : vector<4x1xf32> to vector<4x256xf32>
    %697 = arith.mulf %695, %696 : vector<4x256xf32>
    %698 = arith.addf %686, %697 : vector<4x256xf32>
    %699 = vector.extract_strided_slice %679 {offsets = [1, 0], sizes = [1, 256], strides = [1, 1]} : vector<4x256xf32> to vector<1x256xf32>
    %700 = vector.broadcast %699 : vector<1x256xf32> to vector<4x256xf32>
    %701 = vector.broadcast %693 : vector<4x1xf32> to vector<4x256xf32>
    %702 = arith.mulf %700, %701 : vector<4x256xf32>
    %703 = arith.addf %691, %702 : vector<4x256xf32>
    %c1_216 = arith.constant 1 : index
    %c6_217 = arith.constant 6 : index
    %c0_218 = arith.constant 0 : index
    %c0_219 = arith.constant 0 : index
    %704 = vector.load %arg1[%c1_216, %c6_217, %c0_218, %c0_219] : memref<2x36x4x1xf32, #tpu.memory_space<vmem>>, vector<1x1x4x1xf32>
    %705 = vector.shape_cast %704 : vector<1x1x4x1xf32> to vector<4x1xf32>
    %706 = vector.extract_strided_slice %674 {offsets = [2, 0], sizes = [1, 256], strides = [1, 1]} : vector<4x256xf32> to vector<1x256xf32>
    %707 = vector.broadcast %706 : vector<1x256xf32> to vector<4x256xf32>
    %708 = vector.broadcast %705 : vector<4x1xf32> to vector<4x256xf32>
    %709 = arith.mulf %707, %708 : vector<4x256xf32>
    %710 = arith.addf %698, %709 : vector<4x256xf32>
    %711 = vector.extract_strided_slice %679 {offsets = [2, 0], sizes = [1, 256], strides = [1, 1]} : vector<4x256xf32> to vector<1x256xf32>
    %712 = vector.broadcast %711 : vector<1x256xf32> to vector<4x256xf32>
    %713 = vector.broadcast %705 : vector<4x1xf32> to vector<4x256xf32>
    %714 = arith.mulf %712, %713 : vector<4x256xf32>
    %715 = arith.addf %703, %714 : vector<4x256xf32>
    %c1_220 = arith.constant 1 : index
    %c7_221 = arith.constant 7 : index
    %c0_222 = arith.constant 0 : index
    %c0_223 = arith.constant 0 : index
    %716 = vector.load %arg1[%c1_220, %c7_221, %c0_222, %c0_223] : memref<2x36x4x1xf32, #tpu.memory_space<vmem>>, vector<1x1x4x1xf32>
    %717 = vector.shape_cast %716 : vector<1x1x4x1xf32> to vector<4x1xf32>
    %718 = vector.extract_strided_slice %674 {offsets = [3, 0], sizes = [1, 256], strides = [1, 1]} : vector<4x256xf32> to vector<1x256xf32>
    %719 = vector.broadcast %718 : vector<1x256xf32> to vector<4x256xf32>
    %720 = vector.broadcast %717 : vector<4x1xf32> to vector<4x256xf32>
    %721 = arith.mulf %719, %720 : vector<4x256xf32>
    %722 = arith.addf %710, %721 : vector<4x256xf32>
    %723 = vector.extract_strided_slice %679 {offsets = [3, 0], sizes = [1, 256], strides = [1, 1]} : vector<4x256xf32> to vector<1x256xf32>
    %724 = vector.broadcast %723 : vector<1x256xf32> to vector<4x256xf32>
    %725 = vector.broadcast %717 : vector<4x1xf32> to vector<4x256xf32>
    %726 = arith.mulf %724, %725 : vector<4x256xf32>
    %727 = arith.addf %715, %726 : vector<4x256xf32>
    %c1_i32_224 = arith.constant 1 : i32
    %728 = vector.broadcast %c1_i32_224 : i32 to vector<1x256xi32>
    %729 = arith.cmpi sge, %14, %728 : vector<1x256xi32>
    %c15_i32_225 = arith.constant 15 : i32
    %730 = vector.broadcast %c15_i32_225 : i32 to vector<1x256xi32>
    %731 = arith.cmpi slt, %16, %730 : vector<1x256xi32>
    %732 = arith.andi %729, %731 : vector<1x256xi1>
    %c15_i32_226 = arith.constant 15 : i32
    %733 = tpu.dynamic_rotate %600 by %c15_i32_226 dim 1 : vector<4x256xf32>, i32 -> vector<4x256xf32>
    %cst_227 = arith.constant 0.000000e+00 : f32
    %734 = vector.shape_cast %732 : vector<1x256xi1> to vector<1x256xi1>
    %735 = vector.broadcast %734 : vector<1x256xi1> to vector<4x256xi1>
    %736 = vector.broadcast %cst_227 : f32 to vector<4x256xf32>
    %737 = arith.select %735, %733, %736 : vector<4x256xi1>, vector<4x256xf32>
    %c15_i32_228 = arith.constant 15 : i32
    %738 = tpu.dynamic_rotate %602 by %c15_i32_228 dim 1 : vector<4x256xf32>, i32 -> vector<4x256xf32>
    %cst_229 = arith.constant 0.000000e+00 : f32
    %739 = vector.shape_cast %732 : vector<1x256xi1> to vector<1x256xi1>
    %740 = vector.broadcast %739 : vector<1x256xi1> to vector<4x256xi1>
    %741 = vector.broadcast %cst_229 : f32 to vector<4x256xf32>
    %742 = arith.select %740, %738, %741 : vector<4x256xi1>, vector<4x256xf32>
    %c1_230 = arith.constant 1 : index
    %c8_231 = arith.constant 8 : index
    %c0_232 = arith.constant 0 : index
    %c0_233 = arith.constant 0 : index
    %743 = vector.load %arg1[%c1_230, %c8_231, %c0_232, %c0_233] : memref<2x36x4x1xf32, #tpu.memory_space<vmem>>, vector<1x1x4x1xf32>
    %744 = vector.shape_cast %743 : vector<1x1x4x1xf32> to vector<4x1xf32>
    %745 = vector.extract_strided_slice %737 {offsets = [0, 0], sizes = [1, 256], strides = [1, 1]} : vector<4x256xf32> to vector<1x256xf32>
    %746 = vector.broadcast %745 : vector<1x256xf32> to vector<4x256xf32>
    %747 = vector.broadcast %744 : vector<4x1xf32> to vector<4x256xf32>
    %748 = arith.mulf %746, %747 : vector<4x256xf32>
    %749 = arith.addf %722, %748 : vector<4x256xf32>
    %750 = vector.extract_strided_slice %742 {offsets = [0, 0], sizes = [1, 256], strides = [1, 1]} : vector<4x256xf32> to vector<1x256xf32>
    %751 = vector.broadcast %750 : vector<1x256xf32> to vector<4x256xf32>
    %752 = vector.broadcast %744 : vector<4x1xf32> to vector<4x256xf32>
    %753 = arith.mulf %751, %752 : vector<4x256xf32>
    %754 = arith.addf %727, %753 : vector<4x256xf32>
    %c1_234 = arith.constant 1 : index
    %c9_235 = arith.constant 9 : index
    %c0_236 = arith.constant 0 : index
    %c0_237 = arith.constant 0 : index
    %755 = vector.load %arg1[%c1_234, %c9_235, %c0_236, %c0_237] : memref<2x36x4x1xf32, #tpu.memory_space<vmem>>, vector<1x1x4x1xf32>
    %756 = vector.shape_cast %755 : vector<1x1x4x1xf32> to vector<4x1xf32>
    %757 = vector.extract_strided_slice %737 {offsets = [1, 0], sizes = [1, 256], strides = [1, 1]} : vector<4x256xf32> to vector<1x256xf32>
    %758 = vector.broadcast %757 : vector<1x256xf32> to vector<4x256xf32>
    %759 = vector.broadcast %756 : vector<4x1xf32> to vector<4x256xf32>
    %760 = arith.mulf %758, %759 : vector<4x256xf32>
    %761 = arith.addf %749, %760 : vector<4x256xf32>
    %762 = vector.extract_strided_slice %742 {offsets = [1, 0], sizes = [1, 256], strides = [1, 1]} : vector<4x256xf32> to vector<1x256xf32>
    %763 = vector.broadcast %762 : vector<1x256xf32> to vector<4x256xf32>
    %764 = vector.broadcast %756 : vector<4x1xf32> to vector<4x256xf32>
    %765 = arith.mulf %763, %764 : vector<4x256xf32>
    %766 = arith.addf %754, %765 : vector<4x256xf32>
    %c1_238 = arith.constant 1 : index
    %c10_239 = arith.constant 10 : index
    %c0_240 = arith.constant 0 : index
    %c0_241 = arith.constant 0 : index
    %767 = vector.load %arg1[%c1_238, %c10_239, %c0_240, %c0_241] : memref<2x36x4x1xf32, #tpu.memory_space<vmem>>, vector<1x1x4x1xf32>
    %768 = vector.shape_cast %767 : vector<1x1x4x1xf32> to vector<4x1xf32>
    %769 = vector.extract_strided_slice %737 {offsets = [2, 0], sizes = [1, 256], strides = [1, 1]} : vector<4x256xf32> to vector<1x256xf32>
    %770 = vector.broadcast %769 : vector<1x256xf32> to vector<4x256xf32>
    %771 = vector.broadcast %768 : vector<4x1xf32> to vector<4x256xf32>
    %772 = arith.mulf %770, %771 : vector<4x256xf32>
    %773 = arith.addf %761, %772 : vector<4x256xf32>
    %774 = vector.extract_strided_slice %742 {offsets = [2, 0], sizes = [1, 256], strides = [1, 1]} : vector<4x256xf32> to vector<1x256xf32>
    %775 = vector.broadcast %774 : vector<1x256xf32> to vector<4x256xf32>
    %776 = vector.broadcast %768 : vector<4x1xf32> to vector<4x256xf32>
    %777 = arith.mulf %775, %776 : vector<4x256xf32>
    %778 = arith.addf %766, %777 : vector<4x256xf32>
    %c1_242 = arith.constant 1 : index
    %c11_243 = arith.constant 11 : index
    %c0_244 = arith.constant 0 : index
    %c0_245 = arith.constant 0 : index
    %779 = vector.load %arg1[%c1_242, %c11_243, %c0_244, %c0_245] : memref<2x36x4x1xf32, #tpu.memory_space<vmem>>, vector<1x1x4x1xf32>
    %780 = vector.shape_cast %779 : vector<1x1x4x1xf32> to vector<4x1xf32>
    %781 = vector.extract_strided_slice %737 {offsets = [3, 0], sizes = [1, 256], strides = [1, 1]} : vector<4x256xf32> to vector<1x256xf32>
    %782 = vector.broadcast %781 : vector<1x256xf32> to vector<4x256xf32>
    %783 = vector.broadcast %780 : vector<4x1xf32> to vector<4x256xf32>
    %784 = arith.mulf %782, %783 : vector<4x256xf32>
    %785 = arith.addf %773, %784 : vector<4x256xf32>
    %786 = vector.extract_strided_slice %742 {offsets = [3, 0], sizes = [1, 256], strides = [1, 1]} : vector<4x256xf32> to vector<1x256xf32>
    %787 = vector.broadcast %786 : vector<1x256xf32> to vector<4x256xf32>
    %788 = vector.broadcast %780 : vector<4x1xf32> to vector<4x256xf32>
    %789 = arith.mulf %787, %788 : vector<4x256xf32>
    %790 = arith.addf %778, %789 : vector<4x256xf32>
    %c1_i32_246 = arith.constant 1 : i32
    %791 = vector.broadcast %c1_i32_246 : i32 to vector<1x256xi32>
    %792 = arith.cmpi sge, %16, %791 : vector<1x256xi32>
    %c1_i32_247 = arith.constant 1 : i32
    %793 = tpu.dynamic_rotate %600 by %c1_i32_247 dim 1 : vector<4x256xf32>, i32 -> vector<4x256xf32>
    %cst_248 = arith.constant 0.000000e+00 : f32
    %794 = vector.shape_cast %792 : vector<1x256xi1> to vector<1x256xi1>
    %795 = vector.broadcast %794 : vector<1x256xi1> to vector<4x256xi1>
    %796 = vector.broadcast %cst_248 : f32 to vector<4x256xf32>
    %797 = arith.select %795, %793, %796 : vector<4x256xi1>, vector<4x256xf32>
    %c1_i32_249 = arith.constant 1 : i32
    %798 = tpu.dynamic_rotate %602 by %c1_i32_249 dim 1 : vector<4x256xf32>, i32 -> vector<4x256xf32>
    %cst_250 = arith.constant 0.000000e+00 : f32
    %799 = vector.shape_cast %792 : vector<1x256xi1> to vector<1x256xi1>
    %800 = vector.broadcast %799 : vector<1x256xi1> to vector<4x256xi1>
    %801 = vector.broadcast %cst_250 : f32 to vector<4x256xf32>
    %802 = arith.select %800, %798, %801 : vector<4x256xi1>, vector<4x256xf32>
    %c1_251 = arith.constant 1 : index
    %c12_252 = arith.constant 12 : index
    %c0_253 = arith.constant 0 : index
    %c0_254 = arith.constant 0 : index
    %803 = vector.load %arg1[%c1_251, %c12_252, %c0_253, %c0_254] : memref<2x36x4x1xf32, #tpu.memory_space<vmem>>, vector<1x1x4x1xf32>
    %804 = vector.shape_cast %803 : vector<1x1x4x1xf32> to vector<4x1xf32>
    %805 = vector.extract_strided_slice %797 {offsets = [0, 0], sizes = [1, 256], strides = [1, 1]} : vector<4x256xf32> to vector<1x256xf32>
    %806 = vector.broadcast %805 : vector<1x256xf32> to vector<4x256xf32>
    %807 = vector.broadcast %804 : vector<4x1xf32> to vector<4x256xf32>
    %808 = arith.mulf %806, %807 : vector<4x256xf32>
    %809 = arith.addf %785, %808 : vector<4x256xf32>
    %810 = vector.extract_strided_slice %802 {offsets = [0, 0], sizes = [1, 256], strides = [1, 1]} : vector<4x256xf32> to vector<1x256xf32>
    %811 = vector.broadcast %810 : vector<1x256xf32> to vector<4x256xf32>
    %812 = vector.broadcast %804 : vector<4x1xf32> to vector<4x256xf32>
    %813 = arith.mulf %811, %812 : vector<4x256xf32>
    %814 = arith.addf %790, %813 : vector<4x256xf32>
    %c1_255 = arith.constant 1 : index
    %c13_256 = arith.constant 13 : index
    %c0_257 = arith.constant 0 : index
    %c0_258 = arith.constant 0 : index
    %815 = vector.load %arg1[%c1_255, %c13_256, %c0_257, %c0_258] : memref<2x36x4x1xf32, #tpu.memory_space<vmem>>, vector<1x1x4x1xf32>
    %816 = vector.shape_cast %815 : vector<1x1x4x1xf32> to vector<4x1xf32>
    %817 = vector.extract_strided_slice %797 {offsets = [1, 0], sizes = [1, 256], strides = [1, 1]} : vector<4x256xf32> to vector<1x256xf32>
    %818 = vector.broadcast %817 : vector<1x256xf32> to vector<4x256xf32>
    %819 = vector.broadcast %816 : vector<4x1xf32> to vector<4x256xf32>
    %820 = arith.mulf %818, %819 : vector<4x256xf32>
    %821 = arith.addf %809, %820 : vector<4x256xf32>
    %822 = vector.extract_strided_slice %802 {offsets = [1, 0], sizes = [1, 256], strides = [1, 1]} : vector<4x256xf32> to vector<1x256xf32>
    %823 = vector.broadcast %822 : vector<1x256xf32> to vector<4x256xf32>
    %824 = vector.broadcast %816 : vector<4x1xf32> to vector<4x256xf32>
    %825 = arith.mulf %823, %824 : vector<4x256xf32>
    %826 = arith.addf %814, %825 : vector<4x256xf32>
    %c1_259 = arith.constant 1 : index
    %c14_260 = arith.constant 14 : index
    %c0_261 = arith.constant 0 : index
    %c0_262 = arith.constant 0 : index
    %827 = vector.load %arg1[%c1_259, %c14_260, %c0_261, %c0_262] : memref<2x36x4x1xf32, #tpu.memory_space<vmem>>, vector<1x1x4x1xf32>
    %828 = vector.shape_cast %827 : vector<1x1x4x1xf32> to vector<4x1xf32>
    %829 = vector.extract_strided_slice %797 {offsets = [2, 0], sizes = [1, 256], strides = [1, 1]} : vector<4x256xf32> to vector<1x256xf32>
    %830 = vector.broadcast %829 : vector<1x256xf32> to vector<4x256xf32>
    %831 = vector.broadcast %828 : vector<4x1xf32> to vector<4x256xf32>
    %832 = arith.mulf %830, %831 : vector<4x256xf32>
    %833 = arith.addf %821, %832 : vector<4x256xf32>
    %834 = vector.extract_strided_slice %802 {offsets = [2, 0], sizes = [1, 256], strides = [1, 1]} : vector<4x256xf32> to vector<1x256xf32>
    %835 = vector.broadcast %834 : vector<1x256xf32> to vector<4x256xf32>
    %836 = vector.broadcast %828 : vector<4x1xf32> to vector<4x256xf32>
    %837 = arith.mulf %835, %836 : vector<4x256xf32>
    %838 = arith.addf %826, %837 : vector<4x256xf32>
    %c1_263 = arith.constant 1 : index
    %c15_264 = arith.constant 15 : index
    %c0_265 = arith.constant 0 : index
    %c0_266 = arith.constant 0 : index
    %839 = vector.load %arg1[%c1_263, %c15_264, %c0_265, %c0_266] : memref<2x36x4x1xf32, #tpu.memory_space<vmem>>, vector<1x1x4x1xf32>
    %840 = vector.shape_cast %839 : vector<1x1x4x1xf32> to vector<4x1xf32>
    %841 = vector.extract_strided_slice %797 {offsets = [3, 0], sizes = [1, 256], strides = [1, 1]} : vector<4x256xf32> to vector<1x256xf32>
    %842 = vector.broadcast %841 : vector<1x256xf32> to vector<4x256xf32>
    %843 = vector.broadcast %840 : vector<4x1xf32> to vector<4x256xf32>
    %844 = arith.mulf %842, %843 : vector<4x256xf32>
    %845 = arith.addf %833, %844 : vector<4x256xf32>
    %846 = vector.extract_strided_slice %802 {offsets = [3, 0], sizes = [1, 256], strides = [1, 1]} : vector<4x256xf32> to vector<1x256xf32>
    %847 = vector.broadcast %846 : vector<1x256xf32> to vector<4x256xf32>
    %848 = vector.broadcast %840 : vector<4x1xf32> to vector<4x256xf32>
    %849 = arith.mulf %847, %848 : vector<4x256xf32>
    %850 = arith.addf %838, %849 : vector<4x256xf32>
    %c1_267 = arith.constant 1 : index
    %c16_268 = arith.constant 16 : index
    %c0_269 = arith.constant 0 : index
    %c0_270 = arith.constant 0 : index
    %851 = vector.load %arg1[%c1_267, %c16_268, %c0_269, %c0_270] : memref<2x36x4x1xf32, #tpu.memory_space<vmem>>, vector<1x1x4x1xf32>
    %852 = vector.shape_cast %851 : vector<1x1x4x1xf32> to vector<4x1xf32>
    %853 = vector.extract_strided_slice %600 {offsets = [0, 0], sizes = [1, 256], strides = [1, 1]} : vector<4x256xf32> to vector<1x256xf32>
    %854 = vector.broadcast %853 : vector<1x256xf32> to vector<4x256xf32>
    %855 = vector.broadcast %852 : vector<4x1xf32> to vector<4x256xf32>
    %856 = arith.mulf %854, %855 : vector<4x256xf32>
    %857 = arith.addf %845, %856 : vector<4x256xf32>
    %858 = vector.extract_strided_slice %602 {offsets = [0, 0], sizes = [1, 256], strides = [1, 1]} : vector<4x256xf32> to vector<1x256xf32>
    %859 = vector.broadcast %858 : vector<1x256xf32> to vector<4x256xf32>
    %860 = vector.broadcast %852 : vector<4x1xf32> to vector<4x256xf32>
    %861 = arith.mulf %859, %860 : vector<4x256xf32>
    %862 = arith.addf %850, %861 : vector<4x256xf32>
    %c1_271 = arith.constant 1 : index
    %c17_272 = arith.constant 17 : index
    %c0_273 = arith.constant 0 : index
    %c0_274 = arith.constant 0 : index
    %863 = vector.load %arg1[%c1_271, %c17_272, %c0_273, %c0_274] : memref<2x36x4x1xf32, #tpu.memory_space<vmem>>, vector<1x1x4x1xf32>
    %864 = vector.shape_cast %863 : vector<1x1x4x1xf32> to vector<4x1xf32>
    %865 = vector.extract_strided_slice %600 {offsets = [1, 0], sizes = [1, 256], strides = [1, 1]} : vector<4x256xf32> to vector<1x256xf32>
    %866 = vector.broadcast %865 : vector<1x256xf32> to vector<4x256xf32>
    %867 = vector.broadcast %864 : vector<4x1xf32> to vector<4x256xf32>
    %868 = arith.mulf %866, %867 : vector<4x256xf32>
    %869 = arith.addf %857, %868 : vector<4x256xf32>
    %870 = vector.extract_strided_slice %602 {offsets = [1, 0], sizes = [1, 256], strides = [1, 1]} : vector<4x256xf32> to vector<1x256xf32>
    %871 = vector.broadcast %870 : vector<1x256xf32> to vector<4x256xf32>
    %872 = vector.broadcast %864 : vector<4x1xf32> to vector<4x256xf32>
    %873 = arith.mulf %871, %872 : vector<4x256xf32>
    %874 = arith.addf %862, %873 : vector<4x256xf32>
    %c1_275 = arith.constant 1 : index
    %c18_276 = arith.constant 18 : index
    %c0_277 = arith.constant 0 : index
    %c0_278 = arith.constant 0 : index
    %875 = vector.load %arg1[%c1_275, %c18_276, %c0_277, %c0_278] : memref<2x36x4x1xf32, #tpu.memory_space<vmem>>, vector<1x1x4x1xf32>
    %876 = vector.shape_cast %875 : vector<1x1x4x1xf32> to vector<4x1xf32>
    %877 = vector.extract_strided_slice %600 {offsets = [2, 0], sizes = [1, 256], strides = [1, 1]} : vector<4x256xf32> to vector<1x256xf32>
    %878 = vector.broadcast %877 : vector<1x256xf32> to vector<4x256xf32>
    %879 = vector.broadcast %876 : vector<4x1xf32> to vector<4x256xf32>
    %880 = arith.mulf %878, %879 : vector<4x256xf32>
    %881 = arith.addf %869, %880 : vector<4x256xf32>
    %882 = vector.extract_strided_slice %602 {offsets = [2, 0], sizes = [1, 256], strides = [1, 1]} : vector<4x256xf32> to vector<1x256xf32>
    %883 = vector.broadcast %882 : vector<1x256xf32> to vector<4x256xf32>
    %884 = vector.broadcast %876 : vector<4x1xf32> to vector<4x256xf32>
    %885 = arith.mulf %883, %884 : vector<4x256xf32>
    %886 = arith.addf %874, %885 : vector<4x256xf32>
    %c1_279 = arith.constant 1 : index
    %c19_280 = arith.constant 19 : index
    %c0_281 = arith.constant 0 : index
    %c0_282 = arith.constant 0 : index
    %887 = vector.load %arg1[%c1_279, %c19_280, %c0_281, %c0_282] : memref<2x36x4x1xf32, #tpu.memory_space<vmem>>, vector<1x1x4x1xf32>
    %888 = vector.shape_cast %887 : vector<1x1x4x1xf32> to vector<4x1xf32>
    %889 = vector.extract_strided_slice %600 {offsets = [3, 0], sizes = [1, 256], strides = [1, 1]} : vector<4x256xf32> to vector<1x256xf32>
    %890 = vector.broadcast %889 : vector<1x256xf32> to vector<4x256xf32>
    %891 = vector.broadcast %888 : vector<4x1xf32> to vector<4x256xf32>
    %892 = arith.mulf %890, %891 : vector<4x256xf32>
    %893 = arith.addf %881, %892 : vector<4x256xf32>
    %894 = vector.extract_strided_slice %602 {offsets = [3, 0], sizes = [1, 256], strides = [1, 1]} : vector<4x256xf32> to vector<1x256xf32>
    %895 = vector.broadcast %894 : vector<1x256xf32> to vector<4x256xf32>
    %896 = vector.broadcast %888 : vector<4x1xf32> to vector<4x256xf32>
    %897 = arith.mulf %895, %896 : vector<4x256xf32>
    %898 = arith.addf %886, %897 : vector<4x256xf32>
    %c15_i32_283 = arith.constant 15 : i32
    %899 = vector.broadcast %c15_i32_283 : i32 to vector<1x256xi32>
    %900 = arith.cmpi slt, %16, %899 : vector<1x256xi32>
    %c255_i32_284 = arith.constant 255 : i32
    %901 = tpu.dynamic_rotate %600 by %c255_i32_284 dim 1 : vector<4x256xf32>, i32 -> vector<4x256xf32>
    %cst_285 = arith.constant 0.000000e+00 : f32
    %902 = vector.shape_cast %900 : vector<1x256xi1> to vector<1x256xi1>
    %903 = vector.broadcast %902 : vector<1x256xi1> to vector<4x256xi1>
    %904 = vector.broadcast %cst_285 : f32 to vector<4x256xf32>
    %905 = arith.select %903, %901, %904 : vector<4x256xi1>, vector<4x256xf32>
    %c255_i32_286 = arith.constant 255 : i32
    %906 = tpu.dynamic_rotate %602 by %c255_i32_286 dim 1 : vector<4x256xf32>, i32 -> vector<4x256xf32>
    %cst_287 = arith.constant 0.000000e+00 : f32
    %907 = vector.shape_cast %900 : vector<1x256xi1> to vector<1x256xi1>
    %908 = vector.broadcast %907 : vector<1x256xi1> to vector<4x256xi1>
    %909 = vector.broadcast %cst_287 : f32 to vector<4x256xf32>
    %910 = arith.select %908, %906, %909 : vector<4x256xi1>, vector<4x256xf32>
    %c1_288 = arith.constant 1 : index
    %c20_289 = arith.constant 20 : index
    %c0_290 = arith.constant 0 : index
    %c0_291 = arith.constant 0 : index
    %911 = vector.load %arg1[%c1_288, %c20_289, %c0_290, %c0_291] : memref<2x36x4x1xf32, #tpu.memory_space<vmem>>, vector<1x1x4x1xf32>
    %912 = vector.shape_cast %911 : vector<1x1x4x1xf32> to vector<4x1xf32>
    %913 = vector.extract_strided_slice %905 {offsets = [0, 0], sizes = [1, 256], strides = [1, 1]} : vector<4x256xf32> to vector<1x256xf32>
    %914 = vector.broadcast %913 : vector<1x256xf32> to vector<4x256xf32>
    %915 = vector.broadcast %912 : vector<4x1xf32> to vector<4x256xf32>
    %916 = arith.mulf %914, %915 : vector<4x256xf32>
    %917 = arith.addf %893, %916 : vector<4x256xf32>
    %918 = vector.extract_strided_slice %910 {offsets = [0, 0], sizes = [1, 256], strides = [1, 1]} : vector<4x256xf32> to vector<1x256xf32>
    %919 = vector.broadcast %918 : vector<1x256xf32> to vector<4x256xf32>
    %920 = vector.broadcast %912 : vector<4x1xf32> to vector<4x256xf32>
    %921 = arith.mulf %919, %920 : vector<4x256xf32>
    %922 = arith.addf %898, %921 : vector<4x256xf32>
    %c1_292 = arith.constant 1 : index
    %c21_293 = arith.constant 21 : index
    %c0_294 = arith.constant 0 : index
    %c0_295 = arith.constant 0 : index
    %923 = vector.load %arg1[%c1_292, %c21_293, %c0_294, %c0_295] : memref<2x36x4x1xf32, #tpu.memory_space<vmem>>, vector<1x1x4x1xf32>
    %924 = vector.shape_cast %923 : vector<1x1x4x1xf32> to vector<4x1xf32>
    %925 = vector.extract_strided_slice %905 {offsets = [1, 0], sizes = [1, 256], strides = [1, 1]} : vector<4x256xf32> to vector<1x256xf32>
    %926 = vector.broadcast %925 : vector<1x256xf32> to vector<4x256xf32>
    %927 = vector.broadcast %924 : vector<4x1xf32> to vector<4x256xf32>
    %928 = arith.mulf %926, %927 : vector<4x256xf32>
    %929 = arith.addf %917, %928 : vector<4x256xf32>
    %930 = vector.extract_strided_slice %910 {offsets = [1, 0], sizes = [1, 256], strides = [1, 1]} : vector<4x256xf32> to vector<1x256xf32>
    %931 = vector.broadcast %930 : vector<1x256xf32> to vector<4x256xf32>
    %932 = vector.broadcast %924 : vector<4x1xf32> to vector<4x256xf32>
    %933 = arith.mulf %931, %932 : vector<4x256xf32>
    %934 = arith.addf %922, %933 : vector<4x256xf32>
    %c1_296 = arith.constant 1 : index
    %c22_297 = arith.constant 22 : index
    %c0_298 = arith.constant 0 : index
    %c0_299 = arith.constant 0 : index
    %935 = vector.load %arg1[%c1_296, %c22_297, %c0_298, %c0_299] : memref<2x36x4x1xf32, #tpu.memory_space<vmem>>, vector<1x1x4x1xf32>
    %936 = vector.shape_cast %935 : vector<1x1x4x1xf32> to vector<4x1xf32>
    %937 = vector.extract_strided_slice %905 {offsets = [2, 0], sizes = [1, 256], strides = [1, 1]} : vector<4x256xf32> to vector<1x256xf32>
    %938 = vector.broadcast %937 : vector<1x256xf32> to vector<4x256xf32>
    %939 = vector.broadcast %936 : vector<4x1xf32> to vector<4x256xf32>
    %940 = arith.mulf %938, %939 : vector<4x256xf32>
    %941 = arith.addf %929, %940 : vector<4x256xf32>
    %942 = vector.extract_strided_slice %910 {offsets = [2, 0], sizes = [1, 256], strides = [1, 1]} : vector<4x256xf32> to vector<1x256xf32>
    %943 = vector.broadcast %942 : vector<1x256xf32> to vector<4x256xf32>
    %944 = vector.broadcast %936 : vector<4x1xf32> to vector<4x256xf32>
    %945 = arith.mulf %943, %944 : vector<4x256xf32>
    %946 = arith.addf %934, %945 : vector<4x256xf32>
    %c1_300 = arith.constant 1 : index
    %c23_301 = arith.constant 23 : index
    %c0_302 = arith.constant 0 : index
    %c0_303 = arith.constant 0 : index
    %947 = vector.load %arg1[%c1_300, %c23_301, %c0_302, %c0_303] : memref<2x36x4x1xf32, #tpu.memory_space<vmem>>, vector<1x1x4x1xf32>
    %948 = vector.shape_cast %947 : vector<1x1x4x1xf32> to vector<4x1xf32>
    %949 = vector.extract_strided_slice %905 {offsets = [3, 0], sizes = [1, 256], strides = [1, 1]} : vector<4x256xf32> to vector<1x256xf32>
    %950 = vector.broadcast %949 : vector<1x256xf32> to vector<4x256xf32>
    %951 = vector.broadcast %948 : vector<4x1xf32> to vector<4x256xf32>
    %952 = arith.mulf %950, %951 : vector<4x256xf32>
    %953 = arith.addf %941, %952 : vector<4x256xf32>
    %954 = vector.extract_strided_slice %910 {offsets = [3, 0], sizes = [1, 256], strides = [1, 1]} : vector<4x256xf32> to vector<1x256xf32>
    %955 = vector.broadcast %954 : vector<1x256xf32> to vector<4x256xf32>
    %956 = vector.broadcast %948 : vector<4x1xf32> to vector<4x256xf32>
    %957 = arith.mulf %955, %956 : vector<4x256xf32>
    %958 = arith.addf %946, %957 : vector<4x256xf32>
    %c15_i32_304 = arith.constant 15 : i32
    %959 = vector.broadcast %c15_i32_304 : i32 to vector<1x256xi32>
    %960 = arith.cmpi slt, %14, %959 : vector<1x256xi32>
    %c1_i32_305 = arith.constant 1 : i32
    %961 = vector.broadcast %c1_i32_305 : i32 to vector<1x256xi32>
    %962 = arith.cmpi sge, %16, %961 : vector<1x256xi32>
    %963 = arith.andi %960, %962 : vector<1x256xi1>
    %c241_i32_306 = arith.constant 241 : i32
    %964 = tpu.dynamic_rotate %600 by %c241_i32_306 dim 1 : vector<4x256xf32>, i32 -> vector<4x256xf32>
    %cst_307 = arith.constant 0.000000e+00 : f32
    %965 = vector.shape_cast %963 : vector<1x256xi1> to vector<1x256xi1>
    %966 = vector.broadcast %965 : vector<1x256xi1> to vector<4x256xi1>
    %967 = vector.broadcast %cst_307 : f32 to vector<4x256xf32>
    %968 = arith.select %966, %964, %967 : vector<4x256xi1>, vector<4x256xf32>
    %c241_i32_308 = arith.constant 241 : i32
    %969 = tpu.dynamic_rotate %602 by %c241_i32_308 dim 1 : vector<4x256xf32>, i32 -> vector<4x256xf32>
    %cst_309 = arith.constant 0.000000e+00 : f32
    %970 = vector.shape_cast %963 : vector<1x256xi1> to vector<1x256xi1>
    %971 = vector.broadcast %970 : vector<1x256xi1> to vector<4x256xi1>
    %972 = vector.broadcast %cst_309 : f32 to vector<4x256xf32>
    %973 = arith.select %971, %969, %972 : vector<4x256xi1>, vector<4x256xf32>
    %c1_310 = arith.constant 1 : index
    %c24_311 = arith.constant 24 : index
    %c0_312 = arith.constant 0 : index
    %c0_313 = arith.constant 0 : index
    %974 = vector.load %arg1[%c1_310, %c24_311, %c0_312, %c0_313] : memref<2x36x4x1xf32, #tpu.memory_space<vmem>>, vector<1x1x4x1xf32>
    %975 = vector.shape_cast %974 : vector<1x1x4x1xf32> to vector<4x1xf32>
    %976 = vector.extract_strided_slice %968 {offsets = [0, 0], sizes = [1, 256], strides = [1, 1]} : vector<4x256xf32> to vector<1x256xf32>
    %977 = vector.broadcast %976 : vector<1x256xf32> to vector<4x256xf32>
    %978 = vector.broadcast %975 : vector<4x1xf32> to vector<4x256xf32>
    %979 = arith.mulf %977, %978 : vector<4x256xf32>
    %980 = arith.addf %953, %979 : vector<4x256xf32>
    %981 = vector.extract_strided_slice %973 {offsets = [0, 0], sizes = [1, 256], strides = [1, 1]} : vector<4x256xf32> to vector<1x256xf32>
    %982 = vector.broadcast %981 : vector<1x256xf32> to vector<4x256xf32>
    %983 = vector.broadcast %975 : vector<4x1xf32> to vector<4x256xf32>
    %984 = arith.mulf %982, %983 : vector<4x256xf32>
    %985 = arith.addf %958, %984 : vector<4x256xf32>
    %c1_314 = arith.constant 1 : index
    %c25_315 = arith.constant 25 : index
    %c0_316 = arith.constant 0 : index
    %c0_317 = arith.constant 0 : index
    %986 = vector.load %arg1[%c1_314, %c25_315, %c0_316, %c0_317] : memref<2x36x4x1xf32, #tpu.memory_space<vmem>>, vector<1x1x4x1xf32>
    %987 = vector.shape_cast %986 : vector<1x1x4x1xf32> to vector<4x1xf32>
    %988 = vector.extract_strided_slice %968 {offsets = [1, 0], sizes = [1, 256], strides = [1, 1]} : vector<4x256xf32> to vector<1x256xf32>
    %989 = vector.broadcast %988 : vector<1x256xf32> to vector<4x256xf32>
    %990 = vector.broadcast %987 : vector<4x1xf32> to vector<4x256xf32>
    %991 = arith.mulf %989, %990 : vector<4x256xf32>
    %992 = arith.addf %980, %991 : vector<4x256xf32>
    %993 = vector.extract_strided_slice %973 {offsets = [1, 0], sizes = [1, 256], strides = [1, 1]} : vector<4x256xf32> to vector<1x256xf32>
    %994 = vector.broadcast %993 : vector<1x256xf32> to vector<4x256xf32>
    %995 = vector.broadcast %987 : vector<4x1xf32> to vector<4x256xf32>
    %996 = arith.mulf %994, %995 : vector<4x256xf32>
    %997 = arith.addf %985, %996 : vector<4x256xf32>
    %c1_318 = arith.constant 1 : index
    %c26_319 = arith.constant 26 : index
    %c0_320 = arith.constant 0 : index
    %c0_321 = arith.constant 0 : index
    %998 = vector.load %arg1[%c1_318, %c26_319, %c0_320, %c0_321] : memref<2x36x4x1xf32, #tpu.memory_space<vmem>>, vector<1x1x4x1xf32>
    %999 = vector.shape_cast %998 : vector<1x1x4x1xf32> to vector<4x1xf32>
    %1000 = vector.extract_strided_slice %968 {offsets = [2, 0], sizes = [1, 256], strides = [1, 1]} : vector<4x256xf32> to vector<1x256xf32>
    %1001 = vector.broadcast %1000 : vector<1x256xf32> to vector<4x256xf32>
    %1002 = vector.broadcast %999 : vector<4x1xf32> to vector<4x256xf32>
    %1003 = arith.mulf %1001, %1002 : vector<4x256xf32>
    %1004 = arith.addf %992, %1003 : vector<4x256xf32>
    %1005 = vector.extract_strided_slice %973 {offsets = [2, 0], sizes = [1, 256], strides = [1, 1]} : vector<4x256xf32> to vector<1x256xf32>
    %1006 = vector.broadcast %1005 : vector<1x256xf32> to vector<4x256xf32>
    %1007 = vector.broadcast %999 : vector<4x1xf32> to vector<4x256xf32>
    %1008 = arith.mulf %1006, %1007 : vector<4x256xf32>
    %1009 = arith.addf %997, %1008 : vector<4x256xf32>
    %c1_322 = arith.constant 1 : index
    %c27_323 = arith.constant 27 : index
    %c0_324 = arith.constant 0 : index
    %c0_325 = arith.constant 0 : index
    %1010 = vector.load %arg1[%c1_322, %c27_323, %c0_324, %c0_325] : memref<2x36x4x1xf32, #tpu.memory_space<vmem>>, vector<1x1x4x1xf32>
    %1011 = vector.shape_cast %1010 : vector<1x1x4x1xf32> to vector<4x1xf32>
    %1012 = vector.extract_strided_slice %968 {offsets = [3, 0], sizes = [1, 256], strides = [1, 1]} : vector<4x256xf32> to vector<1x256xf32>
    %1013 = vector.broadcast %1012 : vector<1x256xf32> to vector<4x256xf32>
    %1014 = vector.broadcast %1011 : vector<4x1xf32> to vector<4x256xf32>
    %1015 = arith.mulf %1013, %1014 : vector<4x256xf32>
    %1016 = arith.addf %1004, %1015 : vector<4x256xf32>
    %1017 = vector.extract_strided_slice %973 {offsets = [3, 0], sizes = [1, 256], strides = [1, 1]} : vector<4x256xf32> to vector<1x256xf32>
    %1018 = vector.broadcast %1017 : vector<1x256xf32> to vector<4x256xf32>
    %1019 = vector.broadcast %1011 : vector<4x1xf32> to vector<4x256xf32>
    %1020 = arith.mulf %1018, %1019 : vector<4x256xf32>
    %1021 = arith.addf %1009, %1020 : vector<4x256xf32>
    %c15_i32_326 = arith.constant 15 : i32
    %1022 = vector.broadcast %c15_i32_326 : i32 to vector<1x256xi32>
    %1023 = arith.cmpi slt, %14, %1022 : vector<1x256xi32>
    %c240_i32_327 = arith.constant 240 : i32
    %1024 = tpu.dynamic_rotate %600 by %c240_i32_327 dim 1 : vector<4x256xf32>, i32 -> vector<4x256xf32>
    %cst_328 = arith.constant 0.000000e+00 : f32
    %1025 = vector.shape_cast %1023 : vector<1x256xi1> to vector<1x256xi1>
    %1026 = vector.broadcast %1025 : vector<1x256xi1> to vector<4x256xi1>
    %1027 = vector.broadcast %cst_328 : f32 to vector<4x256xf32>
    %1028 = arith.select %1026, %1024, %1027 : vector<4x256xi1>, vector<4x256xf32>
    %c240_i32_329 = arith.constant 240 : i32
    %1029 = tpu.dynamic_rotate %602 by %c240_i32_329 dim 1 : vector<4x256xf32>, i32 -> vector<4x256xf32>
    %cst_330 = arith.constant 0.000000e+00 : f32
    %1030 = vector.shape_cast %1023 : vector<1x256xi1> to vector<1x256xi1>
    %1031 = vector.broadcast %1030 : vector<1x256xi1> to vector<4x256xi1>
    %1032 = vector.broadcast %cst_330 : f32 to vector<4x256xf32>
    %1033 = arith.select %1031, %1029, %1032 : vector<4x256xi1>, vector<4x256xf32>
    %c1_331 = arith.constant 1 : index
    %c28_332 = arith.constant 28 : index
    %c0_333 = arith.constant 0 : index
    %c0_334 = arith.constant 0 : index
    %1034 = vector.load %arg1[%c1_331, %c28_332, %c0_333, %c0_334] : memref<2x36x4x1xf32, #tpu.memory_space<vmem>>, vector<1x1x4x1xf32>
    %1035 = vector.shape_cast %1034 : vector<1x1x4x1xf32> to vector<4x1xf32>
    %1036 = vector.extract_strided_slice %1028 {offsets = [0, 0], sizes = [1, 256], strides = [1, 1]} : vector<4x256xf32> to vector<1x256xf32>
    %1037 = vector.broadcast %1036 : vector<1x256xf32> to vector<4x256xf32>
    %1038 = vector.broadcast %1035 : vector<4x1xf32> to vector<4x256xf32>
    %1039 = arith.mulf %1037, %1038 : vector<4x256xf32>
    %1040 = arith.addf %1016, %1039 : vector<4x256xf32>
    %1041 = vector.extract_strided_slice %1033 {offsets = [0, 0], sizes = [1, 256], strides = [1, 1]} : vector<4x256xf32> to vector<1x256xf32>
    %1042 = vector.broadcast %1041 : vector<1x256xf32> to vector<4x256xf32>
    %1043 = vector.broadcast %1035 : vector<4x1xf32> to vector<4x256xf32>
    %1044 = arith.mulf %1042, %1043 : vector<4x256xf32>
    %1045 = arith.addf %1021, %1044 : vector<4x256xf32>
    %c1_335 = arith.constant 1 : index
    %c29_336 = arith.constant 29 : index
    %c0_337 = arith.constant 0 : index
    %c0_338 = arith.constant 0 : index
    %1046 = vector.load %arg1[%c1_335, %c29_336, %c0_337, %c0_338] : memref<2x36x4x1xf32, #tpu.memory_space<vmem>>, vector<1x1x4x1xf32>
    %1047 = vector.shape_cast %1046 : vector<1x1x4x1xf32> to vector<4x1xf32>
    %1048 = vector.extract_strided_slice %1028 {offsets = [1, 0], sizes = [1, 256], strides = [1, 1]} : vector<4x256xf32> to vector<1x256xf32>
    %1049 = vector.broadcast %1048 : vector<1x256xf32> to vector<4x256xf32>
    %1050 = vector.broadcast %1047 : vector<4x1xf32> to vector<4x256xf32>
    %1051 = arith.mulf %1049, %1050 : vector<4x256xf32>
    %1052 = arith.addf %1040, %1051 : vector<4x256xf32>
    %1053 = vector.extract_strided_slice %1033 {offsets = [1, 0], sizes = [1, 256], strides = [1, 1]} : vector<4x256xf32> to vector<1x256xf32>
    %1054 = vector.broadcast %1053 : vector<1x256xf32> to vector<4x256xf32>
    %1055 = vector.broadcast %1047 : vector<4x1xf32> to vector<4x256xf32>
    %1056 = arith.mulf %1054, %1055 : vector<4x256xf32>
    %1057 = arith.addf %1045, %1056 : vector<4x256xf32>
    %c1_339 = arith.constant 1 : index
    %c30_340 = arith.constant 30 : index
    %c0_341 = arith.constant 0 : index
    %c0_342 = arith.constant 0 : index
    %1058 = vector.load %arg1[%c1_339, %c30_340, %c0_341, %c0_342] : memref<2x36x4x1xf32, #tpu.memory_space<vmem>>, vector<1x1x4x1xf32>
    %1059 = vector.shape_cast %1058 : vector<1x1x4x1xf32> to vector<4x1xf32>
    %1060 = vector.extract_strided_slice %1028 {offsets = [2, 0], sizes = [1, 256], strides = [1, 1]} : vector<4x256xf32> to vector<1x256xf32>
    %1061 = vector.broadcast %1060 : vector<1x256xf32> to vector<4x256xf32>
    %1062 = vector.broadcast %1059 : vector<4x1xf32> to vector<4x256xf32>
    %1063 = arith.mulf %1061, %1062 : vector<4x256xf32>
    %1064 = arith.addf %1052, %1063 : vector<4x256xf32>
    %1065 = vector.extract_strided_slice %1033 {offsets = [2, 0], sizes = [1, 256], strides = [1, 1]} : vector<4x256xf32> to vector<1x256xf32>
    %1066 = vector.broadcast %1065 : vector<1x256xf32> to vector<4x256xf32>
    %1067 = vector.broadcast %1059 : vector<4x1xf32> to vector<4x256xf32>
    %1068 = arith.mulf %1066, %1067 : vector<4x256xf32>
    %1069 = arith.addf %1057, %1068 : vector<4x256xf32>
    %c1_343 = arith.constant 1 : index
    %c31_344 = arith.constant 31 : index
    %c0_345 = arith.constant 0 : index
    %c0_346 = arith.constant 0 : index
    %1070 = vector.load %arg1[%c1_343, %c31_344, %c0_345, %c0_346] : memref<2x36x4x1xf32, #tpu.memory_space<vmem>>, vector<1x1x4x1xf32>
    %1071 = vector.shape_cast %1070 : vector<1x1x4x1xf32> to vector<4x1xf32>
    %1072 = vector.extract_strided_slice %1028 {offsets = [3, 0], sizes = [1, 256], strides = [1, 1]} : vector<4x256xf32> to vector<1x256xf32>
    %1073 = vector.broadcast %1072 : vector<1x256xf32> to vector<4x256xf32>
    %1074 = vector.broadcast %1071 : vector<4x1xf32> to vector<4x256xf32>
    %1075 = arith.mulf %1073, %1074 : vector<4x256xf32>
    %1076 = arith.addf %1064, %1075 : vector<4x256xf32>
    %1077 = vector.extract_strided_slice %1033 {offsets = [3, 0], sizes = [1, 256], strides = [1, 1]} : vector<4x256xf32> to vector<1x256xf32>
    %1078 = vector.broadcast %1077 : vector<1x256xf32> to vector<4x256xf32>
    %1079 = vector.broadcast %1071 : vector<4x1xf32> to vector<4x256xf32>
    %1080 = arith.mulf %1078, %1079 : vector<4x256xf32>
    %1081 = arith.addf %1069, %1080 : vector<4x256xf32>
    %c15_i32_347 = arith.constant 15 : i32
    %1082 = vector.broadcast %c15_i32_347 : i32 to vector<1x256xi32>
    %1083 = arith.cmpi slt, %14, %1082 : vector<1x256xi32>
    %c15_i32_348 = arith.constant 15 : i32
    %1084 = vector.broadcast %c15_i32_348 : i32 to vector<1x256xi32>
    %1085 = arith.cmpi slt, %16, %1084 : vector<1x256xi32>
    %1086 = arith.andi %1083, %1085 : vector<1x256xi1>
    %c239_i32_349 = arith.constant 239 : i32
    %1087 = tpu.dynamic_rotate %600 by %c239_i32_349 dim 1 : vector<4x256xf32>, i32 -> vector<4x256xf32>
    %cst_350 = arith.constant 0.000000e+00 : f32
    %1088 = vector.shape_cast %1086 : vector<1x256xi1> to vector<1x256xi1>
    %1089 = vector.broadcast %1088 : vector<1x256xi1> to vector<4x256xi1>
    %1090 = vector.broadcast %cst_350 : f32 to vector<4x256xf32>
    %1091 = arith.select %1089, %1087, %1090 : vector<4x256xi1>, vector<4x256xf32>
    %c239_i32_351 = arith.constant 239 : i32
    %1092 = tpu.dynamic_rotate %602 by %c239_i32_351 dim 1 : vector<4x256xf32>, i32 -> vector<4x256xf32>
    %cst_352 = arith.constant 0.000000e+00 : f32
    %1093 = vector.shape_cast %1086 : vector<1x256xi1> to vector<1x256xi1>
    %1094 = vector.broadcast %1093 : vector<1x256xi1> to vector<4x256xi1>
    %1095 = vector.broadcast %cst_352 : f32 to vector<4x256xf32>
    %1096 = arith.select %1094, %1092, %1095 : vector<4x256xi1>, vector<4x256xf32>
    %c1_353 = arith.constant 1 : index
    %c32_354 = arith.constant 32 : index
    %c0_355 = arith.constant 0 : index
    %c0_356 = arith.constant 0 : index
    %1097 = vector.load %arg1[%c1_353, %c32_354, %c0_355, %c0_356] : memref<2x36x4x1xf32, #tpu.memory_space<vmem>>, vector<1x1x4x1xf32>
    %1098 = vector.shape_cast %1097 : vector<1x1x4x1xf32> to vector<4x1xf32>
    %1099 = vector.extract_strided_slice %1091 {offsets = [0, 0], sizes = [1, 256], strides = [1, 1]} : vector<4x256xf32> to vector<1x256xf32>
    %1100 = vector.broadcast %1099 : vector<1x256xf32> to vector<4x256xf32>
    %1101 = vector.broadcast %1098 : vector<4x1xf32> to vector<4x256xf32>
    %1102 = arith.mulf %1100, %1101 : vector<4x256xf32>
    %1103 = arith.addf %1076, %1102 : vector<4x256xf32>
    %1104 = vector.extract_strided_slice %1096 {offsets = [0, 0], sizes = [1, 256], strides = [1, 1]} : vector<4x256xf32> to vector<1x256xf32>
    %1105 = vector.broadcast %1104 : vector<1x256xf32> to vector<4x256xf32>
    %1106 = vector.broadcast %1098 : vector<4x1xf32> to vector<4x256xf32>
    %1107 = arith.mulf %1105, %1106 : vector<4x256xf32>
    %1108 = arith.addf %1081, %1107 : vector<4x256xf32>
    %c1_357 = arith.constant 1 : index
    %c33_358 = arith.constant 33 : index
    %c0_359 = arith.constant 0 : index
    %c0_360 = arith.constant 0 : index
    %1109 = vector.load %arg1[%c1_357, %c33_358, %c0_359, %c0_360] : memref<2x36x4x1xf32, #tpu.memory_space<vmem>>, vector<1x1x4x1xf32>
    %1110 = vector.shape_cast %1109 : vector<1x1x4x1xf32> to vector<4x1xf32>
    %1111 = vector.extract_strided_slice %1091 {offsets = [1, 0], sizes = [1, 256], strides = [1, 1]} : vector<4x256xf32> to vector<1x256xf32>
    %1112 = vector.broadcast %1111 : vector<1x256xf32> to vector<4x256xf32>
    %1113 = vector.broadcast %1110 : vector<4x1xf32> to vector<4x256xf32>
    %1114 = arith.mulf %1112, %1113 : vector<4x256xf32>
    %1115 = arith.addf %1103, %1114 : vector<4x256xf32>
    %1116 = vector.extract_strided_slice %1096 {offsets = [1, 0], sizes = [1, 256], strides = [1, 1]} : vector<4x256xf32> to vector<1x256xf32>
    %1117 = vector.broadcast %1116 : vector<1x256xf32> to vector<4x256xf32>
    %1118 = vector.broadcast %1110 : vector<4x1xf32> to vector<4x256xf32>
    %1119 = arith.mulf %1117, %1118 : vector<4x256xf32>
    %1120 = arith.addf %1108, %1119 : vector<4x256xf32>
    %c1_361 = arith.constant 1 : index
    %c34_362 = arith.constant 34 : index
    %c0_363 = arith.constant 0 : index
    %c0_364 = arith.constant 0 : index
    %1121 = vector.load %arg1[%c1_361, %c34_362, %c0_363, %c0_364] : memref<2x36x4x1xf32, #tpu.memory_space<vmem>>, vector<1x1x4x1xf32>
    %1122 = vector.shape_cast %1121 : vector<1x1x4x1xf32> to vector<4x1xf32>
    %1123 = vector.extract_strided_slice %1091 {offsets = [2, 0], sizes = [1, 256], strides = [1, 1]} : vector<4x256xf32> to vector<1x256xf32>
    %1124 = vector.broadcast %1123 : vector<1x256xf32> to vector<4x256xf32>
    %1125 = vector.broadcast %1122 : vector<4x1xf32> to vector<4x256xf32>
    %1126 = arith.mulf %1124, %1125 : vector<4x256xf32>
    %1127 = arith.addf %1115, %1126 : vector<4x256xf32>
    %1128 = vector.extract_strided_slice %1096 {offsets = [2, 0], sizes = [1, 256], strides = [1, 1]} : vector<4x256xf32> to vector<1x256xf32>
    %1129 = vector.broadcast %1128 : vector<1x256xf32> to vector<4x256xf32>
    %1130 = vector.broadcast %1122 : vector<4x1xf32> to vector<4x256xf32>
    %1131 = arith.mulf %1129, %1130 : vector<4x256xf32>
    %1132 = arith.addf %1120, %1131 : vector<4x256xf32>
    %c1_365 = arith.constant 1 : index
    %c35_366 = arith.constant 35 : index
    %c0_367 = arith.constant 0 : index
    %c0_368 = arith.constant 0 : index
    %1133 = vector.load %arg1[%c1_365, %c35_366, %c0_367, %c0_368] : memref<2x36x4x1xf32, #tpu.memory_space<vmem>>, vector<1x1x4x1xf32>
    %1134 = vector.shape_cast %1133 : vector<1x1x4x1xf32> to vector<4x1xf32>
    %1135 = vector.extract_strided_slice %1091 {offsets = [3, 0], sizes = [1, 256], strides = [1, 1]} : vector<4x256xf32> to vector<1x256xf32>
    %1136 = vector.broadcast %1135 : vector<1x256xf32> to vector<4x256xf32>
    %1137 = vector.broadcast %1134 : vector<4x1xf32> to vector<4x256xf32>
    %1138 = arith.mulf %1136, %1137 : vector<4x256xf32>
    %1139 = arith.addf %1127, %1138 : vector<4x256xf32>
    %1140 = vector.extract_strided_slice %1096 {offsets = [3, 0], sizes = [1, 256], strides = [1, 1]} : vector<4x256xf32> to vector<1x256xf32>
    %1141 = vector.broadcast %1140 : vector<1x256xf32> to vector<4x256xf32>
    %1142 = vector.broadcast %1134 : vector<4x1xf32> to vector<4x256xf32>
    %1143 = arith.mulf %1141, %1142 : vector<4x256xf32>
    %1144 = arith.addf %1132, %1143 : vector<4x256xf32>
    %1145 = vector.broadcast %7 : vector<4x1xf32> to vector<4x256xf32>
    %1146 = arith.addf %1139, %1145 : vector<4x256xf32>
    %1147 = vector.broadcast %7 : vector<4x1xf32> to vector<4x256xf32>
    %1148 = arith.addf %1144, %1147 : vector<4x256xf32>
    %cst_369 = arith.constant dense<0.000000e+00> : vector<4xf32>
    %1149 = vector.multi_reduction <add>, %1146, %cst_369 [1] : vector<4x256xf32> to vector<4xf32>
    %1150 = vector.shape_cast %1149 : vector<4xf32> to vector<4x1xf32>
    %1151 = arith.mulf %1146, %1146 : vector<4x256xf32>
    %cst_370 = arith.constant dense<0.000000e+00> : vector<4xf32>
    %1152 = vector.multi_reduction <add>, %1151, %cst_370 [1] : vector<4x256xf32> to vector<4xf32>
    %1153 = vector.shape_cast %1152 : vector<4xf32> to vector<4x1xf32>
    %cst_371 = arith.constant dense<0.000000e+00> : vector<4xf32>
    %1154 = vector.multi_reduction <add>, %1148, %cst_371 [1] : vector<4x256xf32> to vector<4xf32>
    %1155 = vector.shape_cast %1154 : vector<4xf32> to vector<4x1xf32>
    %1156 = arith.addf %1150, %1155 : vector<4x1xf32>
    %1157 = arith.mulf %1148, %1148 : vector<4x256xf32>
    %cst_372 = arith.constant dense<0.000000e+00> : vector<4xf32>
    %1158 = vector.multi_reduction <add>, %1157, %cst_372 [1] : vector<4x256xf32> to vector<4xf32>
    %1159 = vector.shape_cast %1158 : vector<4xf32> to vector<4x1xf32>
    %1160 = arith.addf %1153, %1159 : vector<4x1xf32>
    %cst_373 = arith.constant 0.001953125 : f32
    %1161 = vector.broadcast %cst_373 : f32 to vector<4x1xf32>
    %1162 = arith.mulf %1156, %1161 : vector<4x1xf32>
    %cst_374 = arith.constant 0.001953125 : f32
    %1163 = vector.broadcast %cst_374 : f32 to vector<4x1xf32>
    %1164 = arith.mulf %1160, %1163 : vector<4x1xf32>
    %1165 = arith.mulf %1162, %1162 : vector<4x1xf32>
    %1166 = arith.subf %1164, %1165 : vector<4x1xf32>
    %cst_375 = arith.constant 9.99999974E-6 : f32
    %1167 = vector.broadcast %cst_375 : f32 to vector<4x1xf32>
    %1168 = arith.addf %1166, %1167 : vector<4x1xf32>
    %1169 = math.rsqrt %1168 : vector<4x1xf32>
    %1170 = arith.mulf %9, %1169 : vector<4x1xf32>
    %1171 = arith.mulf %1162, %1170 : vector<4x1xf32>
    %1172 = arith.subf %11, %1171 : vector<4x1xf32>
    %1173 = vector.broadcast %1170 : vector<4x1xf32> to vector<4x256xf32>
    %1174 = arith.mulf %1146, %1173 : vector<4x256xf32>
    %1175 = vector.broadcast %1172 : vector<4x1xf32> to vector<4x256xf32>
    %1176 = arith.addf %1174, %1175 : vector<4x256xf32>
    %1177 = vector.broadcast %1170 : vector<4x1xf32> to vector<4x256xf32>
    %1178 = arith.mulf %1148, %1177 : vector<4x256xf32>
    %1179 = vector.broadcast %1172 : vector<4x1xf32> to vector<4x256xf32>
    %1180 = arith.addf %1178, %1179 : vector<4x256xf32>
    %1181 = arith.addf %1176, %18 : vector<4x256xf32>
    %cst_376 = arith.constant 0.000000e+00 : f32
    %1182 = vector.broadcast %cst_376 : f32 to vector<4x256xf32>
    %1183 = arith.maximumf %1181, %1182 : vector<4x256xf32>
    %c0_377 = arith.constant 0 : index
    %c0_378 = arith.constant 0 : index
    %c0_379 = arith.constant 0 : index
    %1184 = vector.load %arg3[%c0_377, %c0_378, %c0_379] : memref<2x4x256xf32, #tpu.memory_space<vmem>>, vector<1x4x256xf32>
    %1185 = vector.shape_cast %1184 : vector<1x4x256xf32> to vector<4x256xf32>
    %1186 = vector.shape_cast %1183 : vector<4x256xf32> to vector<1x4x256xf32>
    tpu.vector_store %arg3[%c0_377, %c0_378, %c0_379], %1186 {strides = array<i32>} : memref<2x4x256xf32, #tpu.memory_space<vmem>>, vector<1x4x256xf32>,
    %1187 = arith.addf %1180, %20 : vector<4x256xf32>
    %cst_380 = arith.constant 0.000000e+00 : f32
    %1188 = vector.broadcast %cst_380 : f32 to vector<4x256xf32>
    %1189 = arith.maximumf %1187, %1188 : vector<4x256xf32>
    %c1_381 = arith.constant 1 : index
    %c0_382 = arith.constant 0 : index
    %c0_383 = arith.constant 0 : index
    %1190 = vector.load %arg3[%c1_381, %c0_382, %c0_383] : memref<2x4x256xf32, #tpu.memory_space<vmem>>, vector<1x4x256xf32>
    %1191 = vector.shape_cast %1190 : vector<1x4x256xf32> to vector<4x256xf32>
    %1192 = vector.shape_cast %1189 : vector<4x256xf32> to vector<1x4x256xf32>
    tpu.vector_store %arg3[%c1_381, %c0_382, %c0_383], %1192 {strides = array<i32>} : memref<2x4x256xf32, #tpu.memory_space<vmem>>, vector<1x4x256xf32>,
    return
  }
}

</mosaic_0001>

<llo_original>
// kernel: basic_block_pallas.1
$region0: #{basic_block_pallas.1}
  #allocation0 [shape = 'u32[]', space=smem, size = 0x4, offset = 0x4, fixed_abs, tag = 'smem constant byte address 0x4 - core index']
  #allocation1 [shape = 'u32[144,128]{1,0:T(1,128)}', space=vmem, size = 0x12000, scoped, tag = 'internal scratch']
  %s0 = inlined_call_operand.vmem [shape: f32[2,4,256], index: 0, kind: input, shape index: {}]
  %s1 = inlined_call_operand.vmem [shape: f32[2,36,4,1], index: 1, kind: input, shape index: {}]
  %s2 = inlined_call_operand.vmem [shape: f32[6,4,1], index: 2, kind: input, shape index: {}]
  %s3 = inlined_call_operand.vmem [shape: f32[2,4,256], index: 3, kind: output, shape index: {}]
  %s4 = sld [smem:[#allocation0]]
  $region22: #{basic_block_pallas.1} parent=0
    _
  %s6 = ssub.s32 1, %s4
  %s7 = scalar_select 0, %s6, %s4
  // Predicated region
  $region2: #{basic_block_pallas.1} parent=0 // pred_check
    _
  $region3: #{basic_block_pallas.1} parent=0 // pred_check_branch
    %9 = sbr.rel (0) target = $region5
  $region4: #{basic_block_pallas.1} parent=0 // pred_region
    _
  $region5: #{basic_block_pallas.1} parent=0 // pred_fallthru
    _
  // Predicated region
  $region6: #{basic_block_pallas.1} parent=0 // pred_check
    _
  $region7: #{basic_block_pallas.1} parent=0 // pred_check_branch
    %11 = sbr.rel (0) target = $region9
  $region8: #{basic_block_pallas.1} parent=0 // pred_region
    _
  $region9: #{basic_block_pallas.1} parent=0 // pred_fallthru
    _
  // Predicated region
  $region10: #{basic_block_pallas.1} parent=0 // pred_check
    _
  $region11: #{basic_block_pallas.1} parent=0 // pred_check_branch
    %13 = sbr.rel (0) target = $region13
  $region12: #{basic_block_pallas.1} parent=0 // pred_region
    _
  $region13: #{basic_block_pallas.1} parent=0 // pred_fallthru
    _
  %v14 = vld [vmem:[%s2] sm:$0xf]
  %s15 = scalar_lea.vmem %s2, 4
  %v16 = vld [vmem:[%s15] sm:$0xf]
  %s17 = scalar_lea.vmem %s2, 8
  %v18 = vld [vmem:[%s17] sm:$0xf]
  %s19 = scalar_lea.vmem %s2, 12
  %v20 = vld [vmem:[%s19] sm:$0xf]
  %s21 = scalar_lea.vmem %s2, 16
  %v22 = vld [vmem:[%s21] sm:$0xf]
  %s23 = scalar_lea.vmem %s2, 20
  %v24 = vld [vmem:[%s23] sm:$0xf]
  %v25 = vlaneseq
  %v26 = vand.u32 %v25, 127
  %v27 = vadd.s32 %v26, 128
  %v28 = vshra.s32 %v26, 4
  %v29 = vshra.s32 %v27, 4
  %v30 = vand.u32 %v26, 15
  %v31 = vand.u32 %v27, 15
  %v32 = vld [vmem:[%s0] sm:$0xff]
  %s33 = scalar_lea.vmem %s0, 8
  %v34 = vld [vmem:[%s33] sm:$0xff]
  %vm35 = vcmp.ge.s32.totalorder %v28, 1
  %vm36 = vcmp.ge.s32.totalorder %v29, 1
  %vm37 = vcmp.ge.s32.totalorder %v30, 1
  %vm38 = vcmp.ge.s32.totalorder %v31, 1
  %vm39 = vmand %vm35, %vm37
  %vm40 = vmand %vm36, %vm38
  %v42 = vcombine.high %v32, %v32
  %44 = vrot.lane.b32.xlu0 %v32, 17
  %v45 = vpop.permute.xlu0 %44
  %46 = vrot.lane.b32.xlu0 %v42, 17
  %v47 = vpop.permute.xlu0 %46
  %vm48 = vcmp.lt.s32.totalorder %v26, 17
  %v49 = vsel %vm48, %v45, %v47
  %v50 = vsel %vm48, %v47, %v45
  %v51 = vsel %vm39, 1, 0
  %v52 = vsel %vm40, 1, 0
  %vm53 = vcmp.eq.s32.totalorder %v51, 1
  %vm54 = vcmp.eq.s32.totalorder %v52, 1
  %v55 = vsel %vm53, %v50, 0.0
  %v56 = vsel %vm54, %v49, 0.0
  %v58 = vcombine.high %v34, %v34
  %60 = vrot.lane.b32.xlu0 %v34, 17
  %v61 = vpop.permute.xlu0 %60
  %62 = vrot.lane.b32.xlu0 %v58, 17
  %v63 = vpop.permute.xlu0 %62
  %v64 = vsel %vm48, %v61, %v63
  %v65 = vsel %vm48, %v63, %v61
  %v66 = vsel %vm53, %v65, 0.0
  %v67 = vsel %vm54, %v64, 0.0
  %v68 = vld [vmem:[%s1] sm:$0xf]
  %v69 = vlaneseq
  %v70 = vshrl.u32 %v69, 7
  %v71 = vsub.s32 0, %v70
  %v72 = vrot.slane %v55, %v71
  %v73 = vlaneseq
  %v74 = vshrl.u32 %v73, 7
  %v75 = vsub.s32 0, %v74
  %v76 = vrot.slane %v56, %v75
  %78 = vset.pattern.permute.xlu0 0
  %79 = vperm.xlu0 %78, %v68
  %v80 = vpop.permute.xlu0 %79
  %v82 = vmul.f32 %v72, %v80
  %v83 = vmul.f32 %v76, %v80
  %v84 = vadd.f32 %v82, 0.0
  %v85 = vadd.f32 %v83, 0.0
  %v86 = vlaneseq
  %v87 = vshrl.u32 %v86, 7
  %v88 = vsub.s32 0, %v87
  %v89 = vrot.slane %v66, %v88
  %v90 = vlaneseq
  %v91 = vshrl.u32 %v90, 7
  %v92 = vsub.s32 0, %v91
  %v93 = vrot.slane %v67, %v92
  %v94 = vmul.f32 %v89, %v80
  %v95 = vmul.f32 %v93, %v80
  %v96 = vadd.f32 %v94, 0.0
  %v97 = vadd.f32 %v95, 0.0
  %s98 = scalar_lea.vmem %s1, 4
  %v99 = vld [vmem:[%s98] sm:$0xf]
  %v100 = vlaneseq
  %v101 = vshrl.u32 %v100, 7
  %v102 = vsub.s32 1, %v101
  %v103 = vrot.slane %v55, %v102
  %v104 = vlaneseq
  %v105 = vshrl.u32 %v104, 7
  %v106 = vsub.s32 1, %v105
  %v107 = vrot.slane %v56, %v106
  %109 = vset.pattern.permute.xlu0 0
  %110 = vperm.xlu0 %109, %v99
  %v111 = vpop.permute.xlu0 %110
  %v113 = vmul.f32 %v103, %v111
  %v114 = vmul.f32 %v107, %v111
  %v115 = vadd.f32 %v84, %v113
  %v116 = vadd.f32 %v85, %v114
  %v117 = vlaneseq
  %v118 = vshrl.u32 %v117, 7
  %v119 = vsub.s32 1, %v118
  %v120 = vrot.slane %v66, %v119
  %v121 = vlaneseq
  %v122 = vshrl.u32 %v121, 7
  %v123 = vsub.s32 1, %v122
  %v124 = vrot.slane %v67, %v123
  %v125 = vmul.f32 %v120, %v111
  %v126 = vmul.f32 %v124, %v111
  %v127 = vadd.f32 %v96, %v125
  %v128 = vadd.f32 %v97, %v126
  %s129 = scalar_lea.vmem %s1, 8
  %v130 = vld [vmem:[%s129] sm:$0xf]
  %v131 = vlaneseq
  %v132 = vshrl.u32 %v131, 7
  %v133 = vsub.s32 2, %v132
  %v134 = vrot.slane %v55, %v133
  %v135 = vlaneseq
  %v136 = vshrl.u32 %v135, 7
  %v137 = vsub.s32 2, %v136
  %v138 = vrot.slane %v56, %v137
  %140 = vset.pattern.permute.xlu0 0
  %141 = vperm.xlu0 %140, %v130
  %v142 = vpop.permute.xlu0 %141
  %v144 = vmul.f32 %v134, %v142
  %v145 = vmul.f32 %v138, %v142
  %v146 = vadd.f32 %v115, %v144
  %v147 = vadd.f32 %v116, %v145
  %v148 = vlaneseq
  %v149 = vshrl.u32 %v148, 7
  %v150 = vsub.s32 2, %v149
  %v151 = vrot.slane %v66, %v150
  %v152 = vlaneseq
  %v153 = vshrl.u32 %v152, 7
  %v154 = vsub.s32 2, %v153
  %v155 = vrot.slane %v67, %v154
  %v156 = vmul.f32 %v151, %v142
  %v157 = vmul.f32 %v155, %v142
  %v158 = vadd.f32 %v127, %v156
  %v159 = vadd.f32 %v128, %v157
  %s160 = scalar_lea.vmem %s1, 12
  %v161 = vld [vmem:[%s160] sm:$0xf]
  %v162 = vlaneseq
  %v163 = vshrl.u32 %v162, 7
  %v164 = vsub.s32 3, %v163
  %v165 = vrot.slane %v55, %v164
  %v166 = vlaneseq
  %v167 = vshrl.u32 %v166, 7
  %v168 = vsub.s32 3, %v167
  %v169 = vrot.slane %v56, %v168
  %171 = vset.pattern.permute.xlu0 0
  %172 = vperm.xlu0 %171, %v161
  %v173 = vpop.permute.xlu0 %172
  %v175 = vmul.f32 %v165, %v173
  %v176 = vmul.f32 %v169, %v173
  %v177 = vadd.f32 %v146, %v175
  %v178 = vadd.f32 %v147, %v176
  %v179 = vlaneseq
  %v180 = vshrl.u32 %v179, 7
  %v181 = vsub.s32 3, %v180
  %v182 = vrot.slane %v66, %v181
  %v183 = vlaneseq
  %v184 = vshrl.u32 %v183, 7
  %v185 = vsub.s32 3, %v184
  %v186 = vrot.slane %v67, %v185
  %v187 = vmul.f32 %v182, %v173
  %v188 = vmul.f32 %v186, %v173
  %v189 = vadd.f32 %v158, %v187
  %v190 = vadd.f32 %v159, %v188
  %191 = vrot.lane.b32.xlu0 %v32, 16
  %v192 = vpop.permute.xlu0 %191
  %193 = vrot.lane.b32.xlu0 %v42, 16
  %v194 = vpop.permute.xlu0 %193
  %vm195 = vcmp.lt.s32.totalorder %v26, 16
  %v196 = vsel %vm195, %v192, %v194
  %v197 = vsel %vm195, %v194, %v192
  %v198 = vsel %vm35, 1, 0
  %v199 = vsel %vm36, 1, 0
  %vm200 = vcmp.eq.s32.totalorder %v198, 1
  %vm201 = vcmp.eq.s32.totalorder %v199, 1
  %v202 = vsel %vm200, %v197, 0.0
  %v203 = vsel %vm201, %v196, 0.0
  %204 = vrot.lane.b32.xlu0 %v34, 16
  %v205 = vpop.permute.xlu0 %204
  %206 = vrot.lane.b32.xlu0 %v58, 16
  %v207 = vpop.permute.xlu0 %206
  %v208 = vsel %vm195, %v205, %v207
  %v209 = vsel %vm195, %v207, %v205
  %v210 = vsel %vm200, %v209, 0.0
  %v211 = vsel %vm201, %v208, 0.0
  %s212 = scalar_lea.vmem %s1, 16
  %v213 = vld [vmem:[%s212] sm:$0xf]
  %v214 = vlaneseq
  %v215 = vshrl.u32 %v214, 7
  %v216 = vsub.s32 0, %v215
  %v217 = vrot.slane %v202, %v216
  %v218 = vlaneseq
  %v219 = vshrl.u32 %v218, 7
  %v220 = vsub.s32 0, %v219
  %v221 = vrot.slane %v203, %v220
  %223 = vset.pattern.permute.xlu0 0
  %224 = vperm.xlu0 %223, %v213
  %v225 = vpop.permute.xlu0 %224
  %v227 = vmul.f32 %v217, %v225
  %v228 = vmul.f32 %v221, %v225
  %v229 = vadd.f32 %v177, %v227
  %v230 = vadd.f32 %v178, %v228
  %v231 = vlaneseq
  %v232 = vshrl.u32 %v231, 7
  %v233 = vsub.s32 0, %v232
  %v234 = vrot.slane %v210, %v233
  %v235 = vlaneseq
  %v236 = vshrl.u32 %v235, 7
  %v237 = vsub.s32 0, %v236
  %v238 = vrot.slane %v211, %v237
  %v239 = vmul.f32 %v234, %v225
  %v240 = vmul.f32 %v238, %v225
  %v241 = vadd.f32 %v189, %v239
  %v242 = vadd.f32 %v190, %v240
  %s243 = scalar_lea.vmem %s1, 20
  %v244 = vld [vmem:[%s243] sm:$0xf]
  %v245 = vlaneseq
  %v246 = vshrl.u32 %v245, 7
  %v247 = vsub.s32 1, %v246
  %v248 = vrot.slane %v202, %v247
  %v249 = vlaneseq
  %v250 = vshrl.u32 %v249, 7
  %v251 = vsub.s32 1, %v250
  %v252 = vrot.slane %v203, %v251
  %254 = vset.pattern.permute.xlu0 0
  %255 = vperm.xlu0 %254, %v244
  %v256 = vpop.permute.xlu0 %255
  %v258 = vmul.f32 %v248, %v256
  %v259 = vmul.f32 %v252, %v256
  %v260 = vadd.f32 %v229, %v258
  %v261 = vadd.f32 %v230, %v259
  %v262 = vlaneseq
  %v263 = vshrl.u32 %v262, 7
  %v264 = vsub.s32 1, %v263
  %v265 = vrot.slane %v210, %v264
  %v266 = vlaneseq
  %v267 = vshrl.u32 %v266, 7
  %v268 = vsub.s32 1, %v267
  %v269 = vrot.slane %v211, %v268
  %v270 = vmul.f32 %v265, %v256
  %v271 = vmul.f32 %v269, %v256
  %v272 = vadd.f32 %v241, %v270
  %v273 = vadd.f32 %v242, %v271
  %s274 = scalar_lea.vmem %s1, 24
  %v275 = vld [vmem:[%s274] sm:$0xf]
  %v276 = vlaneseq
  %v277 = vshrl.u32 %v276, 7
  %v278 = vsub.s32 2, %v277
  %v279 = vrot.slane %v202, %v278
  %v280 = vlaneseq
  %v281 = vshrl.u32 %v280, 7
  %v282 = vsub.s32 2, %v281
  %v283 = vrot.slane %v203, %v282
  %285 = vset.pattern.permute.xlu0 0
  %286 = vperm.xlu0 %285, %v275
  %v287 = vpop.permute.xlu0 %286
  %v289 = vmul.f32 %v279, %v287
  %v290 = vmul.f32 %v283, %v287
  %v291 = vadd.f32 %v260, %v289
  %v292 = vadd.f32 %v261, %v290
  %v293 = vlaneseq
  %v294 = vshrl.u32 %v293, 7
  %v295 = vsub.s32 2, %v294
  %v296 = vrot.slane %v210, %v295
  %v297 = vlaneseq
  %v298 = vshrl.u32 %v297, 7
  %v299 = vsub.s32 2, %v298
  %v300 = vrot.slane %v211, %v299
  %v301 = vmul.f32 %v296, %v287
  %v302 = vmul.f32 %v300, %v287
  %v303 = vadd.f32 %v272, %v301
  %v304 = vadd.f32 %v273, %v302
  %s305 = scalar_lea.vmem %s1, 28
  %v306 = vld [vmem:[%s305] sm:$0xf]
  %v307 = vlaneseq
  %v308 = vshrl.u32 %v307, 7
  %v309 = vsub.s32 3, %v308
  %v310 = vrot.slane %v202, %v309
  %v311 = vlaneseq
  %v312 = vshrl.u32 %v311, 7
  %v313 = vsub.s32 3, %v312
  %v314 = vrot.slane %v203, %v313
  %316 = vset.pattern.permute.xlu0 0
  %317 = vperm.xlu0 %316, %v306
  %v318 = vpop.permute.xlu0 %317
  %v320 = vmul.f32 %v310, %v318
  %v321 = vmul.f32 %v314, %v318
  %v322 = vadd.f32 %v291, %v320
  %v323 = vadd.f32 %v292, %v321
  %v324 = vlaneseq
  %v325 = vshrl.u32 %v324, 7
  %v326 = vsub.s32 3, %v325
  %v327 = vrot.slane %v210, %v326
  %v328 = vlaneseq
  %v329 = vshrl.u32 %v328, 7
  %v330 = vsub.s32 3, %v329
  %v331 = vrot.slane %v211, %v330
  %v332 = vmul.f32 %v327, %v318
  %v333 = vmul.f32 %v331, %v318
  %v334 = vadd.f32 %v303, %v332
  %v335 = vadd.f32 %v304, %v333
  %vm336 = vcmp.lt.s32.totalorder %v30, 15
  %vm337 = vcmp.lt.s32.totalorder %v31, 15
  %vm338 = vmand %vm35, %vm336
  %vm339 = vmand %vm36, %vm337
  %340 = vrot.lane.b32.xlu0 %v32, 15
  %v341 = vpop.permute.xlu0 %340
  %342 = vrot.lane.b32.xlu0 %v42, 15
  %v343 = vpop.permute.xlu0 %342
  %vm344 = vcmp.lt.s32.totalorder %v26, 15
  %v345 = vsel %vm344, %v341, %v343
  %v346 = vsel %vm344, %v343, %v341
  %v347 = vsel %vm338, 1, 0
  %v348 = vsel %vm339, 1, 0
  %vm349 = vcmp.eq.s32.totalorder %v347, 1
  %vm350 = vcmp.eq.s32.totalorder %v348, 1
  %v351 = vsel %vm349, %v346, 0.0
  %v352 = vsel %vm350, %v345, 0.0
  %353 = vrot.lane.b32.xlu0 %v34, 15
  %v354 = vpop.permute.xlu0 %353
  %355 = vrot.lane.b32.xlu0 %v58, 15
  %v356 = vpop.permute.xlu0 %355
  %v357 = vsel %vm344, %v354, %v356
  %v358 = vsel %vm344, %v356, %v354
  %v359 = vsel %vm349, %v358, 0.0
  %v360 = vsel %vm350, %v357, 0.0
  %s361 = scalar_lea.vmem %s1, 32
  %v362 = vld [vmem:[%s361] sm:$0xf]
  %v363 = vlaneseq
  %v364 = vshrl.u32 %v363, 7
  %v365 = vsub.s32 0, %v364
  %v366 = vrot.slane %v351, %v365
  %v367 = vlaneseq
  %v368 = vshrl.u32 %v367, 7
  %v369 = vsub.s32 0, %v368
  %v370 = vrot.slane %v352, %v369
  %372 = vset.pattern.permute.xlu0 0
  %373 = vperm.xlu0 %372, %v362
  %v374 = vpop.permute.xlu0 %373
  %v376 = vmul.f32 %v366, %v374
  %v377 = vmul.f32 %v370, %v374
  %v378 = vadd.f32 %v322, %v376
  %v379 = vadd.f32 %v323, %v377
  %v380 = vlaneseq
  %v381 = vshrl.u32 %v380, 7
  %v382 = vsub.s32 0, %v381
  %v383 = vrot.slane %v359, %v382
  %v384 = vlaneseq
  %v385 = vshrl.u32 %v384, 7
  %v386 = vsub.s32 0, %v385
  %v387 = vrot.slane %v360, %v386
  %v388 = vmul.f32 %v383, %v374
  %v389 = vmul.f32 %v387, %v374
  %v390 = vadd.f32 %v334, %v388
  %v391 = vadd.f32 %v335, %v389
  %s392 = scalar_lea.vmem %s1, 36
  %v393 = vld [vmem:[%s392] sm:$0xf]
  %v394 = vlaneseq
  %v395 = vshrl.u32 %v394, 7
  %v396 = vsub.s32 1, %v395
  %v397 = vrot.slane %v351, %v396
  %v398 = vlaneseq
  %v399 = vshrl.u32 %v398, 7
  %v400 = vsub.s32 1, %v399
  %v401 = vrot.slane %v352, %v400
  %403 = vset.pattern.permute.xlu0 0
  %404 = vperm.xlu0 %403, %v393
  %v405 = vpop.permute.xlu0 %404
  %v407 = vmul.f32 %v397, %v405
  %v408 = vmul.f32 %v401, %v405
  %v409 = vadd.f32 %v378, %v407
  %v410 = vadd.f32 %v379, %v408
  %v411 = vlaneseq
  %v412 = vshrl.u32 %v411, 7
  %v413 = vsub.s32 1, %v412
  %v414 = vrot.slane %v359, %v413
  %v415 = vlaneseq
  %v416 = vshrl.u32 %v415, 7
  %v417 = vsub.s32 1, %v416
  %v418 = vrot.slane %v360, %v417
  %v419 = vmul.f32 %v414, %v405
  %v420 = vmul.f32 %v418, %v405
  %v421 = vadd.f32 %v390, %v419
  %v422 = vadd.f32 %v391, %v420
  %s423 = scalar_lea.vmem %s1, 40
  %v424 = vld [vmem:[%s423] sm:$0xf]
  %v425 = vlaneseq
  %v426 = vshrl.u32 %v425, 7
  %v427 = vsub.s32 2, %v426
  %v428 = vrot.slane %v351, %v427
  %v429 = vlaneseq
  %v430 = vshrl.u32 %v429, 7
  %v431 = vsub.s32 2, %v430
  %v432 = vrot.slane %v352, %v431
  %434 = vset.pattern.permute.xlu0 0
  %435 = vperm.xlu0 %434, %v424
  %v436 = vpop.permute.xlu0 %435
  %v438 = vmul.f32 %v428, %v436
  %v439 = vmul.f32 %v432, %v436
  %v440 = vadd.f32 %v409, %v438
  %v441 = vadd.f32 %v410, %v439
  %v442 = vlaneseq
  %v443 = vshrl.u32 %v442, 7
  %v444 = vsub.s32 2, %v443
  %v445 = vrot.slane %v359, %v444
  %v446 = vlaneseq
  %v447 = vshrl.u32 %v446, 7
  %v448 = vsub.s32 2, %v447
  %v449 = vrot.slane %v360, %v448
  %v450 = vmul.f32 %v445, %v436
  %v451 = vmul.f32 %v449, %v436
  %v452 = vadd.f32 %v421, %v450
  %v453 = vadd.f32 %v422, %v451
  %s454 = scalar_lea.vmem %s1, 44
  %v455 = vld [vmem:[%s454] sm:$0xf]
  %v456 = vlaneseq
  %v457 = vshrl.u32 %v456, 7
  %v458 = vsub.s32 3, %v457
  %v459 = vrot.slane %v351, %v458
  %v460 = vlaneseq
  %v461 = vshrl.u32 %v460, 7
  %v462 = vsub.s32 3, %v461
  %v463 = vrot.slane %v352, %v462
  %465 = vset.pattern.permute.xlu0 0
  %466 = vperm.xlu0 %465, %v455
  %v467 = vpop.permute.xlu0 %466
  %v469 = vmul.f32 %v459, %v467
  %v470 = vmul.f32 %v463, %v467
  %v471 = vadd.f32 %v440, %v469
  %v472 = vadd.f32 %v441, %v470
  %v473 = vlaneseq
  %v474 = vshrl.u32 %v473, 7
  %v475 = vsub.s32 3, %v474
  %v476 = vrot.slane %v359, %v475
  %v477 = vlaneseq
  %v478 = vshrl.u32 %v477, 7
  %v479 = vsub.s32 3, %v478
  %v480 = vrot.slane %v360, %v479
  %v481 = vmul.f32 %v476, %v467
  %v482 = vmul.f32 %v480, %v467
  %v483 = vadd.f32 %v452, %v481
  %v484 = vadd.f32 %v453, %v482
  %485 = vrot.lane.b32.xlu0 %v32, 1
  %v486 = vpop.permute.xlu0 %485
  %487 = vrot.lane.b32.xlu0 %v42, 1
  %v488 = vpop.permute.xlu0 %487
  %vm489 = vcmp.lt.s32.totalorder %v26, 1
  %v490 = vsel %vm489, %v486, %v488
  %v491 = vsel %vm489, %v488, %v486
  %v492 = vsel %vm37, 1, 0
  %v493 = vsel %vm38, 1, 0
  %vm494 = vcmp.eq.s32.totalorder %v492, 1
  %vm495 = vcmp.eq.s32.totalorder %v493, 1
  %v496 = vsel %vm494, %v491, 0.0
  %v497 = vsel %vm495, %v490, 0.0
  %498 = vrot.lane.b32.xlu0 %v34, 1
  %v499 = vpop.permute.xlu0 %498
  %500 = vrot.lane.b32.xlu0 %v58, 1
  %v501 = vpop.permute.xlu0 %500
  %v502 = vsel %vm489, %v499, %v501
  %v503 = vsel %vm489, %v501, %v499
  %v504 = vsel %vm494, %v503, 0.0
  %v505 = vsel %vm495, %v502, 0.0
  %s506 = scalar_lea.vmem %s1, 48
  %v507 = vld [vmem:[%s506] sm:$0xf]
  %v508 = vlaneseq
  %v509 = vshrl.u32 %v508, 7
  %v510 = vsub.s32 0, %v509
  %v511 = vrot.slane %v496, %v510
  %v512 = vlaneseq
  %v513 = vshrl.u32 %v512, 7
  %v514 = vsub.s32 0, %v513
  %v515 = vrot.slane %v497, %v514
  %517 = vset.pattern.permute.xlu0 0
  %518 = vperm.xlu0 %517, %v507
  %v519 = vpop.permute.xlu0 %518
  %v521 = vmul.f32 %v511, %v519
  %v522 = vmul.f32 %v515, %v519
  %v523 = vadd.f32 %v471, %v521
  %v524 = vadd.f32 %v472, %v522
  %v525 = vlaneseq
  %v526 = vshrl.u32 %v525, 7
  %v527 = vsub.s32 0, %v526
  %v528 = vrot.slane %v504, %v527
  %v529 = vlaneseq
  %v530 = vshrl.u32 %v529, 7
  %v531 = vsub.s32 0, %v530
  %v532 = vrot.slane %v505, %v531
  %v533 = vmul.f32 %v528, %v519
  %v534 = vmul.f32 %v532, %v519
  %v535 = vadd.f32 %v483, %v533
  %v536 = vadd.f32 %v484, %v534
  %s537 = scalar_lea.vmem %s1, 52
  %v538 = vld [vmem:[%s537] sm:$0xf]
  %v539 = vlaneseq
  %v540 = vshrl.u32 %v539, 7
  %v541 = vsub.s32 1, %v540
  %v542 = vrot.slane %v496, %v541
  %v543 = vlaneseq
  %v544 = vshrl.u32 %v543, 7
  %v545 = vsub.s32 1, %v544
  %v546 = vrot.slane %v497, %v545
  %548 = vset.pattern.permute.xlu0 0
  %549 = vperm.xlu0 %548, %v538
  %v550 = vpop.permute.xlu0 %549
  %v552 = vmul.f32 %v542, %v550
  %v553 = vmul.f32 %v546, %v550
  %v554 = vadd.f32 %v523, %v552
  %v555 = vadd.f32 %v524, %v553
  %v556 = vlaneseq
  %v557 = vshrl.u32 %v556, 7
  %v558 = vsub.s32 1, %v557
  %v559 = vrot.slane %v504, %v558
  %v560 = vlaneseq
  %v561 = vshrl.u32 %v560, 7
  %v562 = vsub.s32 1, %v561
  %v563 = vrot.slane %v505, %v562
  %v564 = vmul.f32 %v559, %v550
  %v565 = vmul.f32 %v563, %v550
  %v566 = vadd.f32 %v535, %v564
  %v567 = vadd.f32 %v536, %v565
  %s568 = scalar_lea.vmem %s1, 56
  %v569 = vld [vmem:[%s568] sm:$0xf]
  %v570 = vlaneseq
  %v571 = vshrl.u32 %v570, 7
  %v572 = vsub.s32 2, %v571
  %v573 = vrot.slane %v496, %v572
  %v574 = vlaneseq
  %v575 = vshrl.u32 %v574, 7
  %v576 = vsub.s32 2, %v575
  %v577 = vrot.slane %v497, %v576
  %579 = vset.pattern.permute.xlu0 0
  %580 = vperm.xlu0 %579, %v569
  %v581 = vpop.permute.xlu0 %580
  %v583 = vmul.f32 %v573, %v581
  %v584 = vmul.f32 %v577, %v581
  %v585 = vadd.f32 %v554, %v583
  %v586 = vadd.f32 %v555, %v584
  %v587 = vlaneseq
  %v588 = vshrl.u32 %v587, 7
  %v589 = vsub.s32 2, %v588
  %v590 = vrot.slane %v504, %v589
  %v591 = vlaneseq
  %v592 = vshrl.u32 %v591, 7
  %v593 = vsub.s32 2, %v592
  %v594 = vrot.slane %v505, %v593
  %v595 = vmul.f32 %v590, %v581
  %v596 = vmul.f32 %v594, %v581
  %v597 = vadd.f32 %v566, %v595
  %v598 = vadd.f32 %v567, %v596
  %s599 = scalar_lea.vmem %s1, 60
  %v600 = vld [vmem:[%s599] sm:$0xf]
  %v601 = vlaneseq
  %v602 = vshrl.u32 %v601, 7
  %v603 = vsub.s32 3, %v602
  %v604 = vrot.slane %v496, %v603
  %v605 = vlaneseq
  %v606 = vshrl.u32 %v605, 7
  %v607 = vsub.s32 3, %v606
  %v608 = vrot.slane %v497, %v607
  %610 = vset.pattern.permute.xlu0 0
  %611 = vperm.xlu0 %610, %v600
  %v612 = vpop.permute.xlu0 %611
  %v614 = vmul.f32 %v604, %v612
  %v615 = vmul.f32 %v608, %v612
  %v616 = vadd.f32 %v585, %v614
  %v617 = vadd.f32 %v586, %v615
  %v618 = vlaneseq
  %v619 = vshrl.u32 %v618, 7
  %v620 = vsub.s32 3, %v619
  %v621 = vrot.slane %v504, %v620
  %v622 = vlaneseq
  %v623 = vshrl.u32 %v622, 7
  %v624 = vsub.s32 3, %v623
  %v625 = vrot.slane %v505, %v624
  %v626 = vmul.f32 %v621, %v612
  %v627 = vmul.f32 %v625, %v612
  %v628 = vadd.f32 %v597, %v626
  %v629 = vadd.f32 %v598, %v627
  %s630 = scalar_lea.vmem %s1, 64
  %v631 = vld [vmem:[%s630] sm:$0xf]
  %v632 = vlaneseq
  %v633 = vshrl.u32 %v632, 7
  %v634 = vsub.s32 0, %v633
  %v635 = vrot.slane %v32, %v634
  %v636 = vlaneseq
  %v637 = vshrl.u32 %v636, 7
  %v638 = vsub.s32 4, %v637
  %v639 = vrot.slane %v32, %v638
  %v642 = vlaneseq
  %v643 = vshrl.u32 %v642, 7
  %v644 = vsub.s32 0, %v643
  %v645 = vrot.slane %v635, %v644
  %v646 = vlaneseq
  %v647 = vshrl.u32 %v646, 7
  %v648 = vsub.s32 0, %v647
  %v649 = vrot.slane %v639, %v648
  %651 = vset.pattern.permute.xlu0 0
  %652 = vperm.xlu0 %651, %v631
  %v653 = vpop.permute.xlu0 %652
  %v655 = vmul.f32 %v645, %v653
  %v656 = vmul.f32 %v649, %v653
  %v657 = vadd.f32 %v616, %v655
  %v658 = vadd.f32 %v617, %v656
  %v659 = vlaneseq
  %v660 = vshrl.u32 %v659, 7
  %v661 = vsub.s32 0, %v660
  %v662 = vrot.slane %v34, %v661
  %v663 = vlaneseq
  %v664 = vshrl.u32 %v663, 7
  %v665 = vsub.s32 4, %v664
  %v666 = vrot.slane %v34, %v665
  %v669 = vlaneseq
  %v670 = vshrl.u32 %v669, 7
  %v671 = vsub.s32 0, %v670
  %v672 = vrot.slane %v662, %v671
  %v673 = vlaneseq
  %v674 = vshrl.u32 %v673, 7
  %v675 = vsub.s32 0, %v674
  %v676 = vrot.slane %v666, %v675
  %v677 = vmul.f32 %v672, %v653
  %v678 = vmul.f32 %v676, %v653
  %v679 = vadd.f32 %v628, %v677
  %v680 = vadd.f32 %v629, %v678
  %s681 = scalar_lea.vmem %s1, 68
  %v682 = vld [vmem:[%s681] sm:$0xf]
  %v683 = vlaneseq
  %v684 = vshrl.u32 %v683, 7
  %v685 = vsub.s32 1, %v684
  %v686 = vrot.slane %v32, %v685
  %v687 = vlaneseq
  %v688 = vshrl.u32 %v687, 7
  %v689 = vsub.s32 5, %v688
  %v690 = vrot.slane %v32, %v689
  %v693 = vlaneseq
  %v694 = vshrl.u32 %v693, 7
  %v695 = vsub.s32 1, %v694
  %v696 = vrot.slane %v686, %v695
  %v697 = vlaneseq
  %v698 = vshrl.u32 %v697, 7
  %v699 = vsub.s32 1, %v698
  %v700 = vrot.slane %v690, %v699
  %702 = vset.pattern.permute.xlu0 0
  %703 = vperm.xlu0 %702, %v682
  %v704 = vpop.permute.xlu0 %703
  %v706 = vmul.f32 %v696, %v704
  %v707 = vmul.f32 %v700, %v704
  %v708 = vadd.f32 %v657, %v706
  %v709 = vadd.f32 %v658, %v707
  %v710 = vlaneseq
  %v711 = vshrl.u32 %v710, 7
  %v712 = vsub.s32 1, %v711
  %v713 = vrot.slane %v34, %v712
  %v714 = vlaneseq
  %v715 = vshrl.u32 %v714, 7
  %v716 = vsub.s32 5, %v715
  %v717 = vrot.slane %v34, %v716
  %v720 = vlaneseq
  %v721 = vshrl.u32 %v720, 7
  %v722 = vsub.s32 1, %v721
  %v723 = vrot.slane %v713, %v722
  %v724 = vlaneseq
  %v725 = vshrl.u32 %v724, 7
  %v726 = vsub.s32 1, %v725
  %v727 = vrot.slane %v717, %v726
  %v728 = vmul.f32 %v723, %v704
  %v729 = vmul.f32 %v727, %v704
  %v730 = vadd.f32 %v679, %v728
  %v731 = vadd.f32 %v680, %v729
  %s732 = scalar_lea.vmem %s1, 72
  %v733 = vld [vmem:[%s732] sm:$0xf]
  %v734 = vlaneseq
  %v735 = vshrl.u32 %v734, 7
  %v736 = vsub.s32 2, %v735
  %v737 = vrot.slane %v32, %v736
  %v738 = vlaneseq
  %v739 = vshrl.u32 %v738, 7
  %v740 = vsub.s32 6, %v739
  %v741 = vrot.slane %v32, %v740
  %v744 = vlaneseq
  %v745 = vshrl.u32 %v744, 7
  %v746 = vsub.s32 2, %v745
  %v747 = vrot.slane %v737, %v746
  %v748 = vlaneseq
  %v749 = vshrl.u32 %v748, 7
  %v750 = vsub.s32 2, %v749
  %v751 = vrot.slane %v741, %v750
  %753 = vset.pattern.permute.xlu0 0
  %754 = vperm.xlu0 %753, %v733
  %v755 = vpop.permute.xlu0 %754
  %v757 = vmul.f32 %v747, %v755
  %v758 = vmul.f32 %v751, %v755
  %v759 = vadd.f32 %v708, %v757
  %v760 = vadd.f32 %v709, %v758
  %v761 = vlaneseq
  %v762 = vshrl.u32 %v761, 7
  %v763 = vsub.s32 2, %v762
  %v764 = vrot.slane %v34, %v763
  %v765 = vlaneseq
  %v766 = vshrl.u32 %v765, 7
  %v767 = vsub.s32 6, %v766
  %v768 = vrot.slane %v34, %v767
  %v771 = vlaneseq
  %v772 = vshrl.u32 %v771, 7
  %v773 = vsub.s32 2, %v772
  %v774 = vrot.slane %v764, %v773
  %v775 = vlaneseq
  %v776 = vshrl.u32 %v775, 7
  %v777 = vsub.s32 2, %v776
  %v778 = vrot.slane %v768, %v777
  %v779 = vmul.f32 %v774, %v755
  %v780 = vmul.f32 %v778, %v755
  %v781 = vadd.f32 %v730, %v779
  %v782 = vadd.f32 %v731, %v780
  %s783 = scalar_lea.vmem %s1, 76
  %v784 = vld [vmem:[%s783] sm:$0xf]
  %v785 = vlaneseq
  %v786 = vshrl.u32 %v785, 7
  %v787 = vsub.s32 3, %v786
  %v788 = vrot.slane %v32, %v787
  %v789 = vlaneseq
  %v790 = vshrl.u32 %v789, 7
  %v791 = vsub.s32 7, %v790
  %v792 = vrot.slane %v32, %v791
  %v795 = vlaneseq
  %v796 = vshrl.u32 %v795, 7
  %v797 = vsub.s32 3, %v796
  %v798 = vrot.slane %v788, %v797
  %v799 = vlaneseq
  %v800 = vshrl.u32 %v799, 7
  %v801 = vsub.s32 3, %v800
  %v802 = vrot.slane %v792, %v801
  %804 = vset.pattern.permute.xlu0 0
  %805 = vperm.xlu0 %804, %v784
  %v806 = vpop.permute.xlu0 %805
  %v808 = vmul.f32 %v798, %v806
  %v809 = vmul.f32 %v802, %v806
  %v810 = vadd.f32 %v759, %v808
  %v811 = vadd.f32 %v760, %v809
  %v812 = vlaneseq
  %v813 = vshrl.u32 %v812, 7
  %v814 = vsub.s32 3, %v813
  %v815 = vrot.slane %v34, %v814
  %v816 = vlaneseq
  %v817 = vshrl.u32 %v816, 7
  %v818 = vsub.s32 7, %v817
  %v819 = vrot.slane %v34, %v818
  %v822 = vlaneseq
  %v823 = vshrl.u32 %v822, 7
  %v824 = vsub.s32 3, %v823
  %v825 = vrot.slane %v815, %v824
  %v826 = vlaneseq
  %v827 = vshrl.u32 %v826, 7
  %v828 = vsub.s32 3, %v827
  %v829 = vrot.slane %v819, %v828
  %v830 = vmul.f32 %v825, %v806
  %v831 = vmul.f32 %v829, %v806
  %v832 = vadd.f32 %v781, %v830
  %v833 = vadd.f32 %v782, %v831
  %834 = vrot.lane.b32.xlu0 %v32, 127
  %v835 = vpop.permute.xlu0 %834
  %836 = vrot.lane.b32.xlu0 %v42, 127
  %v837 = vpop.permute.xlu0 %836
  %vm838 = vcmp.lt.s32.totalorder %v26, 127
  %v839 = vsel %vm838, %v835, %v837
  %v840 = vsel %vm838, %v837, %v835
  %v841 = vsel %vm336, 1, 0
  %v842 = vsel %vm337, 1, 0
  %vm843 = vcmp.eq.s32.totalorder %v841, 1
  %vm844 = vcmp.eq.s32.totalorder %v842, 1
  %v845 = vsel %vm843, %v839, 0.0
  %v846 = vsel %vm844, %v840, 0.0
  %847 = vrot.lane.b32.xlu0 %v34, 127
  %v848 = vpop.permute.xlu0 %847
  %849 = vrot.lane.b32.xlu0 %v58, 127
  %v850 = vpop.permute.xlu0 %849
  %v851 = vsel %vm838, %v848, %v850
  %v852 = vsel %vm838, %v850, %v848
  %v853 = vsel %vm843, %v851, 0.0
  %v854 = vsel %vm844, %v852, 0.0
  %s855 = scalar_lea.vmem %s1, 80
  %v856 = vld [vmem:[%s855] sm:$0xf]
  %v857 = vlaneseq
  %v858 = vshrl.u32 %v857, 7
  %v859 = vsub.s32 0, %v858
  %v860 = vrot.slane %v845, %v859
  %v861 = vlaneseq
  %v862 = vshrl.u32 %v861, 7
  %v863 = vsub.s32 0, %v862
  %v864 = vrot.slane %v846, %v863
  %866 = vset.pattern.permute.xlu0 0
  %867 = vperm.xlu0 %866, %v856
  %v868 = vpop.permute.xlu0 %867
  %v870 = vmul.f32 %v860, %v868
  %v871 = vmul.f32 %v864, %v868
  %v872 = vadd.f32 %v810, %v870
  %v873 = vadd.f32 %v811, %v871
  %v874 = vlaneseq
  %v875 = vshrl.u32 %v874, 7
  %v876 = vsub.s32 0, %v875
  %v877 = vrot.slane %v853, %v876
  %v878 = vlaneseq
  %v879 = vshrl.u32 %v878, 7
  %v880 = vsub.s32 0, %v879
  %v881 = vrot.slane %v854, %v880
  %v882 = vmul.f32 %v877, %v868
  %v883 = vmul.f32 %v881, %v868
  %v884 = vadd.f32 %v832, %v882
  %v885 = vadd.f32 %v833, %v883
  %s886 = scalar_lea.vmem %s1, 84
  %v887 = vld [vmem:[%s886] sm:$0xf]
  %v888 = vlaneseq
  %v889 = vshrl.u32 %v888, 7
  %v890 = vsub.s32 1, %v889
  %v891 = vrot.slane %v845, %v890
  %v892 = vlaneseq
  %v893 = vshrl.u32 %v892, 7
  %v894 = vsub.s32 1, %v893
  %v895 = vrot.slane %v846, %v894
  %897 = vset.pattern.permute.xlu0 0
  %898 = vperm.xlu0 %897, %v887
  %v899 = vpop.permute.xlu0 %898
  %v901 = vmul.f32 %v891, %v899
  %v902 = vmul.f32 %v895, %v899
  %v903 = vadd.f32 %v872, %v901
  %v904 = vadd.f32 %v873, %v902
  %v905 = vlaneseq
  %v906 = vshrl.u32 %v905, 7
  %v907 = vsub.s32 1, %v906
  %v908 = vrot.slane %v853, %v907
  %v909 = vlaneseq
  %v910 = vshrl.u32 %v909, 7
  %v911 = vsub.s32 1, %v910
  %v912 = vrot.slane %v854, %v911
  %v913 = vmul.f32 %v908, %v899
  %v914 = vmul.f32 %v912, %v899
  %v915 = vadd.f32 %v884, %v913
  %v916 = vadd.f32 %v885, %v914
  %s917 = scalar_lea.vmem %s1, 88
  %v918 = vld [vmem:[%s917] sm:$0xf]
  %v919 = vlaneseq
  %v920 = vshrl.u32 %v919, 7
  %v921 = vsub.s32 2, %v920
  %v922 = vrot.slane %v845, %v921
  %v923 = vlaneseq
  %v924 = vshrl.u32 %v923, 7
  %v925 = vsub.s32 2, %v924
  %v926 = vrot.slane %v846, %v925
  %928 = vset.pattern.permute.xlu0 0
  %929 = vperm.xlu0 %928, %v918
  %v930 = vpop.permute.xlu0 %929
  %v932 = vmul.f32 %v922, %v930
  %v933 = vmul.f32 %v926, %v930
  %v934 = vadd.f32 %v903, %v932
  %v935 = vadd.f32 %v904, %v933
  %v936 = vlaneseq
  %v937 = vshrl.u32 %v936, 7
  %v938 = vsub.s32 2, %v937
  %v939 = vrot.slane %v853, %v938
  %v940 = vlaneseq
  %v941 = vshrl.u32 %v940, 7
  %v942 = vsub.s32 2, %v941
  %v943 = vrot.slane %v854, %v942
  %v944 = vmul.f32 %v939, %v930
  %v945 = vmul.f32 %v943, %v930
  %v946 = vadd.f32 %v915, %v944
  %v947 = vadd.f32 %v916, %v945
  %s948 = scalar_lea.vmem %s1, 92
  %v949 = vld [vmem:[%s948] sm:$0xf]
  %v950 = vlaneseq
  %v951 = vshrl.u32 %v950, 7
  %v952 = vsub.s32 3, %v951
  %v953 = vrot.slane %v845, %v952
  %v954 = vlaneseq
  %v955 = vshrl.u32 %v954, 7
  %v956 = vsub.s32 3, %v955
  %v957 = vrot.slane %v846, %v956
  %959 = vset.pattern.permute.xlu0 0
  %960 = vperm.xlu0 %959, %v949
  %v961 = vpop.permute.xlu0 %960
  %v963 = vmul.f32 %v953, %v961
  %v964 = vmul.f32 %v957, %v961
  %v965 = vadd.f32 %v934, %v963
  %v966 = vadd.f32 %v935, %v964
  %v967 = vlaneseq
  %v968 = vshrl.u32 %v967, 7
  %v969 = vsub.s32 3, %v968
  %v970 = vrot.slane %v853, %v969
  %v971 = vlaneseq
  %v972 = vshrl.u32 %v971, 7
  %v973 = vsub.s32 3, %v972
  %v974 = vrot.slane %v854, %v973
  %v975 = vmul.f32 %v970, %v961
  %v976 = vmul.f32 %v974, %v961
  %v977 = vadd.f32 %v946, %v975
  %v978 = vadd.f32 %v947, %v976
  %vm979 = vcmp.lt.s32.totalorder %v28, 15
  %vm980 = vcmp.lt.s32.totalorder %v29, 15
  %vm981 = vmand %vm979, %vm37
  %vm982 = vmand %vm980, %vm38
  %983 = vrot.lane.b32.xlu0 %v32, 113
  %v984 = vpop.permute.xlu0 %983
  %985 = vrot.lane.b32.xlu0 %v42, 113
  %v986 = vpop.permute.xlu0 %985
  %vm987 = vcmp.lt.s32.totalorder %v26, 113
  %v988 = vsel %vm987, %v984, %v986
  %v989 = vsel %vm987, %v986, %v984
  %v990 = vsel %vm981, 1, 0
  %v991 = vsel %vm982, 1, 0
  %vm992 = vcmp.eq.s32.totalorder %v990, 1
  %vm993 = vcmp.eq.s32.totalorder %v991, 1
  %v994 = vsel %vm992, %v988, 0.0
  %v995 = vsel %vm993, %v989, 0.0
  %996 = vrot.lane.b32.xlu0 %v34, 113
  %v997 = vpop.permute.xlu0 %996
  %998 = vrot.lane.b32.xlu0 %v58, 113
  %v999 = vpop.permute.xlu0 %998
  %v1000 = vsel %vm987, %v997, %v999
  %v1001 = vsel %vm987, %v999, %v997
  %v1002 = vsel %vm992, %v1000, 0.0
  %v1003 = vsel %vm993, %v1001, 0.0
  %s1004 = scalar_lea.vmem %s1, 96
  %v1005 = vld [vmem:[%s1004] sm:$0xf]
  %v1006 = vlaneseq
  %v1007 = vshrl.u32 %v1006, 7
  %v1008 = vsub.s32 0, %v1007
  %v1009 = vrot.slane %v994, %v1008
  %v1010 = vlaneseq
  %v1011 = vshrl.u32 %v1010, 7
  %v1012 = vsub.s32 0, %v1011
  %v1013 = vrot.slane %v995, %v1012
  %1015 = vset.pattern.permute.xlu0 0
  %1016 = vperm.xlu0 %1015, %v1005
  %v1017 = vpop.permute.xlu0 %1016
  %v1019 = vmul.f32 %v1009, %v1017
  %v1020 = vmul.f32 %v1013, %v1017
  %v1021 = vadd.f32 %v965, %v1019
  %v1022 = vadd.f32 %v966, %v1020
  %v1023 = vlaneseq
  %v1024 = vshrl.u32 %v1023, 7
  %v1025 = vsub.s32 0, %v1024
  %v1026 = vrot.slane %v1002, %v1025
  %v1027 = vlaneseq
  %v1028 = vshrl.u32 %v1027, 7
  %v1029 = vsub.s32 0, %v1028
  %v1030 = vrot.slane %v1003, %v1029
  %v1031 = vmul.f32 %v1026, %v1017
  %v1032 = vmul.f32 %v1030, %v1017
  %v1033 = vadd.f32 %v977, %v1031
  %v1034 = vadd.f32 %v978, %v1032
  %s1035 = scalar_lea.vmem %s1, 100
  %v1036 = vld [vmem:[%s1035] sm:$0xf]
  %v1037 = vlaneseq
  %v1038 = vshrl.u32 %v1037, 7
  %v1039 = vsub.s32 1, %v1038
  %v1040 = vrot.slane %v994, %v1039
  %v1041 = vlaneseq
  %v1042 = vshrl.u32 %v1041, 7
  %v1043 = vsub.s32 1, %v1042
  %v1044 = vrot.slane %v995, %v1043
  %1046 = vset.pattern.permute.xlu0 0
  %1047 = vperm.xlu0 %1046, %v1036
  %v1048 = vpop.permute.xlu0 %1047
  %v1050 = vmul.f32 %v1040, %v1048
  %v1051 = vmul.f32 %v1044, %v1048
  %v1052 = vadd.f32 %v1021, %v1050
  %v1053 = vadd.f32 %v1022, %v1051
  %v1054 = vlaneseq
  %v1055 = vshrl.u32 %v1054, 7
  %v1056 = vsub.s32 1, %v1055
  %v1057 = vrot.slane %v1002, %v1056
  %v1058 = vlaneseq
  %v1059 = vshrl.u32 %v1058, 7
  %v1060 = vsub.s32 1, %v1059
  %v1061 = vrot.slane %v1003, %v1060
  %v1062 = vmul.f32 %v1057, %v1048
  %v1063 = vmul.f32 %v1061, %v1048
  %v1064 = vadd.f32 %v1033, %v1062
  %v1065 = vadd.f32 %v1034, %v1063
  %s1066 = scalar_lea.vmem %s1, 104
  %v1067 = vld [vmem:[%s1066] sm:$0xf]
  %v1068 = vlaneseq
  %v1069 = vshrl.u32 %v1068, 7
  %v1070 = vsub.s32 2, %v1069
  %v1071 = vrot.slane %v994, %v1070
  %v1072 = vlaneseq
  %v1073 = vshrl.u32 %v1072, 7
  %v1074 = vsub.s32 2, %v1073
  %v1075 = vrot.slane %v995, %v1074
  %1077 = vset.pattern.permute.xlu0 0
  %1078 = vperm.xlu0 %1077, %v1067
  %v1079 = vpop.permute.xlu0 %1078
  %v1081 = vmul.f32 %v1071, %v1079
  %v1082 = vmul.f32 %v1075, %v1079
  %v1083 = vadd.f32 %v1052, %v1081
  %v1084 = vadd.f32 %v1053, %v1082
  %v1085 = vlaneseq
  %v1086 = vshrl.u32 %v1085, 7
  %v1087 = vsub.s32 2, %v1086
  %v1088 = vrot.slane %v1002, %v1087
  %v1089 = vlaneseq
  %v1090 = vshrl.u32 %v1089, 7
  %v1091 = vsub.s32 2, %v1090
  %v1092 = vrot.slane %v1003, %v1091
  %v1093 = vmul.f32 %v1088, %v1079
  %v1094 = vmul.f32 %v1092, %v1079
  %v1095 = vadd.f32 %v1064, %v1093
  %v1096 = vadd.f32 %v1065, %v1094
  %s1097 = scalar_lea.vmem %s1, 108
  %v1098 = vld [vmem:[%s1097] sm:$0xf]
  %v1099 = vlaneseq
  %v1100 = vshrl.u32 %v1099, 7
  %v1101 = vsub.s32 3, %v1100
  %v1102 = vrot.slane %v994, %v1101
  %v1103 = vlaneseq
  %v1104 = vshrl.u32 %v1103, 7
  %v1105 = vsub.s32 3, %v1104
  %v1106 = vrot.slane %v995, %v1105
  %1108 = vset.pattern.permute.xlu0 0
  %1109 = vperm.xlu0 %1108, %v1098
  %v1110 = vpop.permute.xlu0 %1109
  %v1112 = vmul.f32 %v1102, %v1110
  %v1113 = vmul.f32 %v1106, %v1110
  %v1114 = vadd.f32 %v1083, %v1112
  %v1115 = vadd.f32 %v1084, %v1113
  %v1116 = vlaneseq
  %v1117 = vshrl.u32 %v1116, 7
  %v1118 = vsub.s32 3, %v1117
  %v1119 = vrot.slane %v1002, %v1118
  %v1120 = vlaneseq
  %v1121 = vshrl.u32 %v1120, 7
  %v1122 = vsub.s32 3, %v1121
  %v1123 = vrot.slane %v1003, %v1122
  %v1124 = vmul.f32 %v1119, %v1110
  %v1125 = vmul.f32 %v1123, %v1110
  %v1126 = vadd.f32 %v1095, %v1124
  %v1127 = vadd.f32 %v1096, %v1125
  %1128 = vrot.lane.b32.xlu0 %v32, 112
  %v1129 = vpop.permute.xlu0 %1128
  %1130 = vrot.lane.b32.xlu0 %v42, 112
  %v1131 = vpop.permute.xlu0 %1130
  %vm1132 = vcmp.lt.s32.totalorder %v26, 112
  %v1133 = vsel %vm1132, %v1129, %v1131
  %v1134 = vsel %vm1132, %v1131, %v1129
  %v1135 = vsel %vm979, 1, 0
  %v1136 = vsel %vm980, 1, 0
  %vm1137 = vcmp.eq.s32.totalorder %v1135, 1
  %vm1138 = vcmp.eq.s32.totalorder %v1136, 1
  %v1139 = vsel %vm1137, %v1133, 0.0
  %v1140 = vsel %vm1138, %v1134, 0.0
  %1141 = vrot.lane.b32.xlu0 %v34, 112
  %v1142 = vpop.permute.xlu0 %1141
  %1143 = vrot.lane.b32.xlu0 %v58, 112
  %v1144 = vpop.permute.xlu0 %1143
  %v1145 = vsel %vm1132, %v1142, %v1144
  %v1146 = vsel %vm1132, %v1144, %v1142
  %v1147 = vsel %vm1137, %v1145, 0.0
  %v1148 = vsel %vm1138, %v1146, 0.0
  %s1149 = scalar_lea.vmem %s1, 112
  %v1150 = vld [vmem:[%s1149] sm:$0xf]
  %v1151 = vlaneseq
  %v1152 = vshrl.u32 %v1151, 7
  %v1153 = vsub.s32 0, %v1152
  %v1154 = vrot.slane %v1139, %v1153
  %v1155 = vlaneseq
  %v1156 = vshrl.u32 %v1155, 7
  %v1157 = vsub.s32 0, %v1156
  %v1158 = vrot.slane %v1140, %v1157
  %1160 = vset.pattern.permute.xlu0 0
  %1161 = vperm.xlu0 %1160, %v1150
  %v1162 = vpop.permute.xlu0 %1161
  %v1164 = vmul.f32 %v1154, %v1162
  %v1165 = vmul.f32 %v1158, %v1162
  %v1166 = vadd.f32 %v1114, %v1164
  %v1167 = vadd.f32 %v1115, %v1165
  %v1168 = vlaneseq
  %v1169 = vshrl.u32 %v1168, 7
  %v1170 = vsub.s32 0, %v1169
  %v1171 = vrot.slane %v1147, %v1170
  %v1172 = vlaneseq
  %v1173 = vshrl.u32 %v1172, 7
  %v1174 = vsub.s32 0, %v1173
  %v1175 = vrot.slane %v1148, %v1174
  %v1176 = vmul.f32 %v1171, %v1162
  %v1177 = vmul.f32 %v1175, %v1162
  %v1178 = vadd.f32 %v1126, %v1176
  %v1179 = vadd.f32 %v1127, %v1177
  %s1180 = scalar_lea.vmem %s1, 116
  %v1181 = vld [vmem:[%s1180] sm:$0xf]
  %v1182 = vlaneseq
  %v1183 = vshrl.u32 %v1182, 7
  %v1184 = vsub.s32 1, %v1183
  %v1185 = vrot.slane %v1139, %v1184
  %v1186 = vlaneseq
  %v1187 = vshrl.u32 %v1186, 7
  %v1188 = vsub.s32 1, %v1187
  %v1189 = vrot.slane %v1140, %v1188
  %1191 = vset.pattern.permute.xlu0 0
  %1192 = vperm.xlu0 %1191, %v1181
  %v1193 = vpop.permute.xlu0 %1192
  %v1195 = vmul.f32 %v1185, %v1193
  %v1196 = vmul.f32 %v1189, %v1193
  %v1197 = vadd.f32 %v1166, %v1195
  %v1198 = vadd.f32 %v1167, %v1196
  %v1199 = vlaneseq
  %v1200 = vshrl.u32 %v1199, 7
  %v1201 = vsub.s32 1, %v1200
  %v1202 = vrot.slane %v1147, %v1201
  %v1203 = vlaneseq
  %v1204 = vshrl.u32 %v1203, 7
  %v1205 = vsub.s32 1, %v1204
  %v1206 = vrot.slane %v1148, %v1205
  %v1207 = vmul.f32 %v1202, %v1193
  %v1208 = vmul.f32 %v1206, %v1193
  %v1209 = vadd.f32 %v1178, %v1207
  %v1210 = vadd.f32 %v1179, %v1208
  %s1211 = scalar_lea.vmem %s1, 120
  %v1212 = vld [vmem:[%s1211] sm:$0xf]
  %v1213 = vlaneseq
  %v1214 = vshrl.u32 %v1213, 7
  %v1215 = vsub.s32 2, %v1214
  %v1216 = vrot.slane %v1139, %v1215
  %v1217 = vlaneseq
  %v1218 = vshrl.u32 %v1217, 7
  %v1219 = vsub.s32 2, %v1218
  %v1220 = vrot.slane %v1140, %v1219
  %1222 = vset.pattern.permute.xlu0 0
  %1223 = vperm.xlu0 %1222, %v1212
  %v1224 = vpop.permute.xlu0 %1223
  %v1226 = vmul.f32 %v1216, %v1224
  %v1227 = vmul.f32 %v1220, %v1224
  %v1228 = vadd.f32 %v1197, %v1226
  %v1229 = vadd.f32 %v1198, %v1227
  %v1230 = vlaneseq
  %v1231 = vshrl.u32 %v1230, 7
  %v1232 = vsub.s32 2, %v1231
  %v1233 = vrot.slane %v1147, %v1232
  %v1234 = vlaneseq
  %v1235 = vshrl.u32 %v1234, 7
  %v1236 = vsub.s32 2, %v1235
  %v1237 = vrot.slane %v1148, %v1236
  %v1238 = vmul.f32 %v1233, %v1224
  %v1239 = vmul.f32 %v1237, %v1224
  %v1240 = vadd.f32 %v1209, %v1238
  %v1241 = vadd.f32 %v1210, %v1239
  %s1242 = scalar_lea.vmem %s1, 124
  %v1243 = vld [vmem:[%s1242] sm:$0xf]
  %v1244 = vlaneseq
  %v1245 = vshrl.u32 %v1244, 7
  %v1246 = vsub.s32 3, %v1245
  %v1247 = vrot.slane %v1139, %v1246
  %v1248 = vlaneseq
  %v1249 = vshrl.u32 %v1248, 7
  %v1250 = vsub.s32 3, %v1249
  %v1251 = vrot.slane %v1140, %v1250
  %1253 = vset.pattern.permute.xlu0 0
  %1254 = vperm.xlu0 %1253, %v1243
  %v1255 = vpop.permute.xlu0 %1254
  %v1257 = vmul.f32 %v1247, %v1255
  %v1258 = vmul.f32 %v1251, %v1255
  %v1259 = vadd.f32 %v1228, %v1257
  %v1260 = vadd.f32 %v1229, %v1258
  %v1261 = vlaneseq
  %v1262 = vshrl.u32 %v1261, 7
  %v1263 = vsub.s32 3, %v1262
  %v1264 = vrot.slane %v1147, %v1263
  %v1265 = vlaneseq
  %v1266 = vshrl.u32 %v1265, 7
  %v1267 = vsub.s32 3, %v1266
  %v1268 = vrot.slane %v1148, %v1267
  %v1269 = vmul.f32 %v1264, %v1255
  %v1270 = vmul.f32 %v1268, %v1255
  %v1271 = vadd.f32 %v1240, %v1269
  %v1272 = vadd.f32 %v1241, %v1270
  %vm1273 = vmand %vm979, %vm336
  %vm1274 = vmand %vm980, %vm337
  %1275 = vrot.lane.b32.xlu0 %v32, 111
  %v1276 = vpop.permute.xlu0 %1275
  %1277 = vrot.lane.b32.xlu0 %v42, 111
  %v1278 = vpop.permute.xlu0 %1277
  %vm1279 = vcmp.lt.s32.totalorder %v26, 111
  %v1280 = vsel %vm1279, %v1276, %v1278
  %v1281 = vsel %vm1279, %v1278, %v1276
  %v1282 = vsel %vm1273, 1, 0
  %v1283 = vsel %vm1274, 1, 0
  %vm1284 = vcmp.eq.s32.totalorder %v1282, 1
  %vm1285 = vcmp.eq.s32.totalorder %v1283, 1
  %v1286 = vsel %vm1284, %v1280, 0.0
  %v1287 = vsel %vm1285, %v1281, 0.0
  %1288 = vrot.lane.b32.xlu0 %v34, 111
  %v1289 = vpop.permute.xlu0 %1288
  %1290 = vrot.lane.b32.xlu0 %v58, 111
  %v1291 = vpop.permute.xlu0 %1290
  %v1292 = vsel %vm1279, %v1289, %v1291
  %v1293 = vsel %vm1279, %v1291, %v1289
  %v1294 = vsel %vm1284, %v1292, 0.0
  %v1295 = vsel %vm1285, %v1293, 0.0
  %s1296 = scalar_lea.vmem %s1, 128
  %v1297 = vld [vmem:[%s1296] sm:$0xf]
  %v1298 = vlaneseq
  %v1299 = vshrl.u32 %v1298, 7
  %v1300 = vsub.s32 0, %v1299
  %v1301 = vrot.slane %v1286, %v1300
  %v1302 = vlaneseq
  %v1303 = vshrl.u32 %v1302, 7
  %v1304 = vsub.s32 0, %v1303
  %v1305 = vrot.slane %v1287, %v1304
  %1307 = vset.pattern.permute.xlu0 0
  %1308 = vperm.xlu0 %1307, %v1297
  %v1309 = vpop.permute.xlu0 %1308
  %v1311 = vmul.f32 %v1301, %v1309
  %v1312 = vmul.f32 %v1305, %v1309
  %v1313 = vadd.f32 %v1259, %v1311
  %v1314 = vadd.f32 %v1260, %v1312
  %v1315 = vlaneseq
  %v1316 = vshrl.u32 %v1315, 7
  %v1317 = vsub.s32 0, %v1316
  %v1318 = vrot.slane %v1294, %v1317
  %v1319 = vlaneseq
  %v1320 = vshrl.u32 %v1319, 7
  %v1321 = vsub.s32 0, %v1320
  %v1322 = vrot.slane %v1295, %v1321
  %v1323 = vmul.f32 %v1318, %v1309
  %v1324 = vmul.f32 %v1322, %v1309
  %v1325 = vadd.f32 %v1271, %v1323
  %v1326 = vadd.f32 %v1272, %v1324
  %s1327 = scalar_lea.vmem %s1, 132
  %v1328 = vld [vmem:[%s1327] sm:$0xf]
  %v1329 = vlaneseq
  %v1330 = vshrl.u32 %v1329, 7
  %v1331 = vsub.s32 1, %v1330
  %v1332 = vrot.slane %v1286, %v1331
  %v1333 = vlaneseq
  %v1334 = vshrl.u32 %v1333, 7
  %v1335 = vsub.s32 1, %v1334
  %v1336 = vrot.slane %v1287, %v1335
  %1338 = vset.pattern.permute.xlu0 0
  %1339 = vperm.xlu0 %1338, %v1328
  %v1340 = vpop.permute.xlu0 %1339
  %v1342 = vmul.f32 %v1332, %v1340
  %v1343 = vmul.f32 %v1336, %v1340
  %v1344 = vadd.f32 %v1313, %v1342
  %v1345 = vadd.f32 %v1314, %v1343
  %v1346 = vlaneseq
  %v1347 = vshrl.u32 %v1346, 7
  %v1348 = vsub.s32 1, %v1347
  %v1349 = vrot.slane %v1294, %v1348
  %v1350 = vlaneseq
  %v1351 = vshrl.u32 %v1350, 7
  %v1352 = vsub.s32 1, %v1351
  %v1353 = vrot.slane %v1295, %v1352
  %v1354 = vmul.f32 %v1349, %v1340
  %v1355 = vmul.f32 %v1353, %v1340
  %v1356 = vadd.f32 %v1325, %v1354
  %v1357 = vadd.f32 %v1326, %v1355
  %s1358 = scalar_lea.vmem %s1, 136
  %v1359 = vld [vmem:[%s1358] sm:$0xf]
  %v1360 = vlaneseq
  %v1361 = vshrl.u32 %v1360, 7
  %v1362 = vsub.s32 2, %v1361
  %v1363 = vrot.slane %v1286, %v1362
  %v1364 = vlaneseq
  %v1365 = vshrl.u32 %v1364, 7
  %v1366 = vsub.s32 2, %v1365
  %v1367 = vrot.slane %v1287, %v1366
  %1369 = vset.pattern.permute.xlu0 0
  %1370 = vperm.xlu0 %1369, %v1359
  %v1371 = vpop.permute.xlu0 %1370
  %v1373 = vmul.f32 %v1363, %v1371
  %v1374 = vmul.f32 %v1367, %v1371
  %v1375 = vadd.f32 %v1344, %v1373
  %v1376 = vadd.f32 %v1345, %v1374
  %v1377 = vlaneseq
  %v1378 = vshrl.u32 %v1377, 7
  %v1379 = vsub.s32 2, %v1378
  %v1380 = vrot.slane %v1294, %v1379
  %v1381 = vlaneseq
  %v1382 = vshrl.u32 %v1381, 7
  %v1383 = vsub.s32 2, %v1382
  %v1384 = vrot.slane %v1295, %v1383
  %v1385 = vmul.f32 %v1380, %v1371
  %v1386 = vmul.f32 %v1384, %v1371
  %v1387 = vadd.f32 %v1356, %v1385
  %v1388 = vadd.f32 %v1357, %v1386
  %s1389 = scalar_lea.vmem %s1, 140
  %v1390 = vld [vmem:[%s1389] sm:$0xf]
  %v1391 = vlaneseq
  %v1392 = vshrl.u32 %v1391, 7
  %v1393 = vsub.s32 3, %v1392
  %v1394 = vrot.slane %v1286, %v1393
  %v1395 = vlaneseq
  %v1396 = vshrl.u32 %v1395, 7
  %v1397 = vsub.s32 3, %v1396
  %v1398 = vrot.slane %v1287, %v1397
  %1400 = vset.pattern.permute.xlu0 0
  %1401 = vperm.xlu0 %1400, %v1390
  %v1402 = vpop.permute.xlu0 %1401
  %v1404 = vmul.f32 %v1394, %v1402
  %v1405 = vmul.f32 %v1398, %v1402
  %v1406 = vadd.f32 %v1375, %v1404
  %v1407 = vadd.f32 %v1376, %v1405
  %v1408 = vlaneseq
  %v1409 = vshrl.u32 %v1408, 7
  %v1410 = vsub.s32 3, %v1409
  %v1411 = vrot.slane %v1294, %v1410
  %v1412 = vlaneseq
  %v1413 = vshrl.u32 %v1412, 7
  %v1414 = vsub.s32 3, %v1413
  %v1415 = vrot.slane %v1295, %v1414
  %v1416 = vmul.f32 %v1411, %v1402
  %v1417 = vmul.f32 %v1415, %v1402
  %v1418 = vadd.f32 %v1387, %v1416
  %v1419 = vadd.f32 %v1388, %v1417
  %1421 = vset.pattern.permute.xlu0 0
  %1422 = vperm.xlu0 %1421, %v14
  %v1423 = vpop.permute.xlu0 %1422
  %v1425 = vadd.f32 %v1406, %v1423
  %v1426 = vadd.f32 %v1407, %v1423
  %v1427 = vadd.f32 %v1418, %v1423
  %v1428 = vadd.f32 %v1419, %v1423
  %vm1429 = vcmask 1043456
  %v1430 = vsel %vm1429, %v1425, 0.0
  %v1431 = vsel %vm1429, %v1426, 0.0
  %v1432 = vadd.f32 %v1430, %v1431
  %1433 = vadd.xlane.f32.xlu0 %v1432
  %v1434 = vpop.xlane.xlu0 %1433
  %v1435 = vmul.f32 %v1425, %v1425
  %v1436 = vmul.f32 %v1426, %v1426
  %v1437 = vsel %vm1429, %v1435, 0.0
  %v1438 = vsel %vm1429, %v1436, 0.0
  %v1439 = vadd.f32 %v1437, %v1438
  %1440 = vadd.xlane.f32.xlu0 %v1439
  %v1441 = vpop.xlane.xlu0 %1440
  %v1442 = vsel %vm1429, %v1427, 0.0
  %v1443 = vsel %vm1429, %v1428, 0.0
  %v1444 = vadd.f32 %v1442, %v1443
  %1445 = vadd.xlane.f32.xlu0 %v1444
  %v1446 = vpop.xlane.xlu0 %1445
  %v1447 = vadd.f32 %v1434, %v1446
  %v1448 = vmul.f32 %v1427, %v1427
  %v1449 = vmul.f32 %v1428, %v1428
  %v1450 = vsel %vm1429, %v1448, 0.0
  %v1451 = vsel %vm1429, %v1449, 0.0
  %v1452 = vadd.f32 %v1450, %v1451
  %1453 = vadd.xlane.f32.xlu0 %v1452
  %v1454 = vpop.xlane.xlu0 %1453
  %v1455 = vadd.f32 %v1441, %v1454
  %v1456 = vmul.f32 %v1447, 0.001953125
  %v1457 = vmul.f32 %v1455, 0.001953125
  %v1458 = vmul.f32 %v1456, %v1456
  %v1459 = vsub.f32 %v1457, %v1458
  %v1460 = vadd.f32 %v1459, 1e-05
  %v1461 = vrsqrt.pop %v1460
  %v1462 = vmul.f32 %v16, %v1461
  %v1463 = vmul.f32 %v1456, %v1462
  %v1464 = vsub.f32 %v18, %v1463
  %1466 = vset.pattern.permute.xlu0 0
  %1467 = vperm.xlu0 %1466, %v1462
  %v1468 = vpop.permute.xlu0 %1467
  %v1470 = vmul.f32 %v1425, %v1468
  %v1471 = vmul.f32 %v1426, %v1468
  %1473 = vset.pattern.permute.xlu0 0
  %1474 = vperm.xlu0 %1473, %v1464
  %v1475 = vpop.permute.xlu0 %1474
  %v1477 = vadd.f32 %v1470, %v1475
  %v1478 = vadd.f32 %v1471, %v1475
  %v1479 = vmul.f32 %v1427, %v1468
  %v1480 = vmul.f32 %v1428, %v1468
  %v1481 = vadd.f32 %v1479, %v1475
  %v1482 = vadd.f32 %v1480, %v1475
  %v1483 = vmax.f32 %v1477, 0.0
  %v1484 = vmax.f32 %v1478, 0.0
  %v1485 = vmax.f32 %v1481, 0.0
  %v1486 = vmax.f32 %v1482, 0.0
  %1487 = vrot.lane.b32.xlu0 %v1483, 17
  %v1488 = vpop.permute.xlu0 %1487
  %1489 = vrot.lane.b32.xlu0 %v1484, 17
  %v1490 = vpop.permute.xlu0 %1489
  %v1491 = vsel %vm48, %v1488, %v1490
  %v1492 = vsel %vm48, %v1490, %v1488
  %v1493 = vsel %vm53, %v1492, 0.0
  %v1494 = vsel %vm54, %v1491, 0.0
  %1495 = vrot.lane.b32.xlu0 %v1485, 17
  %v1496 = vpop.permute.xlu0 %1495
  %1497 = vrot.lane.b32.xlu0 %v1486, 17
  %v1498 = vpop.permute.xlu0 %1497
  %v1499 = vsel %vm48, %v1496, %v1498
  %v1500 = vsel %vm48, %v1498, %v1496
  %v1501 = vsel %vm53, %v1500, 0.0
  %v1502 = vsel %vm54, %v1499, 0.0
  %s1503 = scalar_lea.vmem %s1, 144
  %v1504 = vld [vmem:[%s1503] sm:$0xf]
  %v1505 = vlaneseq
  %v1506 = vshrl.u32 %v1505, 7
  %v1507 = vsub.s32 0, %v1506
  %v1508 = vrot.slane %v1493, %v1507
  %v1509 = vlaneseq
  %v1510 = vshrl.u32 %v1509, 7
  %v1511 = vsub.s32 0, %v1510
  %v1512 = vrot.slane %v1494, %v1511
  %1514 = vset.pattern.permute.xlu0 0
  %1515 = vperm.xlu0 %1514, %v1504
  %v1516 = vpop.permute.xlu0 %1515
  %v1518 = vmul.f32 %v1508, %v1516
  %v1519 = vmul.f32 %v1512, %v1516
  %v1520 = vadd.f32 %v1518, 0.0
  %v1521 = vadd.f32 %v1519, 0.0
  %v1522 = vlaneseq
  %v1523 = vshrl.u32 %v1522, 7
  %v1524 = vsub.s32 0, %v1523
  %v1525 = vrot.slane %v1501, %v1524
  %v1526 = vlaneseq
  %v1527 = vshrl.u32 %v1526, 7
  %v1528 = vsub.s32 0, %v1527
  %v1529 = vrot.slane %v1502, %v1528
  %v1530 = vmul.f32 %v1525, %v1516
  %v1531 = vmul.f32 %v1529, %v1516
  %v1532 = vadd.f32 %v1530, 0.0
  %v1533 = vadd.f32 %v1531, 0.0
  %s1534 = scalar_lea.vmem %s1, 148
  %v1535 = vld [vmem:[%s1534] sm:$0xf]
  %v1536 = vlaneseq
  %v1537 = vshrl.u32 %v1536, 7
  %v1538 = vsub.s32 1, %v1537
  %v1539 = vrot.slane %v1493, %v1538
  %v1540 = vlaneseq
  %v1541 = vshrl.u32 %v1540, 7
  %v1542 = vsub.s32 1, %v1541
  %v1543 = vrot.slane %v1494, %v1542
  %1545 = vset.pattern.permute.xlu0 0
  %1546 = vperm.xlu0 %1545, %v1535
  %v1547 = vpop.permute.xlu0 %1546
  %v1549 = vmul.f32 %v1539, %v1547
  %v1550 = vmul.f32 %v1543, %v1547
  %v1551 = vadd.f32 %v1520, %v1549
  %v1552 = vadd.f32 %v1521, %v1550
  %v1553 = vlaneseq
  %v1554 = vshrl.u32 %v1553, 7
  %v1555 = vsub.s32 1, %v1554
  %v1556 = vrot.slane %v1501, %v1555
  %v1557 = vlaneseq
  %v1558 = vshrl.u32 %v1557, 7
  %v1559 = vsub.s32 1, %v1558
  %v1560 = vrot.slane %v1502, %v1559
  %v1561 = vmul.f32 %v1556, %v1547
  %v1562 = vmul.f32 %v1560, %v1547
  %v1563 = vadd.f32 %v1532, %v1561
  %v1564 = vadd.f32 %v1533, %v1562
  %s1565 = scalar_lea.vmem %s1, 152
  %v1566 = vld [vmem:[%s1565] sm:$0xf]
  %v1567 = vlaneseq
  %v1568 = vshrl.u32 %v1567, 7
  %v1569 = vsub.s32 2, %v1568
  %v1570 = vrot.slane %v1493, %v1569
  %v1571 = vlaneseq
  %v1572 = vshrl.u32 %v1571, 7
  %v1573 = vsub.s32 2, %v1572
  %v1574 = vrot.slane %v1494, %v1573
  %1576 = vset.pattern.permute.xlu0 0
  %1577 = vperm.xlu0 %1576, %v1566
  %v1578 = vpop.permute.xlu0 %1577
  %v1580 = vmul.f32 %v1570, %v1578
  %v1581 = vmul.f32 %v1574, %v1578
  %v1582 = vadd.f32 %v1551, %v1580
  %v1583 = vadd.f32 %v1552, %v1581
  %v1584 = vlaneseq
  %v1585 = vshrl.u32 %v1584, 7
  %v1586 = vsub.s32 2, %v1585
  %v1587 = vrot.slane %v1501, %v1586
  %v1588 = vlaneseq
  %v1589 = vshrl.u32 %v1588, 7
  %v1590 = vsub.s32 2, %v1589
  %v1591 = vrot.slane %v1502, %v1590
  %v1592 = vmul.f32 %v1587, %v1578
  %v1593 = vmul.f32 %v1591, %v1578
  %v1594 = vadd.f32 %v1563, %v1592
  %v1595 = vadd.f32 %v1564, %v1593
  %s1596 = scalar_lea.vmem %s1, 156
  %v1597 = vld [vmem:[%s1596] sm:$0xf]
  %v1598 = vlaneseq
  %v1599 = vshrl.u32 %v1598, 7
  %v1600 = vsub.s32 3, %v1599
  %v1601 = vrot.slane %v1493, %v1600
  %v1602 = vlaneseq
  %v1603 = vshrl.u32 %v1602, 7
  %v1604 = vsub.s32 3, %v1603
  %v1605 = vrot.slane %v1494, %v1604
  %1607 = vset.pattern.permute.xlu0 0
  %1608 = vperm.xlu0 %1607, %v1597
  %v1609 = vpop.permute.xlu0 %1608
  %v1611 = vmul.f32 %v1601, %v1609
  %v1612 = vmul.f32 %v1605, %v1609
  %v1613 = vadd.f32 %v1582, %v1611
  %v1614 = vadd.f32 %v1583, %v1612
  %v1615 = vlaneseq
  %v1616 = vshrl.u32 %v1615, 7
  %v1617 = vsub.s32 3, %v1616
  %v1618 = vrot.slane %v1501, %v1617
  %v1619 = vlaneseq
  %v1620 = vshrl.u32 %v1619, 7
  %v1621 = vsub.s32 3, %v1620
  %v1622 = vrot.slane %v1502, %v1621
  %v1623 = vmul.f32 %v1618, %v1609
  %v1624 = vmul.f32 %v1622, %v1609
  %v1625 = vadd.f32 %v1594, %v1623
  %v1626 = vadd.f32 %v1595, %v1624
  %1627 = vrot.lane.b32.xlu0 %v1483, 16
  %v1628 = vpop.permute.xlu0 %1627
  %1629 = vrot.lane.b32.xlu0 %v1484, 16
  %v1630 = vpop.permute.xlu0 %1629
  %v1631 = vsel %vm195, %v1628, %v1630
  %v1632 = vsel %vm195, %v1630, %v1628
  %v1633 = vsel %vm200, %v1632, 0.0
  %v1634 = vsel %vm201, %v1631, 0.0
  %1635 = vrot.lane.b32.xlu0 %v1485, 16
  %v1636 = vpop.permute.xlu0 %1635
  %1637 = vrot.lane.b32.xlu0 %v1486, 16
  %v1638 = vpop.permute.xlu0 %1637
  %v1639 = vsel %vm195, %v1636, %v1638
  %v1640 = vsel %vm195, %v1638, %v1636
  %v1641 = vsel %vm200, %v1640, 0.0
  %v1642 = vsel %vm201, %v1639, 0.0
  %s1643 = scalar_lea.vmem %s1, 160
  %v1644 = vld [vmem:[%s1643] sm:$0xf]
  %v1645 = vlaneseq
  %v1646 = vshrl.u32 %v1645, 7
  %v1647 = vsub.s32 0, %v1646
  %v1648 = vrot.slane %v1633, %v1647
  %v1649 = vlaneseq
  %v1650 = vshrl.u32 %v1649, 7
  %v1651 = vsub.s32 0, %v1650
  %v1652 = vrot.slane %v1634, %v1651
  %1654 = vset.pattern.permute.xlu0 0
  %1655 = vperm.xlu0 %1654, %v1644
  %v1656 = vpop.permute.xlu0 %1655
  %v1658 = vmul.f32 %v1648, %v1656
  %v1659 = vmul.f32 %v1652, %v1656
  %v1660 = vadd.f32 %v1613, %v1658
  %v1661 = vadd.f32 %v1614, %v1659
  %v1662 = vlaneseq
  %v1663 = vshrl.u32 %v1662, 7
  %v1664 = vsub.s32 0, %v1663
  %v1665 = vrot.slane %v1641, %v1664
  %v1666 = vlaneseq
  %v1667 = vshrl.u32 %v1666, 7
  %v1668 = vsub.s32 0, %v1667
  %v1669 = vrot.slane %v1642, %v1668
  %v1670 = vmul.f32 %v1665, %v1656
  %v1671 = vmul.f32 %v1669, %v1656
  %v1672 = vadd.f32 %v1625, %v1670
  %v1673 = vadd.f32 %v1626, %v1671
  %s1674 = scalar_lea.vmem %s1, 164
  %v1675 = vld [vmem:[%s1674] sm:$0xf]
  %v1676 = vlaneseq
  %v1677 = vshrl.u32 %v1676, 7
  %v1678 = vsub.s32 1, %v1677
  %v1679 = vrot.slane %v1633, %v1678
  %v1680 = vlaneseq
  %v1681 = vshrl.u32 %v1680, 7
  %v1682 = vsub.s32 1, %v1681
  %v1683 = vrot.slane %v1634, %v1682
  %1685 = vset.pattern.permute.xlu0 0
  %1686 = vperm.xlu0 %1685, %v1675
  %v1687 = vpop.permute.xlu0 %1686
  %v1689 = vmul.f32 %v1679, %v1687
  %v1690 = vmul.f32 %v1683, %v1687
  %v1691 = vadd.f32 %v1660, %v1689
  %v1692 = vadd.f32 %v1661, %v1690
  %v1693 = vlaneseq
  %v1694 = vshrl.u32 %v1693, 7
  %v1695 = vsub.s32 1, %v1694
  %v1696 = vrot.slane %v1641, %v1695
  %v1697 = vlaneseq
  %v1698 = vshrl.u32 %v1697, 7
  %v1699 = vsub.s32 1, %v1698
  %v1700 = vrot.slane %v1642, %v1699
  %v1701 = vmul.f32 %v1696, %v1687
  %v1702 = vmul.f32 %v1700, %v1687
  %v1703 = vadd.f32 %v1672, %v1701
  %v1704 = vadd.f32 %v1673, %v1702
  %s1705 = scalar_lea.vmem %s1, 168
  %v1706 = vld [vmem:[%s1705] sm:$0xf]
  %v1707 = vlaneseq
  %v1708 = vshrl.u32 %v1707, 7
  %v1709 = vsub.s32 2, %v1708
  %v1710 = vrot.slane %v1633, %v1709
  %v1711 = vlaneseq
  %v1712 = vshrl.u32 %v1711, 7
  %v1713 = vsub.s32 2, %v1712
  %v1714 = vrot.slane %v1634, %v1713
  %1716 = vset.pattern.permute.xlu0 0
  %1717 = vperm.xlu0 %1716, %v1706
  %v1718 = vpop.permute.xlu0 %1717
  %v1720 = vmul.f32 %v1710, %v1718
  %v1721 = vmul.f32 %v1714, %v1718
  %v1722 = vadd.f32 %v1691, %v1720
  %v1723 = vadd.f32 %v1692, %v1721
  %v1724 = vlaneseq
  %v1725 = vshrl.u32 %v1724, 7
  %v1726 = vsub.s32 2, %v1725
  %v1727 = vrot.slane %v1641, %v1726
  %v1728 = vlaneseq
  %v1729 = vshrl.u32 %v1728, 7
  %v1730 = vsub.s32 2, %v1729
  %v1731 = vrot.slane %v1642, %v1730
  %v1732 = vmul.f32 %v1727, %v1718
  %v1733 = vmul.f32 %v1731, %v1718
  %v1734 = vadd.f32 %v1703, %v1732
  %v1735 = vadd.f32 %v1704, %v1733
  %s1736 = scalar_lea.vmem %s1, 172
  %v1737 = vld [vmem:[%s1736] sm:$0xf]
  %v1738 = vlaneseq
  %v1739 = vshrl.u32 %v1738, 7
  %v1740 = vsub.s32 3, %v1739
  %v1741 = vrot.slane %v1633, %v1740
  %v1742 = vlaneseq
  %v1743 = vshrl.u32 %v1742, 7
  %v1744 = vsub.s32 3, %v1743
  %v1745 = vrot.slane %v1634, %v1744
  %1747 = vset.pattern.permute.xlu0 0
  %1748 = vperm.xlu0 %1747, %v1737
  %v1749 = vpop.permute.xlu0 %1748
  %v1751 = vmul.f32 %v1741, %v1749
  %v1752 = vmul.f32 %v1745, %v1749
  %v1753 = vadd.f32 %v1722, %v1751
  %v1754 = vadd.f32 %v1723, %v1752
  %v1755 = vlaneseq
  %v1756 = vshrl.u32 %v1755, 7
  %v1757 = vsub.s32 3, %v1756
  %v1758 = vrot.slane %v1641, %v1757
  %v1759 = vlaneseq
  %v1760 = vshrl.u32 %v1759, 7
  %v1761 = vsub.s32 3, %v1760
  %v1762 = vrot.slane %v1642, %v1761
  %v1763 = vmul.f32 %v1758, %v1749
  %v1764 = vmul.f32 %v1762, %v1749
  %v1765 = vadd.f32 %v1734, %v1763
  %v1766 = vadd.f32 %v1735, %v1764
  %1767 = vrot.lane.b32.xlu0 %v1483, 15
  %v1768 = vpop.permute.xlu0 %1767
  %1769 = vrot.lane.b32.xlu0 %v1484, 15
  %v1770 = vpop.permute.xlu0 %1769
  %v1771 = vsel %vm344, %v1768, %v1770
  %v1772 = vsel %vm344, %v1770, %v1768
  %v1773 = vsel %vm349, %v1772, 0.0
  %v1774 = vsel %vm350, %v1771, 0.0
  %1775 = vrot.lane.b32.xlu0 %v1485, 15
  %v1776 = vpop.permute.xlu0 %1775
  %1777 = vrot.lane.b32.xlu0 %v1486, 15
  %v1778 = vpop.permute.xlu0 %1777
  %v1779 = vsel %vm344, %v1776, %v1778
  %v1780 = vsel %vm344, %v1778, %v1776
  %v1781 = vsel %vm349, %v1780, 0.0
  %v1782 = vsel %vm350, %v1779, 0.0
  %s1783 = scalar_lea.vmem %s1, 176
  %v1784 = vld [vmem:[%s1783] sm:$0xf]
  %v1785 = vlaneseq
  %v1786 = vshrl.u32 %v1785, 7
  %v1787 = vsub.s32 0, %v1786
  %v1788 = vrot.slane %v1773, %v1787
  %v1789 = vlaneseq
  %v1790 = vshrl.u32 %v1789, 7
  %v1791 = vsub.s32 0, %v1790
  %v1792 = vrot.slane %v1774, %v1791
  %1794 = vset.pattern.permute.xlu0 0
  %1795 = vperm.xlu0 %1794, %v1784
  %v1796 = vpop.permute.xlu0 %1795
  %v1798 = vmul.f32 %v1788, %v1796
  %v1799 = vmul.f32 %v1792, %v1796
  %v1800 = vadd.f32 %v1753, %v1798
  %v1801 = vadd.f32 %v1754, %v1799
  %v1802 = vlaneseq
  %v1803 = vshrl.u32 %v1802, 7
  %v1804 = vsub.s32 0, %v1803
  %v1805 = vrot.slane %v1781, %v1804
  %v1806 = vlaneseq
  %v1807 = vshrl.u32 %v1806, 7
  %v1808 = vsub.s32 0, %v1807
  %v1809 = vrot.slane %v1782, %v1808
  %v1810 = vmul.f32 %v1805, %v1796
  %v1811 = vmul.f32 %v1809, %v1796
  %v1812 = vadd.f32 %v1765, %v1810
  %v1813 = vadd.f32 %v1766, %v1811
  %s1814 = scalar_lea.vmem %s1, 180
  %v1815 = vld [vmem:[%s1814] sm:$0xf]
  %v1816 = vlaneseq
  %v1817 = vshrl.u32 %v1816, 7
  %v1818 = vsub.s32 1, %v1817
  %v1819 = vrot.slane %v1773, %v1818
  %v1820 = vlaneseq
  %v1821 = vshrl.u32 %v1820, 7
  %v1822 = vsub.s32 1, %v1821
  %v1823 = vrot.slane %v1774, %v1822
  %1825 = vset.pattern.permute.xlu0 0
  %1826 = vperm.xlu0 %1825, %v1815
  %v1827 = vpop.permute.xlu0 %1826
  %v1829 = vmul.f32 %v1819, %v1827
  %v1830 = vmul.f32 %v1823, %v1827
  %v1831 = vadd.f32 %v1800, %v1829
  %v1832 = vadd.f32 %v1801, %v1830
  %v1833 = vlaneseq
  %v1834 = vshrl.u32 %v1833, 7
  %v1835 = vsub.s32 1, %v1834
  %v1836 = vrot.slane %v1781, %v1835
  %v1837 = vlaneseq
  %v1838 = vshrl.u32 %v1837, 7
  %v1839 = vsub.s32 1, %v1838
  %v1840 = vrot.slane %v1782, %v1839
  %v1841 = vmul.f32 %v1836, %v1827
  %v1842 = vmul.f32 %v1840, %v1827
  %v1843 = vadd.f32 %v1812, %v1841
  %v1844 = vadd.f32 %v1813, %v1842
  %s1845 = scalar_lea.vmem %s1, 184
  %v1846 = vld [vmem:[%s1845] sm:$0xf]
  %v1847 = vlaneseq
  %v1848 = vshrl.u32 %v1847, 7
  %v1849 = vsub.s32 2, %v1848
  %v1850 = vrot.slane %v1773, %v1849
  %v1851 = vlaneseq
  %v1852 = vshrl.u32 %v1851, 7
  %v1853 = vsub.s32 2, %v1852
  %v1854 = vrot.slane %v1774, %v1853
  %1856 = vset.pattern.permute.xlu0 0
  %1857 = vperm.xlu0 %1856, %v1846
  %v1858 = vpop.permute.xlu0 %1857
  %v1860 = vmul.f32 %v1850, %v1858
  %v1861 = vmul.f32 %v1854, %v1858
  %v1862 = vadd.f32 %v1831, %v1860
  %v1863 = vadd.f32 %v1832, %v1861
  %v1864 = vlaneseq
  %v1865 = vshrl.u32 %v1864, 7
  %v1866 = vsub.s32 2, %v1865
  %v1867 = vrot.slane %v1781, %v1866
  %v1868 = vlaneseq
  %v1869 = vshrl.u32 %v1868, 7
  %v1870 = vsub.s32 2, %v1869
  %v1871 = vrot.slane %v1782, %v1870
  %v1872 = vmul.f32 %v1867, %v1858
  %v1873 = vmul.f32 %v1871, %v1858
  %v1874 = vadd.f32 %v1843, %v1872
  %v1875 = vadd.f32 %v1844, %v1873
  %s1876 = scalar_lea.vmem %s1, 188
  %v1877 = vld [vmem:[%s1876] sm:$0xf]
  %v1878 = vlaneseq
  %v1879 = vshrl.u32 %v1878, 7
  %v1880 = vsub.s32 3, %v1879
  %v1881 = vrot.slane %v1773, %v1880
  %v1882 = vlaneseq
  %v1883 = vshrl.u32 %v1882, 7
  %v1884 = vsub.s32 3, %v1883
  %v1885 = vrot.slane %v1774, %v1884
  %1887 = vset.pattern.permute.xlu0 0
  %1888 = vperm.xlu0 %1887, %v1877
  %v1889 = vpop.permute.xlu0 %1888
  %v1891 = vmul.f32 %v1881, %v1889
  %v1892 = vmul.f32 %v1885, %v1889
  %v1893 = vadd.f32 %v1862, %v1891
  %v1894 = vadd.f32 %v1863, %v1892
  %v1895 = vlaneseq
  %v1896 = vshrl.u32 %v1895, 7
  %v1897 = vsub.s32 3, %v1896
  %v1898 = vrot.slane %v1781, %v1897
  %v1899 = vlaneseq
  %v1900 = vshrl.u32 %v1899, 7
  %v1901 = vsub.s32 3, %v1900
  %v1902 = vrot.slane %v1782, %v1901
  %v1903 = vmul.f32 %v1898, %v1889
  %v1904 = vmul.f32 %v1902, %v1889
  %v1905 = vadd.f32 %v1874, %v1903
  %v1906 = vadd.f32 %v1875, %v1904
  %1907 = vrot.lane.b32.xlu0 %v1483, 1
  %v1908 = vpop.permute.xlu0 %1907
  %1909 = vrot.lane.b32.xlu0 %v1484, 1
  %v1910 = vpop.permute.xlu0 %1909
  %v1911 = vsel %vm489, %v1908, %v1910
  %v1912 = vsel %vm489, %v1910, %v1908
  %v1913 = vsel %vm494, %v1912, 0.0
  %v1914 = vsel %vm495, %v1911, 0.0
  %1915 = vrot.lane.b32.xlu0 %v1485, 1
  %v1916 = vpop.permute.xlu0 %1915
  %1917 = vrot.lane.b32.xlu0 %v1486, 1
  %v1918 = vpop.permute.xlu0 %1917
  %v1919 = vsel %vm489, %v1916, %v1918
  %v1920 = vsel %vm489, %v1918, %v1916
  %v1921 = vsel %vm494, %v1920, 0.0
  %v1922 = vsel %vm495, %v1919, 0.0
  %s1923 = scalar_lea.vmem %s1, 192
  %v1924 = vld [vmem:[%s1923] sm:$0xf]
  %v1925 = vlaneseq
  %v1926 = vshrl.u32 %v1925, 7
  %v1927 = vsub.s32 0, %v1926
  %v1928 = vrot.slane %v1913, %v1927
  %v1929 = vlaneseq
  %v1930 = vshrl.u32 %v1929, 7
  %v1931 = vsub.s32 0, %v1930
  %v1932 = vrot.slane %v1914, %v1931
  %1934 = vset.pattern.permute.xlu0 0
  %1935 = vperm.xlu0 %1934, %v1924
  %v1936 = vpop.permute.xlu0 %1935
  %v1938 = vmul.f32 %v1928, %v1936
  %v1939 = vmul.f32 %v1932, %v1936
  %v1940 = vadd.f32 %v1893, %v1938
  %v1941 = vadd.f32 %v1894, %v1939
  %v1942 = vlaneseq
  %v1943 = vshrl.u32 %v1942, 7
  %v1944 = vsub.s32 0, %v1943
  %v1945 = vrot.slane %v1921, %v1944
  %v1946 = vlaneseq
  %v1947 = vshrl.u32 %v1946, 7
  %v1948 = vsub.s32 0, %v1947
  %v1949 = vrot.slane %v1922, %v1948
  %v1950 = vmul.f32 %v1945, %v1936
  %v1951 = vmul.f32 %v1949, %v1936
  %v1952 = vadd.f32 %v1905, %v1950
  %v1953 = vadd.f32 %v1906, %v1951
  %s1954 = scalar_lea.vmem %s1, 196
  %v1955 = vld [vmem:[%s1954] sm:$0xf]
  %v1956 = vlaneseq
  %v1957 = vshrl.u32 %v1956, 7
  %v1958 = vsub.s32 1, %v1957
  %v1959 = vrot.slane %v1913, %v1958
  %v1960 = vlaneseq
  %v1961 = vshrl.u32 %v1960, 7
  %v1962 = vsub.s32 1, %v1961
  %v1963 = vrot.slane %v1914, %v1962
  %1965 = vset.pattern.permute.xlu0 0
  %1966 = vperm.xlu0 %1965, %v1955
  %v1967 = vpop.permute.xlu0 %1966
  %v1969 = vmul.f32 %v1959, %v1967
  %v1970 = vmul.f32 %v1963, %v1967
  %v1971 = vadd.f32 %v1940, %v1969
  %v1972 = vadd.f32 %v1941, %v1970
  %v1973 = vlaneseq
  %v1974 = vshrl.u32 %v1973, 7
  %v1975 = vsub.s32 1, %v1974
  %v1976 = vrot.slane %v1921, %v1975
  %v1977 = vlaneseq
  %v1978 = vshrl.u32 %v1977, 7
  %v1979 = vsub.s32 1, %v1978
  %v1980 = vrot.slane %v1922, %v1979
  %v1981 = vmul.f32 %v1976, %v1967
  %v1982 = vmul.f32 %v1980, %v1967
  %v1983 = vadd.f32 %v1952, %v1981
  %v1984 = vadd.f32 %v1953, %v1982
  %s1985 = scalar_lea.vmem %s1, 200
  %v1986 = vld [vmem:[%s1985] sm:$0xf]
  %v1987 = vlaneseq
  %v1988 = vshrl.u32 %v1987, 7
  %v1989 = vsub.s32 2, %v1988
  %v1990 = vrot.slane %v1913, %v1989
  %v1991 = vlaneseq
  %v1992 = vshrl.u32 %v1991, 7
  %v1993 = vsub.s32 2, %v1992
  %v1994 = vrot.slane %v1914, %v1993
  %1996 = vset.pattern.permute.xlu0 0
  %1997 = vperm.xlu0 %1996, %v1986
  %v1998 = vpop.permute.xlu0 %1997
  %v2000 = vmul.f32 %v1990, %v1998
  %v2001 = vmul.f32 %v1994, %v1998
  %v2002 = vadd.f32 %v1971, %v2000
  %v2003 = vadd.f32 %v1972, %v2001
  %v2004 = vlaneseq
  %v2005 = vshrl.u32 %v2004, 7
  %v2006 = vsub.s32 2, %v2005
  %v2007 = vrot.slane %v1921, %v2006
  %v2008 = vlaneseq
  %v2009 = vshrl.u32 %v2008, 7
  %v2010 = vsub.s32 2, %v2009
  %v2011 = vrot.slane %v1922, %v2010
  %v2012 = vmul.f32 %v2007, %v1998
  %v2013 = vmul.f32 %v2011, %v1998
  %v2014 = vadd.f32 %v1983, %v2012
  %v2015 = vadd.f32 %v1984, %v2013
  %s2016 = scalar_lea.vmem %s1, 204
  %v2017 = vld [vmem:[%s2016] sm:$0xf]
  %v2018 = vlaneseq
  %v2019 = vshrl.u32 %v2018, 7
  %v2020 = vsub.s32 3, %v2019
  %v2021 = vrot.slane %v1913, %v2020
  %v2022 = vlaneseq
  %v2023 = vshrl.u32 %v2022, 7
  %v2024 = vsub.s32 3, %v2023
  %v2025 = vrot.slane %v1914, %v2024
  %2027 = vset.pattern.permute.xlu0 0
  %2028 = vperm.xlu0 %2027, %v2017
  %v2029 = vpop.permute.xlu0 %2028
  %v2031 = vmul.f32 %v2021, %v2029
  %v2032 = vmul.f32 %v2025, %v2029
  %v2033 = vadd.f32 %v2002, %v2031
  %v2034 = vadd.f32 %v2003, %v2032
  %v2035 = vlaneseq
  %v2036 = vshrl.u32 %v2035, 7
  %v2037 = vsub.s32 3, %v2036
  %v2038 = vrot.slane %v1921, %v2037
  %v2039 = vlaneseq
  %v2040 = vshrl.u32 %v2039, 7
  %v2041 = vsub.s32 3, %v2040
  %v2042 = vrot.slane %v1922, %v2041
  %v2043 = vmul.f32 %v2038, %v2029
  %v2044 = vmul.f32 %v2042, %v2029
  %v2045 = vadd.f32 %v2014, %v2043
  %v2046 = vadd.f32 %v2015, %v2044
  %s2047 = scalar_lea.vmem %s1, 208
  %v2048 = vld [vmem:[%s2047] sm:$0xf]
  %v2049 = vlaneseq
  %v2050 = vshrl.u32 %v2049, 7
  %v2051 = vsub.s32 0, %v2050
  %v2052 = vrot.slane %v1483, %v2051
  %v2053 = vlaneseq
  %v2054 = vshrl.u32 %v2053, 7
  %v2055 = vsub.s32 0, %v2054
  %v2056 = vrot.slane %v1484, %v2055
  %2058 = vset.pattern.permute.xlu0 0
  %2059 = vperm.xlu0 %2058, %v2048
  %v2060 = vpop.permute.xlu0 %2059
  %v2062 = vmul.f32 %v2052, %v2060
  %v2063 = vmul.f32 %v2056, %v2060
  %v2064 = vadd.f32 %v2033, %v2062
  %v2065 = vadd.f32 %v2034, %v2063
  %v2066 = vlaneseq
  %v2067 = vshrl.u32 %v2066, 7
  %v2068 = vsub.s32 0, %v2067
  %v2069 = vrot.slane %v1485, %v2068
  %v2070 = vlaneseq
  %v2071 = vshrl.u32 %v2070, 7
  %v2072 = vsub.s32 0, %v2071
  %v2073 = vrot.slane %v1486, %v2072
  %v2074 = vmul.f32 %v2069, %v2060
  %v2075 = vmul.f32 %v2073, %v2060
  %v2076 = vadd.f32 %v2045, %v2074
  %v2077 = vadd.f32 %v2046, %v2075
  %s2078 = scalar_lea.vmem %s1, 212
  %v2079 = vld [vmem:[%s2078] sm:$0xf]
  %v2080 = vlaneseq
  %v2081 = vshrl.u32 %v2080, 7
  %v2082 = vsub.s32 1, %v2081
  %v2083 = vrot.slane %v1483, %v2082
  %v2084 = vlaneseq
  %v2085 = vshrl.u32 %v2084, 7
  %v2086 = vsub.s32 1, %v2085
  %v2087 = vrot.slane %v1484, %v2086
  %2089 = vset.pattern.permute.xlu0 0
  %2090 = vperm.xlu0 %2089, %v2079
  %v2091 = vpop.permute.xlu0 %2090
  %v2093 = vmul.f32 %v2083, %v2091
  %v2094 = vmul.f32 %v2087, %v2091
  %v2095 = vadd.f32 %v2064, %v2093
  %v2096 = vadd.f32 %v2065, %v2094
  %v2097 = vlaneseq
  %v2098 = vshrl.u32 %v2097, 7
  %v2099 = vsub.s32 1, %v2098
  %v2100 = vrot.slane %v1485, %v2099
  %v2101 = vlaneseq
  %v2102 = vshrl.u32 %v2101, 7
  %v2103 = vsub.s32 1, %v2102
  %v2104 = vrot.slane %v1486, %v2103
  %v2105 = vmul.f32 %v2100, %v2091
  %v2106 = vmul.f32 %v2104, %v2091
  %v2107 = vadd.f32 %v2076, %v2105
  %v2108 = vadd.f32 %v2077, %v2106
  %s2109 = scalar_lea.vmem %s1, 216
  %v2110 = vld [vmem:[%s2109] sm:$0xf]
  %v2111 = vlaneseq
  %v2112 = vshrl.u32 %v2111, 7
  %v2113 = vsub.s32 2, %v2112
  %v2114 = vrot.slane %v1483, %v2113
  %v2115 = vlaneseq
  %v2116 = vshrl.u32 %v2115, 7
  %v2117 = vsub.s32 2, %v2116
  %v2118 = vrot.slane %v1484, %v2117
  %2120 = vset.pattern.permute.xlu0 0
  %2121 = vperm.xlu0 %2120, %v2110
  %v2122 = vpop.permute.xlu0 %2121
  %v2124 = vmul.f32 %v2114, %v2122
  %v2125 = vmul.f32 %v2118, %v2122
  %v2126 = vadd.f32 %v2095, %v2124
  %v2127 = vadd.f32 %v2096, %v2125
  %v2128 = vlaneseq
  %v2129 = vshrl.u32 %v2128, 7
  %v2130 = vsub.s32 2, %v2129
  %v2131 = vrot.slane %v1485, %v2130
  %v2132 = vlaneseq
  %v2133 = vshrl.u32 %v2132, 7
  %v2134 = vsub.s32 2, %v2133
  %v2135 = vrot.slane %v1486, %v2134
  %v2136 = vmul.f32 %v2131, %v2122
  %v2137 = vmul.f32 %v2135, %v2122
  %v2138 = vadd.f32 %v2107, %v2136
  %v2139 = vadd.f32 %v2108, %v2137
  %s2140 = scalar_lea.vmem %s1, 220
  %v2141 = vld [vmem:[%s2140] sm:$0xf]
  %v2142 = vlaneseq
  %v2143 = vshrl.u32 %v2142, 7
  %v2144 = vsub.s32 3, %v2143
  %v2145 = vrot.slane %v1483, %v2144
  %v2146 = vlaneseq
  %v2147 = vshrl.u32 %v2146, 7
  %v2148 = vsub.s32 3, %v2147
  %v2149 = vrot.slane %v1484, %v2148
  %2151 = vset.pattern.permute.xlu0 0
  %2152 = vperm.xlu0 %2151, %v2141
  %v2153 = vpop.permute.xlu0 %2152
  %v2155 = vmul.f32 %v2145, %v2153
  %v2156 = vmul.f32 %v2149, %v2153
  %v2157 = vadd.f32 %v2126, %v2155
  %v2158 = vadd.f32 %v2127, %v2156
  %v2159 = vlaneseq
  %v2160 = vshrl.u32 %v2159, 7
  %v2161 = vsub.s32 3, %v2160
  %v2162 = vrot.slane %v1485, %v2161
  %v2163 = vlaneseq
  %v2164 = vshrl.u32 %v2163, 7
  %v2165 = vsub.s32 3, %v2164
  %v2166 = vrot.slane %v1486, %v2165
  %v2167 = vmul.f32 %v2162, %v2153
  %v2168 = vmul.f32 %v2166, %v2153
  %v2169 = vadd.f32 %v2138, %v2167
  %v2170 = vadd.f32 %v2139, %v2168
  %2171 = vrot.lane.b32.xlu0 %v1483, 127
  %v2172 = vpop.permute.xlu0 %2171
  %2173 = vrot.lane.b32.xlu0 %v1484, 127
  %v2174 = vpop.permute.xlu0 %2173
  %v2175 = vsel %vm838, %v2172, %v2174
  %v2176 = vsel %vm838, %v2174, %v2172
  %v2177 = vsel %vm843, %v2175, 0.0
  %v2178 = vsel %vm844, %v2176, 0.0
  %2179 = vrot.lane.b32.xlu0 %v1485, 127
  %v2180 = vpop.permute.xlu0 %2179
  %2181 = vrot.lane.b32.xlu0 %v1486, 127
  %v2182 = vpop.permute.xlu0 %2181
  %v2183 = vsel %vm838, %v2180, %v2182
  %v2184 = vsel %vm838, %v2182, %v2180
  %v2185 = vsel %vm843, %v2183, 0.0
  %v2186 = vsel %vm844, %v2184, 0.0
  %s2187 = scalar_lea.vmem %s1, 224
  %v2188 = vld [vmem:[%s2187] sm:$0xf]
  %v2189 = vlaneseq
  %v2190 = vshrl.u32 %v2189, 7
  %v2191 = vsub.s32 0, %v2190
  %v2192 = vrot.slane %v2177, %v2191
  %v2193 = vlaneseq
  %v2194 = vshrl.u32 %v2193, 7
  %v2195 = vsub.s32 0, %v2194
  %v2196 = vrot.slane %v2178, %v2195
  %2198 = vset.pattern.permute.xlu0 0
  %2199 = vperm.xlu0 %2198, %v2188
  %v2200 = vpop.permute.xlu0 %2199
  %v2202 = vmul.f32 %v2192, %v2200
  %v2203 = vmul.f32 %v2196, %v2200
  %v2204 = vadd.f32 %v2157, %v2202
  %v2205 = vadd.f32 %v2158, %v2203
  %v2206 = vlaneseq
  %v2207 = vshrl.u32 %v2206, 7
  %v2208 = vsub.s32 0, %v2207
  %v2209 = vrot.slane %v2185, %v2208
  %v2210 = vlaneseq
  %v2211 = vshrl.u32 %v2210, 7
  %v2212 = vsub.s32 0, %v2211
  %v2213 = vrot.slane %v2186, %v2212
  %v2214 = vmul.f32 %v2209, %v2200
  %v2215 = vmul.f32 %v2213, %v2200
  %v2216 = vadd.f32 %v2169, %v2214
  %v2217 = vadd.f32 %v2170, %v2215
  %s2218 = scalar_lea.vmem %s1, 228
  %v2219 = vld [vmem:[%s2218] sm:$0xf]
  %v2220 = vlaneseq
  %v2221 = vshrl.u32 %v2220, 7
  %v2222 = vsub.s32 1, %v2221
  %v2223 = vrot.slane %v2177, %v2222
  %v2224 = vlaneseq
  %v2225 = vshrl.u32 %v2224, 7
  %v2226 = vsub.s32 1, %v2225
  %v2227 = vrot.slane %v2178, %v2226
  %2229 = vset.pattern.permute.xlu0 0
  %2230 = vperm.xlu0 %2229, %v2219
  %v2231 = vpop.permute.xlu0 %2230
  %v2233 = vmul.f32 %v2223, %v2231
  %v2234 = vmul.f32 %v2227, %v2231
  %v2235 = vadd.f32 %v2204, %v2233
  %v2236 = vadd.f32 %v2205, %v2234
  %v2237 = vlaneseq
  %v2238 = vshrl.u32 %v2237, 7
  %v2239 = vsub.s32 1, %v2238
  %v2240 = vrot.slane %v2185, %v2239
  %v2241 = vlaneseq
  %v2242 = vshrl.u32 %v2241, 7
  %v2243 = vsub.s32 1, %v2242
  %v2244 = vrot.slane %v2186, %v2243
  %v2245 = vmul.f32 %v2240, %v2231
  %v2246 = vmul.f32 %v2244, %v2231
  %v2247 = vadd.f32 %v2216, %v2245
  %v2248 = vadd.f32 %v2217, %v2246
  %s2249 = scalar_lea.vmem %s1, 232
  %v2250 = vld [vmem:[%s2249] sm:$0xf]
  %v2251 = vlaneseq
  %v2252 = vshrl.u32 %v2251, 7
  %v2253 = vsub.s32 2, %v2252
  %v2254 = vrot.slane %v2177, %v2253
  %v2255 = vlaneseq
  %v2256 = vshrl.u32 %v2255, 7
  %v2257 = vsub.s32 2, %v2256
  %v2258 = vrot.slane %v2178, %v2257
  %2260 = vset.pattern.permute.xlu0 0
  %2261 = vperm.xlu0 %2260, %v2250
  %v2262 = vpop.permute.xlu0 %2261
  %v2264 = vmul.f32 %v2254, %v2262
  %v2265 = vmul.f32 %v2258, %v2262
  %v2266 = vadd.f32 %v2235, %v2264
  %v2267 = vadd.f32 %v2236, %v2265
  %v2268 = vlaneseq
  %v2269 = vshrl.u32 %v2268, 7
  %v2270 = vsub.s32 2, %v2269
  %v2271 = vrot.slane %v2185, %v2270
  %v2272 = vlaneseq
  %v2273 = vshrl.u32 %v2272, 7
  %v2274 = vsub.s32 2, %v2273
  %v2275 = vrot.slane %v2186, %v2274
  %v2276 = vmul.f32 %v2271, %v2262
  %v2277 = vmul.f32 %v2275, %v2262
  %v2278 = vadd.f32 %v2247, %v2276
  %v2279 = vadd.f32 %v2248, %v2277
  %s2280 = scalar_lea.vmem %s1, 236
  %v2281 = vld [vmem:[%s2280] sm:$0xf]
  %v2282 = vlaneseq
  %v2283 = vshrl.u32 %v2282, 7
  %v2284 = vsub.s32 3, %v2283
  %v2285 = vrot.slane %v2177, %v2284
  %v2286 = vlaneseq
  %v2287 = vshrl.u32 %v2286, 7
  %v2288 = vsub.s32 3, %v2287
  %v2289 = vrot.slane %v2178, %v2288
  %2291 = vset.pattern.permute.xlu0 0
  %2292 = vperm.xlu0 %2291, %v2281
  %v2293 = vpop.permute.xlu0 %2292
  %v2295 = vmul.f32 %v2285, %v2293
  %v2296 = vmul.f32 %v2289, %v2293
  %v2297 = vadd.f32 %v2266, %v2295
  %v2298 = vadd.f32 %v2267, %v2296
  %v2299 = vlaneseq
  %v2300 = vshrl.u32 %v2299, 7
  %v2301 = vsub.s32 3, %v2300
  %v2302 = vrot.slane %v2185, %v2301
  %v2303 = vlaneseq
  %v2304 = vshrl.u32 %v2303, 7
  %v2305 = vsub.s32 3, %v2304
  %v2306 = vrot.slane %v2186, %v2305
  %v2307 = vmul.f32 %v2302, %v2293
  %v2308 = vmul.f32 %v2306, %v2293
  %v2309 = vadd.f32 %v2278, %v2307
  %v2310 = vadd.f32 %v2279, %v2308
  %2311 = vrot.lane.b32.xlu0 %v1483, 113
  %v2312 = vpop.permute.xlu0 %2311
  %2313 = vrot.lane.b32.xlu0 %v1484, 113
  %v2314 = vpop.permute.xlu0 %2313
  %v2315 = vsel %vm987, %v2312, %v2314
  %v2316 = vsel %vm987, %v2314, %v2312
  %v2317 = vsel %vm992, %v2315, 0.0
  %v2318 = vsel %vm993, %v2316, 0.0
  %2319 = vrot.lane.b32.xlu0 %v1485, 113
  %v2320 = vpop.permute.xlu0 %2319
  %2321 = vrot.lane.b32.xlu0 %v1486, 113
  %v2322 = vpop.permute.xlu0 %2321
  %v2323 = vsel %vm987, %v2320, %v2322
  %v2324 = vsel %vm987, %v2322, %v2320
  %v2325 = vsel %vm992, %v2323, 0.0
  %v2326 = vsel %vm993, %v2324, 0.0
  %s2327 = scalar_lea.vmem %s1, 240
  %v2328 = vld [vmem:[%s2327] sm:$0xf]
  %v2329 = vlaneseq
  %v2330 = vshrl.u32 %v2329, 7
  %v2331 = vsub.s32 0, %v2330
  %v2332 = vrot.slane %v2317, %v2331
  %v2333 = vlaneseq
  %v2334 = vshrl.u32 %v2333, 7
  %v2335 = vsub.s32 0, %v2334
  %v2336 = vrot.slane %v2318, %v2335
  %2338 = vset.pattern.permute.xlu0 0
  %2339 = vperm.xlu0 %2338, %v2328
  %v2340 = vpop.permute.xlu0 %2339
  %v2342 = vmul.f32 %v2332, %v2340
  %v2343 = vmul.f32 %v2336, %v2340
  %v2344 = vadd.f32 %v2297, %v2342
  %v2345 = vadd.f32 %v2298, %v2343
  %v2346 = vlaneseq
  %v2347 = vshrl.u32 %v2346, 7
  %v2348 = vsub.s32 0, %v2347
  %v2349 = vrot.slane %v2325, %v2348
  %v2350 = vlaneseq
  %v2351 = vshrl.u32 %v2350, 7
  %v2352 = vsub.s32 0, %v2351
  %v2353 = vrot.slane %v2326, %v2352
  %v2354 = vmul.f32 %v2349, %v2340
  %v2355 = vmul.f32 %v2353, %v2340
  %v2356 = vadd.f32 %v2309, %v2354
  %v2357 = vadd.f32 %v2310, %v2355
  %s2358 = scalar_lea.vmem %s1, 244
  %v2359 = vld [vmem:[%s2358] sm:$0xf]
  %v2360 = vlaneseq
  %v2361 = vshrl.u32 %v2360, 7
  %v2362 = vsub.s32 1, %v2361
  %v2363 = vrot.slane %v2317, %v2362
  %v2364 = vlaneseq
  %v2365 = vshrl.u32 %v2364, 7
  %v2366 = vsub.s32 1, %v2365
  %v2367 = vrot.slane %v2318, %v2366
  %2369 = vset.pattern.permute.xlu0 0
  %2370 = vperm.xlu0 %2369, %v2359
  %v2371 = vpop.permute.xlu0 %2370
  %v2373 = vmul.f32 %v2363, %v2371
  %v2374 = vmul.f32 %v2367, %v2371
  %v2375 = vadd.f32 %v2344, %v2373
  %v2376 = vadd.f32 %v2345, %v2374
  %v2377 = vlaneseq
  %v2378 = vshrl.u32 %v2377, 7
  %v2379 = vsub.s32 1, %v2378
  %v2380 = vrot.slane %v2325, %v2379
  %v2381 = vlaneseq
  %v2382 = vshrl.u32 %v2381, 7
  %v2383 = vsub.s32 1, %v2382
  %v2384 = vrot.slane %v2326, %v2383
  %v2385 = vmul.f32 %v2380, %v2371
  %v2386 = vmul.f32 %v2384, %v2371
  %v2387 = vadd.f32 %v2356, %v2385
  %v2388 = vadd.f32 %v2357, %v2386
  %s2389 = scalar_lea.vmem %s1, 248
  %v2390 = vld [vmem:[%s2389] sm:$0xf]
  %v2391 = vlaneseq
  %v2392 = vshrl.u32 %v2391, 7
  %v2393 = vsub.s32 2, %v2392
  %v2394 = vrot.slane %v2317, %v2393
  %v2395 = vlaneseq
  %v2396 = vshrl.u32 %v2395, 7
  %v2397 = vsub.s32 2, %v2396
  %v2398 = vrot.slane %v2318, %v2397
  %2400 = vset.pattern.permute.xlu0 0
  %2401 = vperm.xlu0 %2400, %v2390
  %v2402 = vpop.permute.xlu0 %2401
  %v2404 = vmul.f32 %v2394, %v2402
  %v2405 = vmul.f32 %v2398, %v2402
  %v2406 = vadd.f32 %v2375, %v2404
  %v2407 = vadd.f32 %v2376, %v2405
  %v2408 = vlaneseq
  %v2409 = vshrl.u32 %v2408, 7
  %v2410 = vsub.s32 2, %v2409
  %v2411 = vrot.slane %v2325, %v2410
  %v2412 = vlaneseq
  %v2413 = vshrl.u32 %v2412, 7
  %v2414 = vsub.s32 2, %v2413
  %v2415 = vrot.slane %v2326, %v2414
  %v2416 = vmul.f32 %v2411, %v2402
  %v2417 = vmul.f32 %v2415, %v2402
  %v2418 = vadd.f32 %v2387, %v2416
  %v2419 = vadd.f32 %v2388, %v2417
  %s2420 = scalar_lea.vmem %s1, 252
  %v2421 = vld [vmem:[%s2420] sm:$0xf]
  %v2422 = vlaneseq
  %v2423 = vshrl.u32 %v2422, 7
  %v2424 = vsub.s32 3, %v2423
  %v2425 = vrot.slane %v2317, %v2424
  %v2426 = vlaneseq
  %v2427 = vshrl.u32 %v2426, 7
  %v2428 = vsub.s32 3, %v2427
  %v2429 = vrot.slane %v2318, %v2428
  %2431 = vset.pattern.permute.xlu0 0
  %2432 = vperm.xlu0 %2431, %v2421
  %v2433 = vpop.permute.xlu0 %2432
  %v2435 = vmul.f32 %v2425, %v2433
  %v2436 = vmul.f32 %v2429, %v2433
  %v2437 = vadd.f32 %v2406, %v2435
  %v2438 = vadd.f32 %v2407, %v2436
  %v2439 = vlaneseq
  %v2440 = vshrl.u32 %v2439, 7
  %v2441 = vsub.s32 3, %v2440
  %v2442 = vrot.slane %v2325, %v2441
  %v2443 = vlaneseq
  %v2444 = vshrl.u32 %v2443, 7
  %v2445 = vsub.s32 3, %v2444
  %v2446 = vrot.slane %v2326, %v2445
  %v2447 = vmul.f32 %v2442, %v2433
  %v2448 = vmul.f32 %v2446, %v2433
  %v2449 = vadd.f32 %v2418, %v2447
  %v2450 = vadd.f32 %v2419, %v2448
  %2451 = vrot.lane.b32.xlu0 %v1483, 112
  %v2452 = vpop.permute.xlu0 %2451
  %2453 = vrot.lane.b32.xlu0 %v1484, 112
  %v2454 = vpop.permute.xlu0 %2453
  %v2455 = vsel %vm1132, %v2452, %v2454
  %v2456 = vsel %vm1132, %v2454, %v2452
  %v2457 = vsel %vm1137, %v2455, 0.0
  %v2458 = vsel %vm1138, %v2456, 0.0
  %2459 = vrot.lane.b32.xlu0 %v1485, 112
  %v2460 = vpop.permute.xlu0 %2459
  %2461 = vrot.lane.b32.xlu0 %v1486, 112
  %v2462 = vpop.permute.xlu0 %2461
  %v2463 = vsel %vm1132, %v2460, %v2462
  %v2464 = vsel %vm1132, %v2462, %v2460
  %v2465 = vsel %vm1137, %v2463, 0.0
  %v2466 = vsel %vm1138, %v2464, 0.0
  %s2467 = scalar_lea.vmem %s1, 256
  %v2468 = vld [vmem:[%s2467] sm:$0xf]
  %v2469 = vlaneseq
  %v2470 = vshrl.u32 %v2469, 7
  %v2471 = vsub.s32 0, %v2470
  %v2472 = vrot.slane %v2457, %v2471
  %v2473 = vlaneseq
  %v2474 = vshrl.u32 %v2473, 7
  %v2475 = vsub.s32 0, %v2474
  %v2476 = vrot.slane %v2458, %v2475
  %2478 = vset.pattern.permute.xlu0 0
  %2479 = vperm.xlu0 %2478, %v2468
  %v2480 = vpop.permute.xlu0 %2479
  %v2482 = vmul.f32 %v2472, %v2480
  %v2483 = vmul.f32 %v2476, %v2480
  %v2484 = vadd.f32 %v2437, %v2482
  %v2485 = vadd.f32 %v2438, %v2483
  %v2486 = vlaneseq
  %v2487 = vshrl.u32 %v2486, 7
  %v2488 = vsub.s32 0, %v2487
  %v2489 = vrot.slane %v2465, %v2488
  %v2490 = vlaneseq
  %v2491 = vshrl.u32 %v2490, 7
  %v2492 = vsub.s32 0, %v2491
  %v2493 = vrot.slane %v2466, %v2492
  %v2494 = vmul.f32 %v2489, %v2480
  %v2495 = vmul.f32 %v2493, %v2480
  %v2496 = vadd.f32 %v2449, %v2494
  %v2497 = vadd.f32 %v2450, %v2495
  %s2498 = scalar_lea.vmem %s1, 260
  %v2499 = vld [vmem:[%s2498] sm:$0xf]
  %v2500 = vlaneseq
  %v2501 = vshrl.u32 %v2500, 7
  %v2502 = vsub.s32 1, %v2501
  %v2503 = vrot.slane %v2457, %v2502
  %v2504 = vlaneseq
  %v2505 = vshrl.u32 %v2504, 7
  %v2506 = vsub.s32 1, %v2505
  %v2507 = vrot.slane %v2458, %v2506
  %2509 = vset.pattern.permute.xlu0 0
  %2510 = vperm.xlu0 %2509, %v2499
  %v2511 = vpop.permute.xlu0 %2510
  %v2513 = vmul.f32 %v2503, %v2511
  %v2514 = vmul.f32 %v2507, %v2511
  %v2515 = vadd.f32 %v2484, %v2513
  %v2516 = vadd.f32 %v2485, %v2514
  %v2517 = vlaneseq
  %v2518 = vshrl.u32 %v2517, 7
  %v2519 = vsub.s32 1, %v2518
  %v2520 = vrot.slane %v2465, %v2519
  %v2521 = vlaneseq
  %v2522 = vshrl.u32 %v2521, 7
  %v2523 = vsub.s32 1, %v2522
  %v2524 = vrot.slane %v2466, %v2523
  %v2525 = vmul.f32 %v2520, %v2511
  %v2526 = vmul.f32 %v2524, %v2511
  %v2527 = vadd.f32 %v2496, %v2525
  %v2528 = vadd.f32 %v2497, %v2526
  %s2529 = scalar_lea.vmem %s1, 264
  %v2530 = vld [vmem:[%s2529] sm:$0xf]
  %v2531 = vlaneseq
  %v2532 = vshrl.u32 %v2531, 7
  %v2533 = vsub.s32 2, %v2532
  %v2534 = vrot.slane %v2457, %v2533
  %v2535 = vlaneseq
  %v2536 = vshrl.u32 %v2535, 7
  %v2537 = vsub.s32 2, %v2536
  %v2538 = vrot.slane %v2458, %v2537
  %2540 = vset.pattern.permute.xlu0 0
  %2541 = vperm.xlu0 %2540, %v2530
  %v2542 = vpop.permute.xlu0 %2541
  %v2544 = vmul.f32 %v2534, %v2542
  %v2545 = vmul.f32 %v2538, %v2542
  %v2546 = vadd.f32 %v2515, %v2544
  %v2547 = vadd.f32 %v2516, %v2545
  %v2548 = vlaneseq
  %v2549 = vshrl.u32 %v2548, 7
  %v2550 = vsub.s32 2, %v2549
  %v2551 = vrot.slane %v2465, %v2550
  %v2552 = vlaneseq
  %v2553 = vshrl.u32 %v2552, 7
  %v2554 = vsub.s32 2, %v2553
  %v2555 = vrot.slane %v2466, %v2554
  %v2556 = vmul.f32 %v2551, %v2542
  %v2557 = vmul.f32 %v2555, %v2542
  %v2558 = vadd.f32 %v2527, %v2556
  %v2559 = vadd.f32 %v2528, %v2557
  %s2560 = scalar_lea.vmem %s1, 268
  %v2561 = vld [vmem:[%s2560] sm:$0xf]
  %v2562 = vlaneseq
  %v2563 = vshrl.u32 %v2562, 7
  %v2564 = vsub.s32 3, %v2563
  %v2565 = vrot.slane %v2457, %v2564
  %v2566 = vlaneseq
  %v2567 = vshrl.u32 %v2566, 7
  %v2568 = vsub.s32 3, %v2567
  %v2569 = vrot.slane %v2458, %v2568
  %2571 = vset.pattern.permute.xlu0 0
  %2572 = vperm.xlu0 %2571, %v2561
  %v2573 = vpop.permute.xlu0 %2572
  %v2575 = vmul.f32 %v2565, %v2573
  %v2576 = vmul.f32 %v2569, %v2573
  %v2577 = vadd.f32 %v2546, %v2575
  %v2578 = vadd.f32 %v2547, %v2576
  %v2579 = vlaneseq
  %v2580 = vshrl.u32 %v2579, 7
  %v2581 = vsub.s32 3, %v2580
  %v2582 = vrot.slane %v2465, %v2581
  %v2583 = vlaneseq
  %v2584 = vshrl.u32 %v2583, 7
  %v2585 = vsub.s32 3, %v2584
  %v2586 = vrot.slane %v2466, %v2585
  %v2587 = vmul.f32 %v2582, %v2573
  %v2588 = vmul.f32 %v2586, %v2573
  %v2589 = vadd.f32 %v2558, %v2587
  %v2590 = vadd.f32 %v2559, %v2588
  %2591 = vrot.lane.b32.xlu0 %v1483, 111
  %v2592 = vpop.permute.xlu0 %2591
  %2593 = vrot.lane.b32.xlu0 %v1484, 111
  %v2594 = vpop.permute.xlu0 %2593
  %v2595 = vsel %vm1279, %v2592, %v2594
  %v2596 = vsel %vm1279, %v2594, %v2592
  %v2597 = vsel %vm1284, %v2595, 0.0
  %v2598 = vsel %vm1285, %v2596, 0.0
  %2599 = vrot.lane.b32.xlu0 %v1485, 111
  %v2600 = vpop.permute.xlu0 %2599
  %2601 = vrot.lane.b32.xlu0 %v1486, 111
  %v2602 = vpop.permute.xlu0 %2601
  %v2603 = vsel %vm1279, %v2600, %v2602
  %v2604 = vsel %vm1279, %v2602, %v2600
  %v2605 = vsel %vm1284, %v2603, 0.0
  %v2606 = vsel %vm1285, %v2604, 0.0
  %s2607 = scalar_lea.vmem %s1, 272
  %v2608 = vld [vmem:[%s2607] sm:$0xf]
  %v2609 = vlaneseq
  %v2610 = vshrl.u32 %v2609, 7
  %v2611 = vsub.s32 0, %v2610
  %v2612 = vrot.slane %v2597, %v2611
  %v2613 = vlaneseq
  %v2614 = vshrl.u32 %v2613, 7
  %v2615 = vsub.s32 0, %v2614
  %v2616 = vrot.slane %v2598, %v2615
  %2618 = vset.pattern.permute.xlu0 0
  %2619 = vperm.xlu0 %2618, %v2608
  %v2620 = vpop.permute.xlu0 %2619
  %v2622 = vmul.f32 %v2612, %v2620
  %v2623 = vmul.f32 %v2616, %v2620
  %v2624 = vadd.f32 %v2577, %v2622
  %v2625 = vadd.f32 %v2578, %v2623
  %v2626 = vlaneseq
  %v2627 = vshrl.u32 %v2626, 7
  %v2628 = vsub.s32 0, %v2627
  %v2629 = vrot.slane %v2605, %v2628
  %v2630 = vlaneseq
  %v2631 = vshrl.u32 %v2630, 7
  %v2632 = vsub.s32 0, %v2631
  %v2633 = vrot.slane %v2606, %v2632
  %v2634 = vmul.f32 %v2629, %v2620
  %v2635 = vmul.f32 %v2633, %v2620
  %v2636 = vadd.f32 %v2589, %v2634
  %v2637 = vadd.f32 %v2590, %v2635
  %s2638 = scalar_lea.vmem %s1, 276
  %v2639 = vld [vmem:[%s2638] sm:$0xf]
  %v2640 = vlaneseq
  %v2641 = vshrl.u32 %v2640, 7
  %v2642 = vsub.s32 1, %v2641
  %v2643 = vrot.slane %v2597, %v2642
  %v2644 = vlaneseq
  %v2645 = vshrl.u32 %v2644, 7
  %v2646 = vsub.s32 1, %v2645
  %v2647 = vrot.slane %v2598, %v2646
  %2649 = vset.pattern.permute.xlu0 0
  %2650 = vperm.xlu0 %2649, %v2639
  %v2651 = vpop.permute.xlu0 %2650
  %v2653 = vmul.f32 %v2643, %v2651
  %v2654 = vmul.f32 %v2647, %v2651
  %v2655 = vadd.f32 %v2624, %v2653
  %v2656 = vadd.f32 %v2625, %v2654
  %v2657 = vlaneseq
  %v2658 = vshrl.u32 %v2657, 7
  %v2659 = vsub.s32 1, %v2658
  %v2660 = vrot.slane %v2605, %v2659
  %v2661 = vlaneseq
  %v2662 = vshrl.u32 %v2661, 7
  %v2663 = vsub.s32 1, %v2662
  %v2664 = vrot.slane %v2606, %v2663
  %v2665 = vmul.f32 %v2660, %v2651
  %v2666 = vmul.f32 %v2664, %v2651
  %v2667 = vadd.f32 %v2636, %v2665
  %v2668 = vadd.f32 %v2637, %v2666
  %s2669 = scalar_lea.vmem %s1, 280
  %v2670 = vld [vmem:[%s2669] sm:$0xf]
  %v2671 = vlaneseq
  %v2672 = vshrl.u32 %v2671, 7
  %v2673 = vsub.s32 2, %v2672
  %v2674 = vrot.slane %v2597, %v2673
  %v2675 = vlaneseq
  %v2676 = vshrl.u32 %v2675, 7
  %v2677 = vsub.s32 2, %v2676
  %v2678 = vrot.slane %v2598, %v2677
  %2680 = vset.pattern.permute.xlu0 0
  %2681 = vperm.xlu0 %2680, %v2670
  %v2682 = vpop.permute.xlu0 %2681
  %v2684 = vmul.f32 %v2674, %v2682
  %v2685 = vmul.f32 %v2678, %v2682
  %v2686 = vadd.f32 %v2655, %v2684
  %v2687 = vadd.f32 %v2656, %v2685
  %v2688 = vlaneseq
  %v2689 = vshrl.u32 %v2688, 7
  %v2690 = vsub.s32 2, %v2689
  %v2691 = vrot.slane %v2605, %v2690
  %v2692 = vlaneseq
  %v2693 = vshrl.u32 %v2692, 7
  %v2694 = vsub.s32 2, %v2693
  %v2695 = vrot.slane %v2606, %v2694
  %v2696 = vmul.f32 %v2691, %v2682
  %v2697 = vmul.f32 %v2695, %v2682
  %v2698 = vadd.f32 %v2667, %v2696
  %v2699 = vadd.f32 %v2668, %v2697
  %s2700 = scalar_lea.vmem %s1, 284
  %v2701 = vld [vmem:[%s2700] sm:$0xf]
  %v2702 = vlaneseq
  %v2703 = vshrl.u32 %v2702, 7
  %v2704 = vsub.s32 3, %v2703
  %v2705 = vrot.slane %v2597, %v2704
  %v2706 = vlaneseq
  %v2707 = vshrl.u32 %v2706, 7
  %v2708 = vsub.s32 3, %v2707
  %v2709 = vrot.slane %v2598, %v2708
  %2711 = vset.pattern.permute.xlu0 0
  %2712 = vperm.xlu0 %2711, %v2701
  %v2713 = vpop.permute.xlu0 %2712
  %v2715 = vmul.f32 %v2705, %v2713
  %v2716 = vmul.f32 %v2709, %v2713
  %v2717 = vadd.f32 %v2686, %v2715
  %v2718 = vadd.f32 %v2687, %v2716
  %v2719 = vlaneseq
  %v2720 = vshrl.u32 %v2719, 7
  %v2721 = vsub.s32 3, %v2720
  %v2722 = vrot.slane %v2605, %v2721
  %v2723 = vlaneseq
  %v2724 = vshrl.u32 %v2723, 7
  %v2725 = vsub.s32 3, %v2724
  %v2726 = vrot.slane %v2606, %v2725
  %v2727 = vmul.f32 %v2722, %v2713
  %v2728 = vmul.f32 %v2726, %v2713
  %v2729 = vadd.f32 %v2698, %v2727
  %v2730 = vadd.f32 %v2699, %v2728
  %2732 = vset.pattern.permute.xlu0 0
  %2733 = vperm.xlu0 %2732, %v20
  %v2734 = vpop.permute.xlu0 %2733
  %v2736 = vadd.f32 %v2717, %v2734
  %v2737 = vadd.f32 %v2718, %v2734
  %v2738 = vadd.f32 %v2729, %v2734
  %v2739 = vadd.f32 %v2730, %v2734
  %v2740 = vsel %vm1429, %v2736, 0.0
  %v2741 = vsel %vm1429, %v2737, 0.0
  %v2742 = vadd.f32 %v2740, %v2741
  %2743 = vadd.xlane.f32.xlu0 %v2742
  %v2744 = vpop.xlane.xlu0 %2743
  %v2745 = vmul.f32 %v2736, %v2736
  %v2746 = vmul.f32 %v2737, %v2737
  %v2747 = vsel %vm1429, %v2745, 0.0
  %v2748 = vsel %vm1429, %v2746, 0.0
  %v2749 = vadd.f32 %v2747, %v2748
  %2750 = vadd.xlane.f32.xlu0 %v2749
  %v2751 = vpop.xlane.xlu0 %2750
  %v2752 = vsel %vm1429, %v2738, 0.0
  %v2753 = vsel %vm1429, %v2739, 0.0
  %v2754 = vadd.f32 %v2752, %v2753
  %2755 = vadd.xlane.f32.xlu0 %v2754
  %v2756 = vpop.xlane.xlu0 %2755
  %v2757 = vadd.f32 %v2744, %v2756
  %v2758 = vmul.f32 %v2738, %v2738
  %v2759 = vmul.f32 %v2739, %v2739
  %v2760 = vsel %vm1429, %v2758, 0.0
  %v2761 = vsel %vm1429, %v2759, 0.0
  %v2762 = vadd.f32 %v2760, %v2761
  %2763 = vadd.xlane.f32.xlu0 %v2762
  %v2764 = vpop.xlane.xlu0 %2763
  %v2765 = vadd.f32 %v2751, %v2764
  %v2766 = vmul.f32 %v2757, 0.001953125
  %v2767 = vmul.f32 %v2765, 0.001953125
  %v2768 = vmul.f32 %v2766, %v2766
  %v2769 = vsub.f32 %v2767, %v2768
  %v2770 = vadd.f32 %v2769, 1e-05
  %v2771 = vrsqrt.pop %v2770
  %v2772 = vmul.f32 %v22, %v2771
  %v2773 = vmul.f32 %v2766, %v2772
  %v2774 = vsub.f32 %v24, %v2773
  %2776 = vset.pattern.permute.xlu0 0
  %2777 = vperm.xlu0 %2776, %v2772
  %v2778 = vpop.permute.xlu0 %2777
  %v2780 = vmul.f32 %v2736, %v2778
  %v2781 = vmul.f32 %v2737, %v2778
  %2783 = vset.pattern.permute.xlu0 0
  %2784 = vperm.xlu0 %2783, %v2774
  %v2785 = vpop.permute.xlu0 %2784
  %v2787 = vadd.f32 %v2780, %v2785
  %v2788 = vadd.f32 %v2781, %v2785
  %v2789 = vmul.f32 %v2738, %v2778
  %v2790 = vmul.f32 %v2739, %v2778
  %v2791 = vadd.f32 %v2789, %v2785
  %v2792 = vadd.f32 %v2790, %v2785
  %v2793 = vadd.f32 %v2787, %v32
  %v2794 = vadd.f32 %v2788, %v42
  %v2795 = vmax.f32 %v2793, 0.0
  %v2796 = vmax.f32 %v2794, 0.0
  %v2799 = vcombine.low %v2795, %v2796
  %2801 = vst [vmem:[%s3] sm:$0xff] %v2799
  %v2802 = vadd.f32 %v2791, %v34
  %v2803 = vadd.f32 %v2792, %v58
  %v2804 = vmax.f32 %v2802, 0.0
  %v2805 = vmax.f32 %v2803, 0.0
  %v2808 = vcombine.low %v2804, %v2805
  %s2810 = scalar_lea.vmem %s3, 8
  %2811 = vst [vmem:[%s2810] sm:$0xff] %v2808
  // Predicated region
  $region14: #{basic_block_pallas.1} parent=0 // pred_check
    _
  $region15: #{basic_block_pallas.1} parent=0 // pred_check_branch
    %2813 = sbr.rel (0) target = $region17
  $region16: #{basic_block_pallas.1} parent=0 // pred_region
    _
  $region17: #{basic_block_pallas.1} parent=0 // pred_fallthru
    _
  // Predicated region
  $region18: #{basic_block_pallas.1} parent=0 // pred_check
    _
  $region19: #{basic_block_pallas.1} parent=0 // pred_check_branch
    %2815 = sbr.rel (0) target = $region21
  $region20: #{basic_block_pallas.1} parent=0 // pred_region
    _
  $region21: #{basic_block_pallas.1} parent=0 // pred_fallthru
    _

</llo_original>
